<compile_context>
chip_gen: v7x
topology: tpu7x:2x2x1
jax: 0.10.0
libtpu: 0.0.40
codegen_flags: <defaults>
</compile_context>

<pallas_src>
import functools

import jax
import jax.numpy as jnp
from jax.experimental import pallas as pl
from jax.experimental.pallas import tpu as pltpu

EPS = 1e-5      # PyTorch BatchNorm2d default eps
LANE = 128      # TPU lane width


def _round_up(x, m):
    return (x + m - 1) // m * m


# ---------------------------------------------------------------------------
# Kernel 1: BN1 (per-channel scale/shift from cached global stats) -> ReLU ->
#           1x1 conv (MXU matmul, f32 accumulation) -> t (stored in cdt),
#           + per-tile sum / sum-of-squares of t (grid-safe BN2 statistics).
# ---------------------------------------------------------------------------
def _stage1_kernel(x_ref, s1_ref, b1_ref, w1_ref, t_ref, st_ref, *, cdt):
    x = x_ref[...].astype(jnp.float32)                       # (TM, c_used_p)
    h = jnp.maximum(x * s1_ref[...] + b1_ref[...], 0.0)      # BN1 + ReLU
    t = jnp.dot(h.astype(cdt), w1_ref[...],
                preferred_element_type=jnp.float32)           # 1x1 conv on MXU
    t_ref[...] = t.astype(t_ref.dtype)
    st_ref[0] = jnp.concatenate(                              # single stats store
        [jnp.sum(t, axis=0, keepdims=True),
         jnp.sum(t * t, axis=0, keepdims=True)], axis=0)


# ---------------------------------------------------------------------------
# Kernel 2: BN2 -> ReLU -> 3x3 conv (padding=1, no bias) as 3 MXU matmuls
#           (one per ky) with K = 3*cmid_p over a zero-haloed VMEM scratch
#           holding [dx=0-shifted | center | dx=2-shifted] channel blocks.
# ---------------------------------------------------------------------------
def _stage2_kernel(t_ref, s2_ref, b2_ref, w2_ref, y_ref, st_ref, pad_ref,
                   *, H, W, P):
    HW = H * W
    C3 = pad_ref.shape[1]                  # 3 * cmid_p
    Cm = C3 // 3                           # cmid_p
    dt = pad_ref.dtype

    # BN2 + ReLU once per image (f32 math), single cast to the scratch dtype.
    a = jnp.maximum(t_ref[...].astype(jnp.float32) * s2_ref[...] + b2_ref[...],
                    0.0).astype(dt)

    # Horizontal (left/right image edge) zeros folded into the shifted stores,
    # so no per-tap output masking is needed later.
    col = jax.lax.broadcasted_iota(jnp.int32, (HW, 1), 0) % W
    a_l = jnp.where(col != (W - 1), a, jnp.zeros((), dt))    # feeds dx=0 taps
    a_r = jnp.where(col != 0, a, jnp.zeros((), dt))          # feeds dx=2 taps

    # Zero the vertical halos every step (scratch persists across grid steps,
    # but the "parallel" axis may be sharded across TensorCores, so gating on
    # program_id==0 is unsafe; this is only ~2*W rows of stores).
    pad_ref[P - W:P, :] = jnp.zeros((W, C3), dt)
    pad_ref[P + HW:P + HW + W, :] = jnp.zeros((W, C3), dt)
    pad_ref[P:P + 1, 0:Cm] = jnp.zeros((1, Cm), dt)
    pad_ref[P + HW - 1:P + HW, 2 * Cm:C3] = jnp.zeros((1, Cm), dt)

    # Channel-block layout of the image region (row offset P):
    #   cols [0,Cm)    : a shifted so row r holds pixel r-1 (left tap, dx=0)
    #   cols [Cm,2Cm)  : a (center tap, dx=1)
    #   cols [2Cm,3Cm) : a shifted so row r holds pixel r+1 (right tap, dx=2)
    pad_ref[P + 1:P + 1 + HW, 0:Cm] = a_l
    pad_ref[P:P + HW, Cm:2 * Cm] = a
    pad_ref[P - 1:P - 1 + HW, 2 * Cm:C3] = a_r

    acc = jnp.zeros((HW, y_ref.shape[-1]), jnp.float32)
    for dy in range(3):
        off = P + (dy - 1) * W                               # static offset
        sl = pad_ref[off:off + HW, :]                        # (HW, 3*cmid_p)
        acc = acc + jnp.dot(sl, w2_ref[dy],
                            preferred_element_type=jnp.float32)

    y_ref[...] = acc.astype(y_ref.dtype)
    st_ref[0] = jnp.concatenate(                              # single stats store
        [jnp.sum(acc, axis=0, keepdims=True),
         jnp.sum(acc * acc, axis=0, keepdims=True)], axis=0)


# ---------------------------------------------------------------------------
# One DenseLayer
# ---------------------------------------------------------------------------
def _dense_layer(feat, ch_sum, ch_sq, c_cur, layer_params, *, H, W,
                 use_bf16, tile_m):
    M, C_pad = feat.shape
    HW = H * W
    N = M // HW
    cdt = jnp.bfloat16 if use_bf16 else jnp.float32
    isz = jnp.dtype(cdt).itemsize

    g1, b1, w1, g2, b2, w2 = layer_params
    cin = w1.shape[0]
    assert cin == c_cur, (cin, c_cur)
    cmid = w1.shape[1]
    growth = w2.shape[-1]
    cmid_p = _round_up(cmid, LANE)
    g_p = _round_up(growth, LANE)
    c_used_p = min(_round_up(cin, LANE), C_pad)   # live-channel K slice

    # --- BN1 affine from cached global channel statistics (grid-safe) -----
    m1 = ch_sum[:c_used_p] / M
    v1 = jnp.maximum(ch_sq[:c_used_p] / M - m1 * m1, 0.0)
    inv1 = jax.lax.rsqrt(v1 + EPS)
    g1p = jnp.zeros((c_used_p,), jnp.float32).at[:cin].set(g1.reshape(-1))
    b1p = jnp.zeros((c_used_p,), jnp.float32).at[:cin].set(b1.reshape(-1))
    scale1 = (g1p * inv1).reshape(1, c_used_p)
    shift1 = (b1p - m1 * g1p * inv1).reshape(1, c_used_p)
    w1p = (jnp.zeros((c_used_p, cmid_p), jnp.float32)
           .at[:cin, :cmid].set(w1).astype(cdt))

    gm = M // tile_m
    t, t_st = pl.pallas_call(
        functools.partial(_stage1_kernel, cdt=cdt),
        grid=(gm,),
        in_specs=[
            pl.BlockSpec((tile_m, c_used_p), lambda i: (i, 0)),
            pl.BlockSpec((1, c_used_p), lambda i: (0, 0)),
            pl.BlockSpec((1, c_used_p), lambda i: (0, 0)),
            pl.BlockSpec((c_used_p, cmid_p), lambda i: (0, 0)),
        ],
        out_specs=[
            pl.BlockSpec((tile_m, cmid_p), lambda i: (i, 0)),
            pl.BlockSpec((1, 2, cmid_p), lambda i: (i, 0, 0)),
        ],
        out_shape=[
            jax.ShapeDtypeStruct((M, cmid_p), cdt),
            jax.ShapeDtypeStruct((gm, 2, cmid_p), jnp.float32),
        ],
        compiler_params=pltpu.CompilerParams(
            dimension_semantics=("parallel",),
            vmem_limit_bytes=64 * 1024 * 1024),
        cost_estimate=pl.CostEstimate(
            flops=2 * M * c_used_p * cmid_p,
            transcendentals=0,
            bytes_accessed=isz * (M * (c_used_p + cmid_p) + c_used_p * cmid_p)
            + 4 * (2 * c_used_p + gm * 2 * cmid_p)),
    )(feat, scale1, shift1, w1p)

    # --- BN2 affine from per-tile partial sums (grid-safe global stats) ---
    m2 = jnp.sum(t_st[:, 0, :], axis=0) / M
    v2 = jnp.maximum(jnp.sum(t_st[:, 1, :], axis=0) / M - m2 * m2, 0.0)
    inv2 = jax.lax.rsqrt(v2 + EPS)
    g2p = jnp.zeros((cmid_p,), jnp.float32).at[:cmid].set(g2.reshape(-1))
    b2p = jnp.zeros((cmid_p,), jnp.float32).at[:cmid].set(b2.reshape(-1))
    scale2 = (g2p * inv2).reshape(1, cmid_p)
    shift2 = (b2p - m2 * g2p * inv2).reshape(1, cmid_p)
    # Weights stacked per ky with the three kx taps along K, matching the
    # [left | center | right] channel-block order of the VMEM scratch.
    w2p = (jnp.zeros((3, 3, cmid_p, g_p), jnp.float32)
           .at[:, :, :cmid, :growth].set(w2)
           .reshape(3, 3 * cmid_p, g_p).astype(cdt))

    P = _round_up(W, 8)                       # top halo rows (>= W, 8-aligned)
    rows = P + HW + _round_up(W, 8)           # top halo + image + bottom halo

    y, y_st = pl.pallas_call(
        functools.partial(_stage2_kernel, H=H, W=W, P=P),
        grid=(N,),
        in_specs=[
            pl.BlockSpec((HW, cmid_p), lambda n: (n, 0)),
            pl.BlockSpec((1, cmid_p), lambda n: (0, 0)),
            pl.BlockSpec((1, cmid_p), lambda n: (0, 0)),
            pl.BlockSpec((3, 3 * cmid_p, g_p), lambda n: (0, 0, 0)),
        ],
        out_specs=[
            pl.BlockSpec((HW, g_p), lambda n: (n, 0)),
            pl.BlockSpec((1, 2, g_p), lambda n: (n, 0, 0)),
        ],
        out_shape=[
            jax.ShapeDtypeStruct((M, g_p), cdt),
            jax.ShapeDtypeStruct((N, 2, g_p), jnp.float32),
        ],
        scratch_shapes=[pltpu.VMEM((rows, 3 * cmid_p), cdt)],
        compiler_params=pltpu.CompilerParams(
            dimension_semantics=("parallel",),
            vmem_limit_bytes=64 * 1024 * 1024),
        cost_estimate=pl.CostEstimate(
            flops=2 * M * 9 * cmid_p * g_p,
            transcendentals=0,
            bytes_accessed=isz * (M * (cmid_p + g_p) + 9 * cmid_p * g_p)
            + 4 * (2 * cmid_p + N * 2 * g_p)),
    )(t, scale2, shift2, w2p)

    # Dense connectivity: write the new growth_rate channels into the
    # preallocated 128-lane-padded feature buffer (no growing concat), and
    # extend the cached per-channel statistics with the in-kernel partials.
    feat = feat.at[:, c_cur:c_cur + growth].set(y[:, :growth])
    ch_sum = ch_sum.at[c_cur:c_cur + growth].set(
        jnp.sum(y_st[:, 0, :growth], axis=0))
    ch_sq = ch_sq.at[c_cur:c_cur + growth].set(
        jnp.sum(y_st[:, 1, :growth], axis=0))
    return feat, ch_sum, ch_sq


# ---------------------------------------------------------------------------
# DenseBlock forward
# ---------------------------------------------------------------------------
def dense_block_fwd(x, block_params, *, use_bf16=True, tile_m=None):
    """x: (N, H, W, Cin) f32 NHWC -> (N, H, W, Cin + L*growth_rate) f32."""
    N, H, W, Cin = x.shape
    M = N * H * W
    growth = block_params[0][-1].shape[-1]
    L = len(block_params)
    C_total = Cin + L * growth
    C_pad = _round_up(C_total, LANE)
    cdt = jnp.bfloat16 if use_bf16 else jnp.float32

    if tile_m is None:
        tile_m = min(M, 1024)
    assert M % tile_m == 0 and tile_m % 8 == 0, (M, tile_m)

    x2d = x.reshape(M, Cin).astype(jnp.float32)
    feat = jnp.zeros((M, C_pad), cdt).at[:, :Cin].set(x2d.astype(cdt))
    # Running per-channel sum / sum-of-squares of the feature buffer.  Stats
    # of already-written channels never change, so each layer's BN1 batch
    # statistics come for free (no re-reduction over the whole buffer).
    ch_sum = jnp.zeros((C_pad,), jnp.float32).at[:Cin].set(jnp.sum(x2d, axis=0))
    ch_sq = jnp.zeros((C_pad,), jnp.float32).at[:Cin].set(
        jnp.sum(x2d * x2d, axis=0))

    c_cur = Cin
    for lp in block_params:
        feat, ch_sum, ch_sq = _dense_layer(
            feat, ch_sum, ch_sq, c_cur, lp,
            H=H, W=W, use_bf16=use_bf16, tile_m=tile_m)
        c_cur += growth

    return feat[:, :C_total].astype(jnp.float32).reshape(N, H, W, C_total)


# ---------------------------------------------------------------------------
# Deterministic parameter init (shapes per DenseLayer.__init__)
# ---------------------------------------------------------------------------
def init_dense_block_params(key, num_layers, in_channel, growth_rate, bn_size):
    params = []
    ch = in_channel
    for _ in range(num_layers):
        cmid = bn_size * growth_rate
        key, k1, k2, k3, k4, k5, k6 = jax.random.split(key, 7)
        g1 = 1.0 + 0.1 * jax.random.normal(k1, (1, ch), jnp.float32)
        b1 = 0.1 * jax.random.normal(k2, (1, ch), jnp.float32)
        w1 = jax.random.normal(k3, (ch, cmid), jnp.float32) / jnp.sqrt(float(ch))
        g2 = 1.0 + 0.1 * jax.random.normal(k4, (1, cmid), jnp.float32)
        b2 = 0.1 * jax.random.normal(k5, (1, cmid), jnp.float32)
        # 3x3 conv weight stored HWIO (== PyTorch OIHW transposed (2,3,1,0))
        w2 = jax.random.normal(k6, (3, 3, cmid, growth_rate), jnp.float32) \
            / jnp.sqrt(9.0 * cmid)
        params.append((g1, b1, w1, g2, b2, w2))
        ch += growth_rate
    return params


# ---------------------------------------------------------------------------
# Pure-JAX reference (correctness check only)
# ---------------------------------------------------------------------------
def dense_block_ref(x, block_params):
    for (g1, b1, w1, g2, b2, w2) in block_params:
        m1 = jnp.mean(x, axis=(0, 1, 2), keepdims=True)
        v1 = jnp.mean(jnp.square(x - m1), axis=(0, 1, 2), keepdims=True)
        h = (x - m1) / jnp.sqrt(v1 + EPS) * g1.reshape(1, 1, 1, -1) \
            + b1.reshape(1, 1, 1, -1)
        h = jnp.maximum(h, 0.0)
        t = jnp.einsum('nhwc,co->nhwo', h, w1)
        m2 = jnp.mean(t, axis=(0, 1, 2), keepdims=True)
        v2 = jnp.mean(jnp.square(t - m2), axis=(0, 1, 2), keepdims=True)
        t = (t - m2) / jnp.sqrt(v2 + EPS) * g2.reshape(1, 1, 1, -1) \
            + b2.reshape(1, 1, 1, -1)
        t = jnp.maximum(t, 0.0)
        y = jax.lax.conv_general_dilated(
            t, w2, window_strides=(1, 1), padding='SAME',
            dimension_numbers=('NHWC', 'HWIO', 'NHWC'))
        x = jnp.concatenate([x, y], axis=-1)
    return x


# ---------------------------------------------------------------------------
if __name__ == "__main__":
    # DenseBlock(num_layers=2, in_channel=4, growth_rate=4, bn_size=2, drop_rate=0)
    num_layers, in_channel, growth_rate, bn_size = 2, 4, 4, 2
    N, H, W = 2, 16, 16     # PyTorch input is NCHW (2, 4, 16, 16); ours is NHWC

    key = jax.random.PRNGKey(0)
    key, kx = jax.random.split(key)
    x = jax.random.normal(kx, (N, H, W, in_channel), jnp.float32)
    params = init_dense_block_params(key, num_layers, in_channel,
                                     growth_rate, bn_size)

    ref = dense_block_ref(x, params)
    assert ref.shape == (N, H, W, in_channel + num_layers * growth_rate)

    # f32 storage/MXU path with a small tile (exercises grid-safe BN stats).
    f32_fwd = jax.jit(functools.partial(dense_block_fwd,
                                        use_bf16=False, tile_m=128))
    out_f32 = jax.block_until_ready(f32_fwd(x, params))
    assert out_f32.shape == ref.shape, out_f32.shape
    err_f32 = float(jnp.max(jnp.abs(out_f32 - ref)))
    assert err_f32 < 1e-2, f"f32 path max err {err_f32}"

    # bf16 storage + MXU operands (f32 accumulation): looser tolerance.
    bf16_fwd = jax.jit(functools.partial(dense_block_fwd, use_bf16=True))
    out_bf16 = jax.block_until_ready(bf16_fwd(x, params))
    err_bf16 = float(jnp.max(jnp.abs(out_bf16 - ref)))
    assert err_bf16 < 2.5e-1, f"bf16 path max err {err_bf16}"

    print("KERNEL_OK")
</pallas_src>

<mosaic_0001>
module attributes {stable_mosaic.version = 11 : i64} {
  func.func @_stage1_kernel(%arg0: i32, %arg1: memref<128x128xf32, #tpu.memory_space<vmem>>, %arg2: memref<1x128xf32, #tpu.memory_space<vmem>>, %arg3: memref<1x128xf32, #tpu.memory_space<vmem>>, %arg4: memref<128x128xf32, #tpu.memory_space<vmem>>, %arg5: memref<128x128xf32, #tpu.memory_space<vmem>>, %arg6: memref<1x2x128xf32, #tpu.memory_space<vmem>>) attributes {dimension_semantics = [#tpu.dimension_semantics<parallel>], iteration_bounds = array<i64: 4>, scalar_prefetch = 0 : i64, scratch_operands = 0 : i64, tpu.core_type = #tpu.core_type<tc>, window_params = [{transform_indices = @transform_0, window_bounds = array<i64: 128, 128>}, {pipeline_mode = #tpu.pipeline_mode<synchronous>, transform_indices = @transform_1, window_bounds = array<i64: 1, 128>}, {pipeline_mode = #tpu.pipeline_mode<synchronous>, transform_indices = @transform_2, window_bounds = array<i64: 1, 128>}, {pipeline_mode = #tpu.pipeline_mode<synchronous>, transform_indices = @transform_3, window_bounds = array<i64: 128, 128>}, {transform_indices = @transform_4, window_bounds = array<i64: 128, 128>}, {transform_indices = @transform_5, window_bounds = array<i64: 1, 2, 128>}]} {
    %c0 = arith.constant 0 : index
    %c0_0 = arith.constant 0 : index
    %0 = vector.load %arg1[%c0, %c0_0] : memref<128x128xf32, #tpu.memory_space<vmem>>, vector<128x128xf32>
    %c0_1 = arith.constant 0 : index
    %c0_2 = arith.constant 0 : index
    %1 = vector.load %arg2[%c0_1, %c0_2] : memref<1x128xf32, #tpu.memory_space<vmem>>, vector<1x128xf32>
    %2 = vector.broadcast %1 : vector<1x128xf32> to vector<128x128xf32>
    %3 = arith.mulf %0, %2 : vector<128x128xf32>
    %c0_3 = arith.constant 0 : index
    %c0_4 = arith.constant 0 : index
    %4 = vector.load %arg3[%c0_3, %c0_4] : memref<1x128xf32, #tpu.memory_space<vmem>>, vector<1x128xf32>
    %5 = vector.broadcast %4 : vector<1x128xf32> to vector<128x128xf32>
    %6 = arith.addf %3, %5 : vector<128x128xf32>
    %cst = arith.constant 0.000000e+00 : f32
    %7 = vector.broadcast %cst : f32 to vector<128x128xf32>
    %8 = arith.maximumf %6, %7 : vector<128x128xf32>
    %c0_5 = arith.constant 0 : index
    %c0_6 = arith.constant 0 : index
    %9 = vector.load %arg4[%c0_5, %c0_6] : memref<128x128xf32, #tpu.memory_space<vmem>>, vector<128x128xf32>
    %cst_7 = arith.constant dense<0.000000e+00> : vector<128x128xf32>
    %10 = tpu.matmul %8, %9, %cst_7 {dimension_numbers = #tpu.dot_dimension_numbers<[1], [0], [0], [1], [0, 0, 1, 1], [], []>} : vector<128x128xf32>, vector<128x128xf32>, vector<128x128xf32> -> vector<128x128xf32>
    %c0_8 = arith.constant 0 : index
    %c0_9 = arith.constant 0 : index
    %11 = vector.load %arg5[%c0_8, %c0_9] : memref<128x128xf32, #tpu.memory_space<vmem>>, vector<128x128xf32>
    tpu.vector_store %arg5[%c0_8, %c0_9], %10 {strides = array<i32>} : memref<128x128xf32, #tpu.memory_space<vmem>>, vector<128x128xf32>,
    %cst_10 = arith.constant dense<0.000000e+00> : vector<128xf32>
    %12 = vector.multi_reduction <add>, %10, %cst_10 [0] : vector<128x128xf32> to vector<128xf32>
    %13 = vector.shape_cast %12 : vector<128xf32> to vector<1x128xf32>
    %14 = arith.mulf %10, %10 : vector<128x128xf32>
    %cst_11 = arith.constant dense<0.000000e+00> : vector<128xf32>
    %15 = vector.multi_reduction <add>, %14, %cst_11 [0] : vector<128x128xf32> to vector<128xf32>
    %16 = vector.shape_cast %15 : vector<128xf32> to vector<1x128xf32>
    %17 = tpu.concatenate %13, %16 in 0 : vector<1x128xf32>, vector<1x128xf32> -> vector<2x128xf32>
    %c0_12 = arith.constant 0 : index
    %c0_13 = arith.constant 0 : index
    %c0_14 = arith.constant 0 : index
    %18 = vector.load %arg6[%c0_12, %c0_13, %c0_14] : memref<1x2x128xf32, #tpu.memory_space<vmem>>, vector<1x2x128xf32>
    %19 = vector.shape_cast %18 : vector<1x2x128xf32> to vector<2x128xf32>
    %20 = vector.shape_cast %17 : vector<2x128xf32> to vector<1x2x128xf32>
    tpu.vector_store %arg6[%c0_12, %c0_13, %c0_14], %20 {strides = array<i32>} : memref<1x2x128xf32, #tpu.memory_space<vmem>>, vector<1x2x128xf32>,
    return
  }
  func.func @transform_0(%arg0: i32) -> (i32, i32) {
    %c0_i32 = arith.constant 0 : i32
    %c0_i32_0 = arith.constant 0 : i32
    return %arg0, %c0_i32 : i32, i32
  }
  func.func @transform_1(%arg0: i32) -> (i32, i32) {
    %c0_i32 = arith.constant 0 : i32
    %c0_i32_0 = arith.constant 0 : i32
    %c0_i32_1 = arith.constant 0 : i32
    return %c0_i32, %c0_i32_0 : i32, i32
  }
  func.func @transform_2(%arg0: i32) -> (i32, i32) {
    %c0_i32 = arith.constant 0 : i32
    %c0_i32_0 = arith.constant 0 : i32
    %c0_i32_1 = arith.constant 0 : i32
    return %c0_i32, %c0_i32_0 : i32, i32
  }
  func.func @transform_3(%arg0: i32) -> (i32, i32) {
    %c0_i32 = arith.constant 0 : i32
    %c0_i32_0 = arith.constant 0 : i32
    %c0_i32_1 = arith.constant 0 : i32
    return %c0_i32, %c0_i32_0 : i32, i32
  }
  func.func @transform_4(%arg0: i32) -> (i32, i32) {
    %c0_i32 = arith.constant 0 : i32
    %c0_i32_0 = arith.constant 0 : i32
    return %arg0, %c0_i32 : i32, i32
  }
  func.func @transform_5(%arg0: i32) -> (i32, i32, i32) {
    %c0_i32 = arith.constant 0 : i32
    %c0_i32_0 = arith.constant 0 : i32
    %c0_i32_1 = arith.constant 0 : i32
    return %arg0, %c0_i32, %c0_i32_0 : i32, i32, i32
  }
}

module attributes {stable_mosaic.version = 11 : i64} {
  func.func @_stage2_kernel(%arg0: i32, %arg1: memref<256x128xf32, #tpu.memory_space<vmem>>, %arg2: memref<1x128xf32, #tpu.memory_space<vmem>>, %arg3: memref<1x128xf32, #tpu.memory_space<vmem>>, %arg4: memref<3x384x128xf32, #tpu.memory_space<vmem>>, %arg5: memref<256x128xf32, #tpu.memory_space<vmem>>, %arg6: memref<1x2x128xf32, #tpu.memory_space<vmem>>, %arg7: memref<288x384xf32, #tpu.memory_space<vmem>>) attributes {dimension_semantics = [#tpu.dimension_semantics<parallel>], iteration_bounds = array<i64: 2>, scalar_prefetch = 0 : i64, scratch_operands = 1 : i64, tpu.core_type = #tpu.core_type<tc>, window_params = [{transform_indices = @transform_0, window_bounds = array<i64: 256, 128>}, {pipeline_mode = #tpu.pipeline_mode<synchronous>, transform_indices = @transform_1, window_bounds = array<i64: 1, 128>}, {pipeline_mode = #tpu.pipeline_mode<synchronous>, transform_indices = @transform_2, window_bounds = array<i64: 1, 128>}, {pipeline_mode = #tpu.pipeline_mode<synchronous>, transform_indices = @transform_3, window_bounds = array<i64: 3, 384, 128>}, {transform_indices = @transform_4, window_bounds = array<i64: 256, 128>}, {transform_indices = @transform_5, window_bounds = array<i64: 1, 2, 128>}]} {
    %c0 = arith.constant 0 : index
    %c0_0 = arith.constant 0 : index
    %0 = vector.load %arg1[%c0, %c0_0] : memref<256x128xf32, #tpu.memory_space<vmem>>, vector<256x128xf32>
    %c0_1 = arith.constant 0 : index
    %c0_2 = arith.constant 0 : index
    %1 = vector.load %arg2[%c0_1, %c0_2] : memref<1x128xf32, #tpu.memory_space<vmem>>, vector<1x128xf32>
    %2 = vector.broadcast %1 : vector<1x128xf32> to vector<256x128xf32>
    %3 = arith.mulf %0, %2 : vector<256x128xf32>
    %c0_3 = arith.constant 0 : index
    %c0_4 = arith.constant 0 : index
    %4 = vector.load %arg3[%c0_3, %c0_4] : memref<1x128xf32, #tpu.memory_space<vmem>>, vector<1x128xf32>
    %5 = vector.broadcast %4 : vector<1x128xf32> to vector<256x128xf32>
    %6 = arith.addf %3, %5 : vector<256x128xf32>
    %cst = arith.constant 0.000000e+00 : f32
    %7 = vector.broadcast %cst : f32 to vector<256x128xf32>
    %8 = arith.maximumf %6, %7 : vector<256x128xf32>
    %9 = tpu.iota {dimensions = array<i32: 0>} : vector<256x1xi32>
    %c16_i32 = arith.constant 16 : i32
    %c0_i32 = arith.constant 0 : i32
    %10 = arith.cmpi eq, %c16_i32, %c0_i32 : i32
    %c1_i32 = arith.constant 1 : i32
    %11 = arith.select %10, %c1_i32, %c16_i32 : i32
    %12 = vector.broadcast %11 : i32 to vector<256x1xi32>
    %13 = arith.remsi %9, %12 : vector<256x1xi32>
    %c0_i32_5 = arith.constant 0 : i32
    %14 = vector.broadcast %c0_i32_5 : i32 to vector<256x1xi32>
    %15 = arith.cmpi ne, %13, %14 : vector<256x1xi32>
    %c0_i32_6 = arith.constant 0 : i32
    %16 = vector.broadcast %c0_i32_6 : i32 to vector<256x1xi32>
    %17 = arith.cmpi slt, %13, %16 : vector<256x1xi32>
    %c0_i32_7 = arith.constant 0 : i32
    %18 = arith.cmpi slt, %11, %c0_i32_7 : i32
    %19 = vector.broadcast %18 : i1 to vector<256x1xi1>
    %20 = vector.broadcast %19 : vector<256x1xi1> to vector<256x1xi1>
    %21 = arith.xori %17, %20 : vector<256x1xi1>
    %22 = arith.andi %21, %15 : vector<256x1xi1>
    %23 = vector.broadcast %11 : i32 to vector<256x1xi32>
    %24 = arith.addi %13, %23 : vector<256x1xi32>
    %25 = arith.select %22, %24, %13 : vector<256x1xi1>, vector<256x1xi32>
    %c15_i32 = arith.constant 15 : i32
    %26 = vector.broadcast %c15_i32 : i32 to vector<256x1xi32>
    %27 = arith.cmpi ne, %25, %26 : vector<256x1xi32>
    %cst_8 = arith.constant 0.000000e+00 : f32
    %28 = vector.shape_cast %27 : vector<256x1xi1> to vector<256x1xi1>
    %29 = vector.broadcast %28 : vector<256x1xi1> to vector<256x128xi1>
    %30 = vector.broadcast %cst_8 : f32 to vector<256x128xf32>
    %31 = arith.select %29, %8, %30 : vector<256x128xi1>, vector<256x128xf32>
    %c0_i32_9 = arith.constant 0 : i32
    %32 = vector.broadcast %c0_i32_9 : i32 to vector<256x1xi32>
    %33 = arith.cmpi ne, %25, %32 : vector<256x1xi32>
    %cst_10 = arith.constant 0.000000e+00 : f32
    %34 = vector.shape_cast %33 : vector<256x1xi1> to vector<256x1xi1>
    %35 = vector.broadcast %34 : vector<256x1xi1> to vector<256x128xi1>
    %36 = vector.broadcast %cst_10 : f32 to vector<256x128xf32>
    %37 = arith.select %35, %8, %36 : vector<256x128xi1>, vector<256x128xf32>
    %cst_11 = arith.constant 0.000000e+00 : f32
    %38 = vector.broadcast %cst_11 : f32 to vector<16x384xf32>
    %c0_12 = arith.constant 0 : index
    %c0_13 = arith.constant 0 : index
    %39 = vector.load %arg7[%c0_12, %c0_13] : memref<288x384xf32, #tpu.memory_space<vmem>>, vector<16x384xf32>
    tpu.vector_store %arg7[%c0_12, %c0_13], %38 {strides = array<i32>} : memref<288x384xf32, #tpu.memory_space<vmem>>, vector<16x384xf32>,
    %cst_14 = arith.constant 0.000000e+00 : f32
    %40 = vector.broadcast %cst_14 : f32 to vector<16x384xf32>
    %c272 = arith.constant 272 : index
    %c0_15 = arith.constant 0 : index
    %41 = vector.load %arg7[%c272, %c0_15] : memref<288x384xf32, #tpu.memory_space<vmem>>, vector<16x384xf32>
    tpu.vector_store %arg7[%c272, %c0_15], %40 {strides = array<i32>} : memref<288x384xf32, #tpu.memory_space<vmem>>, vector<16x384xf32>,
    %cst_16 = arith.constant 0.000000e+00 : f32
    %42 = vector.broadcast %cst_16 : f32 to vector<1x128xf32>
    %c16 = arith.constant 16 : index
    %c0_17 = arith.constant 0 : index
    %43 = vector.load %arg7[%c16, %c0_17] : memref<288x384xf32, #tpu.memory_space<vmem>>, vector<1x128xf32>
    tpu.vector_store %arg7[%c16, %c0_17], %42 {strides = array<i32>} : memref<288x384xf32, #tpu.memory_space<vmem>>, vector<1x128xf32>,
    %cst_18 = arith.constant 0.000000e+00 : f32
    %44 = vector.broadcast %cst_18 : f32 to vector<1x128xf32>
    %c271 = arith.constant 271 : index
    %c256 = arith.constant 256 : index
    %45 = vector.load %arg7[%c271, %c256] : memref<288x384xf32, #tpu.memory_space<vmem>>, vector<1x128xf32>
    tpu.vector_store %arg7[%c271, %c256], %44 {strides = array<i32>} : memref<288x384xf32, #tpu.memory_space<vmem>>, vector<1x128xf32>,
    %c17 = arith.constant 17 : index
    %c0_19 = arith.constant 0 : index
    %46 = vector.load %arg7[%c17, %c0_19] : memref<288x384xf32, #tpu.memory_space<vmem>>, vector<256x128xf32>
    tpu.vector_store %arg7[%c17, %c0_19], %31 {strides = array<i32>} : memref<288x384xf32, #tpu.memory_space<vmem>>, vector<256x128xf32>,
    %c16_20 = arith.constant 16 : index
    %c128 = arith.constant 128 : index
    %47 = vector.load %arg7[%c16_20, %c128] : memref<288x384xf32, #tpu.memory_space<vmem>>, vector<256x128xf32>
    tpu.vector_store %arg7[%c16_20, %c128], %8 {strides = array<i32>} : memref<288x384xf32, #tpu.memory_space<vmem>>, vector<256x128xf32>,
    %c15 = arith.constant 15 : index
    %c256_21 = arith.constant 256 : index
    %48 = vector.load %arg7[%c15, %c256_21] : memref<288x384xf32, #tpu.memory_space<vmem>>, vector<256x128xf32>
    tpu.vector_store %arg7[%c15, %c256_21], %37 {strides = array<i32>} : memref<288x384xf32, #tpu.memory_space<vmem>>, vector<256x128xf32>,
    %cst_22 = arith.constant 0.000000e+00 : f32
    %49 = vector.broadcast %cst_22 : f32 to vector<256x128xf32>
    %c0_23 = arith.constant 0 : index
    %c0_24 = arith.constant 0 : index
    %50 = vector.load %arg7[%c0_23, %c0_24] : memref<288x384xf32, #tpu.memory_space<vmem>>, vector<256x384xf32>
    %c0_25 = arith.constant 0 : index
    %c0_26 = arith.constant 0 : index
    %c0_27 = arith.constant 0 : index
    %51 = vector.load %arg4[%c0_25, %c0_26, %c0_27] : memref<3x384x128xf32, #tpu.memory_space<vmem>>, vector<1x384x128xf32>
    %52 = vector.shape_cast %51 : vector<1x384x128xf32> to vector<384x128xf32>
    %cst_28 = arith.constant dense<0.000000e+00> : vector<256x128xf32>
    %53 = tpu.matmul %50, %52, %cst_28 {dimension_numbers = #tpu.dot_dimension_numbers<[1], [0], [0], [1], [0, 0, 1, 1], [], []>} : vector<256x384xf32>, vector<384x128xf32>, vector<256x128xf32> -> vector<256x128xf32>
    %54 = arith.addf %49, %53 : vector<256x128xf32>
    %c16_29 = arith.constant 16 : index
    %c0_30 = arith.constant 0 : index
    %55 = vector.load %arg7[%c16_29, %c0_30] : memref<288x384xf32, #tpu.memory_space<vmem>>, vector<256x384xf32>
    %c1 = arith.constant 1 : index
    %c0_31 = arith.constant 0 : index
    %c0_32 = arith.constant 0 : index
    %56 = vector.load %arg4[%c1, %c0_31, %c0_32] : memref<3x384x128xf32, #tpu.memory_space<vmem>>, vector<1x384x128xf32>
    %57 = vector.shape_cast %56 : vector<1x384x128xf32> to vector<384x128xf32>
    %cst_33 = arith.constant dense<0.000000e+00> : vector<256x128xf32>
    %58 = tpu.matmul %55, %57, %cst_33 {dimension_numbers = #tpu.dot_dimension_numbers<[1], [0], [0], [1], [0, 0, 1, 1], [], []>} : vector<256x384xf32>, vector<384x128xf32>, vector<256x128xf32> -> vector<256x128xf32>
    %59 = arith.addf %54, %58 : vector<256x128xf32>
    %c32 = arith.constant 32 : index
    %c0_34 = arith.constant 0 : index
    %60 = vector.load %arg7[%c32, %c0_34] : memref<288x384xf32, #tpu.memory_space<vmem>>, vector<256x384xf32>
    %c2 = arith.constant 2 : index
    %c0_35 = arith.constant 0 : index
    %c0_36 = arith.constant 0 : index
    %61 = vector.load %arg4[%c2, %c0_35, %c0_36] : memref<3x384x128xf32, #tpu.memory_space<vmem>>, vector<1x384x128xf32>
    %62 = vector.shape_cast %61 : vector<1x384x128xf32> to vector<384x128xf32>
    %cst_37 = arith.constant dense<0.000000e+00> : vector<256x128xf32>
    %63 = tpu.matmul %60, %62, %cst_37 {dimension_numbers = #tpu.dot_dimension_numbers<[1], [0], [0], [1], [0, 0, 1, 1], [], []>} : vector<256x384xf32>, vector<384x128xf32>, vector<256x128xf32> -> vector<256x128xf32>
    %64 = arith.addf %59, %63 : vector<256x128xf32>
    %c0_38 = arith.constant 0 : index
    %c0_39 = arith.constant 0 : index
    %65 = vector.load %arg5[%c0_38, %c0_39] : memref<256x128xf32, #tpu.memory_space<vmem>>, vector<256x128xf32>
    tpu.vector_store %arg5[%c0_38, %c0_39], %64 {strides = array<i32>} : memref<256x128xf32, #tpu.memory_space<vmem>>, vector<256x128xf32>,
    %cst_40 = arith.constant dense<0.000000e+00> : vector<128xf32>
    %66 = vector.multi_reduction <add>, %64, %cst_40 [0] : vector<256x128xf32> to vector<128xf32>
    %67 = vector.shape_cast %66 : vector<128xf32> to vector<1x128xf32>
    %68 = arith.mulf %64, %64 : vector<256x128xf32>
    %cst_41 = arith.constant dense<0.000000e+00> : vector<128xf32>
    %69 = vector.multi_reduction <add>, %68, %cst_41 [0] : vector<256x128xf32> to vector<128xf32>
    %70 = vector.shape_cast %69 : vector<128xf32> to vector<1x128xf32>
    %71 = tpu.concatenate %67, %70 in 0 : vector<1x128xf32>, vector<1x128xf32> -> vector<2x128xf32>
    %c0_42 = arith.constant 0 : index
    %c0_43 = arith.constant 0 : index
    %c0_44 = arith.constant 0 : index
    %72 = vector.load %arg6[%c0_42, %c0_43, %c0_44] : memref<1x2x128xf32, #tpu.memory_space<vmem>>, vector<1x2x128xf32>
    %73 = vector.shape_cast %72 : vector<1x2x128xf32> to vector<2x128xf32>
    %74 = vector.shape_cast %71 : vector<2x128xf32> to vector<1x2x128xf32>
    tpu.vector_store %arg6[%c0_42, %c0_43, %c0_44], %74 {strides = array<i32>} : memref<1x2x128xf32, #tpu.memory_space<vmem>>, vector<1x2x128xf32>,
    return
  }
  func.func @transform_0(%arg0: i32) -> (i32, i32) {
    %c0_i32 = arith.constant 0 : i32
    %c0_i32_0 = arith.constant 0 : i32
    return %arg0, %c0_i32 : i32, i32
  }
  func.func @transform_1(%arg0: i32) -> (i32, i32) {
    %c0_i32 = arith.constant 0 : i32
    %c0_i32_0 = arith.constant 0 : i32
    %c0_i32_1 = arith.constant 0 : i32
    return %c0_i32, %c0_i32_0 : i32, i32
  }
  func.func @transform_2(%arg0: i32) -> (i32, i32) {
    %c0_i32 = arith.constant 0 : i32
    %c0_i32_0 = arith.constant 0 : i32
    %c0_i32_1 = arith.constant 0 : i32
    return %c0_i32, %c0_i32_0 : i32, i32
  }
  func.func @transform_3(%arg0: i32) -> (i32, i32, i32) {
    %c0_i32 = arith.constant 0 : i32
    %c0_i32_0 = arith.constant 0 : i32
    %c0_i32_1 = arith.constant 0 : i32
    %c0_i32_2 = arith.constant 0 : i32
    return %c0_i32, %c0_i32_0, %c0_i32_1 : i32, i32, i32
  }
  func.func @transform_4(%arg0: i32) -> (i32, i32) {
    %c0_i32 = arith.constant 0 : i32
    %c0_i32_0 = arith.constant 0 : i32
    return %arg0, %c0_i32 : i32, i32
  }
  func.func @transform_5(%arg0: i32) -> (i32, i32, i32) {
    %c0_i32 = arith.constant 0 : i32
    %c0_i32_0 = arith.constant 0 : i32
    %c0_i32_1 = arith.constant 0 : i32
    return %arg0, %c0_i32, %c0_i32_0 : i32, i32, i32
  }
}

</mosaic_0001>

<llo_original>
// kernel: dense_block_fwd.4
$region0: #{dense_block_fwd.4}
  #allocation0 [shape = 'u32[]', space=smem, size = 0x4, offset = 0x4, fixed_abs, tag = 'smem constant byte address 0x4 - core index']
  #allocation1 [shape = 'u32[144,128]{1,0:T(1,128)}', space=vmem, size = 0x12000, scoped, tag = 'internal scratch']
  %s0 = inlined_call_operand.hbm [shape: f32[512,128], index: 0, kind: input, shape index: {}]
  %s1 = inlined_call_operand.hbm [shape: f32[1,128], index: 1, kind: input, shape index: {}]
  %s2 = inlined_call_operand.hbm [shape: f32[1,128], index: 2, kind: input, shape index: {}]
  %s3 = inlined_call_operand.hbm [shape: f32[128,128], index: 3, kind: input, shape index: {}]
  %s4 = inlined_call_operand.hbm [shape: f32[512,128], index: 4, kind: output, shape index: {0}]
  %s5 = inlined_call_operand.hbm [shape: f32[4,2,128], index: 5, kind: output, shape index: {1}]
  %6 = xla_tuple %s4, %s5
  %s7 = sld [smem:[#allocation0]]
  $region73: #{dense_block_fwd.4} parent=0
    _
  %s9 = ssub.s32 1, %s7
  %s10 = scalar_select 0, %s9, %s7
  $region1: #{dense_block_fwd.4} parent=0
    #allocation2 [shape = 'u8[131072]{0}', space=vmem, size = 0x20000, scoped, tag = 'input window, operand 0']
    #allocation3 [shape = 's32[2]{0}', space=sflag, size = 0x8, scoped, tag = 'scoped memory for dense_block_fwd.4']
    #allocation4 [shape = 's32[2]{0}', space=sflag, size = 0x8, scoped, tag = 'scoped memory for dense_block_fwd.4']
    #allocation5 [shape = 'u8[512]{0}', space=vmem, size = 0x400, scoped, tag = 'input window, operand 1, single buffered']
    #allocation6 [shape = 's32[1]{0}', space=sflag, size = 0x4, scoped, tag = 'scoped memory for dense_block_fwd.4']
    #allocation7 [shape = 'u8[512]{0}', space=vmem, size = 0x400, scoped, tag = 'input window, operand 2, single buffered']
    #allocation8 [shape = 'u8[65536]{0}', space=vmem, size = 0x10000, scoped, tag = 'input window, operand 3, single buffered']
    #allocation9 [shape = 's32[1]{0}', space=sflag, size = 0x4, scoped, tag = 'scoped memory for dense_block_fwd.4']
    #allocation10 [shape = 'u8[131072]{0}', space=vmem, size = 0x20000, scoped, tag = 'output window, operand 0']
    #allocation11 [shape = 'u8[2048]{0}', space=vmem, size = 0x800, scoped, tag = 'output window, operand 1']
    #allocation12 [shape = 's32[2]{0}', space=sflag, size = 0x8, scoped, tag = 'scoped memory for dense_block_fwd.4']
    %11 = vsyncpa [#allocation3], 0
    %s12 = scalar_lea.sflag [#allocation3], 1
    %13 = vsyncpa %s12, 0
    %14 = vsyncpa [#allocation6], 0
    %15 = vsyncpa [#allocation9], 0
    %16 = vsyncpa [#allocation4], 0
    %s17 = scalar_lea.sflag [#allocation4], 1
    %18 = vsyncpa %s17, 0
    %19 = vsyncpa [#allocation12], 0
    %s20 = scalar_lea.sflag [#allocation12], 1
    %21 = vsyncpa %s20, 0
    loop: start=0, step=1, limit=6
    $region2: #{dense_block_fwd.4} parent=1 // loop_pre_header
      _
    $region3: #{dense_block_fwd.4} parent=1 // loop_header
      %s23 = sphi 0, %s27
      %p24 = scmp.ge.s32.totalorder %s23, 6
      %s33 = sphi 0, %s35
      %s36 = sphi 0, %s33
      %s37 = sphi 0, %s36
      %s53 = sphi 0, %s37
      %s57 = sphi 0, %s57
      %s59 = sphi 0, %s57
      %s60 = sphi 0, %s59
      %s74 = sphi 0, %s60
      %s78 = sphi 0, %s78
      %s80 = sphi 0, %s78
      %s81 = sphi 0, %s80
      %s95 = sphi 0, %s81
      %s99 = sphi 0, %s99
      %s101 = sphi 0, %s99
      %s102 = sphi 0, %s101
      %s116 = sphi 0, %s102
      %s122 = sphi 0, %s124
      %s125 = sphi 0, %s122
      %s126 = sphi 0, %s125
      %s142 = sphi 0, %s126
      %s148 = sphi 0, %s150
      %s151 = sphi 0, %s148
      %s152 = sphi 0, %s151
      %s168 = sphi 0, %s152
    $region4: #{dense_block_fwd.4} parent=1 // loop_header_branch
      %26 = sbr.rel (%p24) target = $region8
    $region5: #{dense_block_fwd.4} parent=1 // loop_body
      %s28 = ssub.s32 %s23, 1
      %s29 = ssub.s32 %s23, 2
      %s30 = sadd.s32 %s23, 1
      %s31 = ssub.s32 %s23, %s30
      %p32 = scmp.eq.s32.totalorder %s31, 0
      %s34 = sadd.s32 %s33, 1
      %s35 = scalar_select %p32, %s33, %s34
      %p38 = pneg %p32
      %p39 = scmp.eq.s32.totalorder %s23, 3
      %p40 = por %p38, %p39
      %p41 = scmp.ne.s32.totalorder %s33, %s36
      %p42 = scmp.eq.s32.totalorder %s23, 0
      %p43 = por %p41, %p42
      %p44 = scmp.ne.s32.totalorder %s33, %s36
      %p45 = scmp.eq.s32.totalorder %s28, 3
      %p46 = por %p44, %p45
      %p47 = scmp.ne.s32.totalorder %s36, %s37
      %p48 = scmp.eq.s32.totalorder %s28, 0
      %p49 = por %p47, %p48
      %p50 = scmp.ne.s32.totalorder %s36, %s37
      %p51 = scmp.eq.s32.totalorder %s29, 3
      %p52 = por %p50, %p51
      %p54 = scmp.ne.s32.totalorder %s37, %s53
      %p55 = scmp.eq.s32.totalorder %s29, 0
      %p56 = por %p54, %p55
      %s58 = sadd.s32 %s57, 1
      %p61 = scmp.eq.s32.totalorder %s23, 3
      %p62 = scmp.ne.s32.totalorder %s57, %s59
      %p63 = scmp.eq.s32.totalorder %s23, 0
      %p64 = por %p62, %p63
      %p65 = scmp.ne.s32.totalorder %s57, %s59
      %p66 = scmp.eq.s32.totalorder %s28, 3
      %p67 = por %p65, %p66
      %p68 = scmp.ne.s32.totalorder %s59, %s60
      %p69 = scmp.eq.s32.totalorder %s28, 0
      %p70 = por %p68, %p69
      %p71 = scmp.ne.s32.totalorder %s59, %s60
      %p72 = scmp.eq.s32.totalorder %s29, 3
      %p73 = por %p71, %p72
      %p75 = scmp.ne.s32.totalorder %s60, %s74
      %p76 = scmp.eq.s32.totalorder %s29, 0
      %p77 = por %p75, %p76
      %s79 = sadd.s32 %s78, 1
      %p82 = scmp.eq.s32.totalorder %s23, 3
      %p83 = scmp.ne.s32.totalorder %s78, %s80
      %p84 = scmp.eq.s32.totalorder %s23, 0
      %p85 = por %p83, %p84
      %p86 = scmp.ne.s32.totalorder %s78, %s80
      %p87 = scmp.eq.s32.totalorder %s28, 3
      %p88 = por %p86, %p87
      %p89 = scmp.ne.s32.totalorder %s80, %s81
      %p90 = scmp.eq.s32.totalorder %s28, 0
      %p91 = por %p89, %p90
      %p92 = scmp.ne.s32.totalorder %s80, %s81
      %p93 = scmp.eq.s32.totalorder %s29, 3
      %p94 = por %p92, %p93
      %p96 = scmp.ne.s32.totalorder %s81, %s95
      %p97 = scmp.eq.s32.totalorder %s29, 0
      %p98 = por %p96, %p97
      %s100 = sadd.s32 %s99, 1
      %p103 = scmp.eq.s32.totalorder %s23, 3
      %p104 = scmp.ne.s32.totalorder %s99, %s101
      %p105 = scmp.eq.s32.totalorder %s23, 0
      %p106 = por %p104, %p105
      %p107 = scmp.ne.s32.totalorder %s99, %s101
      %p108 = scmp.eq.s32.totalorder %s28, 3
      %p109 = por %p107, %p108
      %p110 = scmp.ne.s32.totalorder %s101, %s102
      %p111 = scmp.eq.s32.totalorder %s28, 0
      %p112 = por %p110, %p111
      %p113 = scmp.ne.s32.totalorder %s101, %s102
      %p114 = scmp.eq.s32.totalorder %s29, 3
      %p115 = por %p113, %p114
      %p117 = scmp.ne.s32.totalorder %s102, %s116
      %p118 = scmp.eq.s32.totalorder %s29, 0
      %p119 = por %p117, %p118
      %s120 = ssub.s32 %s23, %s30
      %p121 = scmp.eq.s32.totalorder %s120, 0
      %s123 = sadd.s32 %s122, 1
      %s124 = scalar_select %p121, %s122, %s123
      %p127 = pneg %p121
      %p128 = scmp.eq.s32.totalorder %s23, 3
      %p129 = por %p127, %p128
      %p130 = scmp.ne.s32.totalorder %s122, %s125
      %p131 = scmp.eq.s32.totalorder %s23, 0
      %p132 = por %p130, %p131
      %p133 = scmp.ne.s32.totalorder %s122, %s125
      %p134 = scmp.eq.s32.totalorder %s28, 3
      %p135 = por %p133, %p134
      %p136 = scmp.ne.s32.totalorder %s125, %s126
      %p137 = scmp.eq.s32.totalorder %s28, 0
      %p138 = por %p136, %p137
      %p139 = scmp.ne.s32.totalorder %s125, %s126
      %p140 = scmp.eq.s32.totalorder %s29, 3
      %p141 = por %p139, %p140
      %p143 = scmp.ne.s32.totalorder %s126, %s142
      %p144 = scmp.eq.s32.totalorder %s29, 0
      %p145 = por %p143, %p144
      %s146 = ssub.s32 %s23, %s30
      %p147 = scmp.eq.s32.totalorder %s146, 0
      %s149 = sadd.s32 %s148, 1
      %s150 = scalar_select %p147, %s148, %s149
      %p153 = pneg %p147
      %p154 = scmp.eq.s32.totalorder %s23, 3
      %p155 = por %p153, %p154
      %p156 = scmp.ne.s32.totalorder %s148, %s151
      %p157 = scmp.eq.s32.totalorder %s23, 0
      %p158 = por %p156, %p157
      %p159 = scmp.ne.s32.totalorder %s148, %s151
      %p160 = scmp.eq.s32.totalorder %s28, 3
      %p161 = por %p159, %p160
      %p162 = scmp.ne.s32.totalorder %s151, %s152
      %p163 = scmp.eq.s32.totalorder %s28, 0
      %p164 = por %p162, %p163
      %p165 = scmp.ne.s32.totalorder %s151, %s152
      %p166 = scmp.eq.s32.totalorder %s29, 3
      %p167 = por %p165, %p166
      %p169 = scmp.ne.s32.totalorder %s152, %s168
      %p170 = scmp.eq.s32.totalorder %s29, 0
      %p171 = por %p169, %p170
      %p172 = scmp.le.s32.totalorder 1, %s23
      %p173 = scmp.lt.s32.totalorder %s23, 5
      %p174 = pnand %p172, %p173
      %p175 = pneg %p174
      // Predicated region
      $region9: #{dense_block_fwd.4} parent=5 // pred_check
        _
      $region10: #{dense_block_fwd.4} parent=5 // pred_check_branch
        %177 = sbr.rel (%p174) target = $region12
      $region11: #{dense_block_fwd.4} parent=5 // pred_region
        %s178 = ssub.s32 %s23, 1
        // Predicated region
        $region13: #{dense_block_fwd.4} parent=11 // pred_check
          %p179 = pneg %p70
        $region14: #{dense_block_fwd.4} parent=11 // pred_check_branch
          %181 = sbr.rel (%p179) target = $region16
        $region15: #{dense_block_fwd.4} parent=11 // pred_region
          %s183 = ssub.s32 16, 16
          %184 = vsyncadd [#allocation6], %s183
          %s186 = sshll.u32 [#allocation5], 4
          %s187 = int_to_ptr.vmem [resolvable:$true] %s186
          %189 = dma.hbm_to_vmem [thread:$0]  %s1, 16, %s187, [#allocation6]
        $region16: #{dense_block_fwd.4} parent=11 // pred_fallthru
          _
        // Predicated region
        $region17: #{dense_block_fwd.4} parent=11 // pred_check
          %p190 = pneg %p91
        $region18: #{dense_block_fwd.4} parent=11 // pred_check_branch
          %192 = sbr.rel (%p190) target = $region20
        $region19: #{dense_block_fwd.4} parent=11 // pred_region
          %s194 = ssub.s32 16, 16
          %195 = vsyncadd [#allocation6], %s194
          %s197 = sshll.u32 [#allocation7], 4
          %s198 = int_to_ptr.vmem [resolvable:$true] %s197
          %200 = dma.hbm_to_vmem [thread:$0]  %s2, 16, %s198, [#allocation6]
        $region20: #{dense_block_fwd.4} parent=11 // pred_fallthru
          _
        // Predicated region
        $region21: #{dense_block_fwd.4} parent=11 // pred_check
          %p201 = pneg %p112
        $region22: #{dense_block_fwd.4} parent=11 // pred_check_branch
          %203 = sbr.rel (%p201) target = $region24
        $region23: #{dense_block_fwd.4} parent=11 // pred_region
          %s205 = ssub.s32 2048, 2048
          %206 = vsyncadd [#allocation9], %s205
          %s207 = sshll.u32 [#allocation8], 4
          %s208 = int_to_ptr.vmem [resolvable:$true] %s207
          %213 = dma.hbm_to_vmem [thread:$0]  %s3, 2048, %s208, [#allocation9], 128, 128, 8
        $region24: #{dense_block_fwd.4} parent=11 // pred_fallthru
          _
      $region12: #{dense_block_fwd.4} parent=5 // pred_fallthru
        _
      %p214 = scmp.lt.s32.totalorder %s23, 4
      // Predicated region
      $region25: #{dense_block_fwd.4} parent=5 // pred_check
        %p215 = pneg %p214
      $region26: #{dense_block_fwd.4} parent=5 // pred_check_branch
        %217 = sbr.rel (%p215) target = $region28
      $region27: #{dense_block_fwd.4} parent=5 // pred_region
        // Predicated region
        $region29: #{dense_block_fwd.4} parent=27 // pred_check
          %p218 = pneg %p43
        $region30: #{dense_block_fwd.4} parent=27 // pred_check_branch
          %220 = sbr.rel (%p218) target = $region32
        $region31: #{dense_block_fwd.4} parent=27 // pred_region
          %s221 = sand.u32 %s33, 1
          %s222 = scalar_lea.sflag [#allocation3], %s221
          %s223 = sand.u32 %s33, 1
          %s224 = smul.addr %s223, 128
          %s225 = scalar_lea.vmem [#allocation2], %s224
          %s226 = smul.u32 16, %s23
          %s228 = ssub.s32 2048, 2048
          %229 = vsyncadd %s222, %s228
          %s230 = smul.addr %s226, 128
          %s231 = scalar_lea.hbm %s0, %s230
          %s232 = sshll.u32 %s225, 4
          %s233 = int_to_ptr.vmem [resolvable:$true] %s232
          %238 = dma.hbm_to_vmem [thread:$0]  %s231, 2048, %s233, %s222, 128, 128, 8
        $region32: #{dense_block_fwd.4} parent=27 // pred_fallthru
          _
      $region28: #{dense_block_fwd.4} parent=5 // pred_fallthru
        _
      %p239 = scmp.le.s32.totalorder 1, %s23
      %p240 = scmp.lt.s32.totalorder %s23, 5
      %p241 = pnand %p239, %p240
      %p242 = pneg %p241
      // Predicated region
      $region33: #{dense_block_fwd.4} parent=5 // pred_check
        _
      $region34: #{dense_block_fwd.4} parent=5 // pred_check_branch
        %244 = sbr.rel (%p241) target = $region36
      $region35: #{dense_block_fwd.4} parent=5 // pred_region
        %s245 = ssub.s32 %s23, 1
        %s246 = sand.u32 %s36, 1
        %s247 = scalar_lea.sflag [#allocation3], %s246
        %s248 = sand.u32 %s36, 1
        %s249 = smul.addr %s248, 128
        %s250 = scalar_lea.vmem [#allocation2], %s249
        // Predicated region
        $region37: #{dense_block_fwd.4} parent=35 // pred_check
          %p251 = pneg %p49
        $region38: #{dense_block_fwd.4} parent=35 // pred_check_branch
          %253 = sbr.rel (%p251) target = $region40
        $region39: #{dense_block_fwd.4} parent=35 // pred_region
          %254 = dma.done %s247, 2048
        $region40: #{dense_block_fwd.4} parent=35 // pred_fallthru
          _
        // Predicated region
        $region41: #{dense_block_fwd.4} parent=35 // pred_check
          %p255 = pneg %p70
        $region42: #{dense_block_fwd.4} parent=35 // pred_check_branch
          %257 = sbr.rel (%p255) target = $region44
        $region43: #{dense_block_fwd.4} parent=35 // pred_region
          %258 = dma.done [#allocation6], 16
        $region44: #{dense_block_fwd.4} parent=35 // pred_fallthru
          _
        // Predicated region
        $region45: #{dense_block_fwd.4} parent=35 // pred_check
          %p259 = pneg %p91
        $region46: #{dense_block_fwd.4} parent=35 // pred_check_branch
          %261 = sbr.rel (%p259) target = $region48
        $region47: #{dense_block_fwd.4} parent=35 // pred_region
          %262 = dma.done [#allocation6], 16
        $region48: #{dense_block_fwd.4} parent=35 // pred_fallthru
          _
        // Predicated region
        $region49: #{dense_block_fwd.4} parent=35 // pred_check
          %p263 = pneg %p112
        $region50: #{dense_block_fwd.4} parent=35 // pred_check_branch
          %265 = sbr.rel (%p263) target = $region52
        $region51: #{dense_block_fwd.4} parent=35 // pred_region
          %266 = dma.done [#allocation9], 2048
        $region52: #{dense_block_fwd.4} parent=35 // pred_fallthru
          _
        %s267 = sand.u32 %s36, 1
        %s268 = scalar_lea.sflag [#allocation3], %s267
        %s269 = sand.u32 %s36, 1
        %s270 = smul.addr %s269, 128
        %s271 = scalar_lea.vmem [#allocation2], %s270
        %p272 = pneg %p49
        %p273 = pneg %p46
        %p274 = pneg %p70
        %p275 = pneg %p67
        %p276 = pneg %p91
        %p277 = pneg %p88
        %p278 = pneg %p112
        %p279 = pneg %p109
        %p280 = pneg %p138
        %p281 = pneg %p135
        %s282 = sand.u32 %s125, 1
        %s283 = scalar_lea.sflag [#allocation4], %s282
        %s284 = sand.u32 %s125, 1
        %s285 = smul.addr %s284, 128
        %s286 = scalar_lea.vmem [#allocation10], %s285
        %p287 = pneg %p164
        %p288 = pneg %p161
        %s289 = sand.u32 %s151, 1
        %s290 = scalar_lea.sflag [#allocation12], %s289
        %s291 = sand.u32 %s151, 1
        %s292 = smul.addr %s291, 2
        %s293 = scalar_lea.vmem [#allocation11], %s292
        %s294 = smul.u32 16, %s28
        %s295 = smul.u32 16, %s28
        %v296 = vld [vmem:[%s250] sm:$0xff]
        %v297 = vld [vmem:[%s250 + $0x8] sm:$0xff]
        %v298 = vld [vmem:[%s250 + $0x10] sm:$0xff]
        %v299 = vld [vmem:[%s250 + $0x18] sm:$0xff]
        %v300 = vld [vmem:[%s250 + $0x20] sm:$0xff]
        %v301 = vld [vmem:[%s250 + $0x28] sm:$0xff]
        %v302 = vld [vmem:[%s250 + $0x30] sm:$0xff]
        %v303 = vld [vmem:[%s250 + $0x38] sm:$0xff]
        %v304 = vld [vmem:[%s250 + $0x40] sm:$0xff]
        %v305 = vld [vmem:[%s250 + $0x48] sm:$0xff]
        %v306 = vld [vmem:[%s250 + $0x50] sm:$0xff]
        %v307 = vld [vmem:[%s250 + $0x58] sm:$0xff]
        %v308 = vld [vmem:[%s250 + $0x60] sm:$0xff]
        %v309 = vld [vmem:[%s250 + $0x68] sm:$0xff]
        %v310 = vld [vmem:[%s250 + $0x70] sm:$0xff]
        %v311 = vld [vmem:[%s250 + $0x78] sm:$0xff]
        %v312 = vld [vmem:[#allocation5] sm:$0x1]
        %v314 = vlaneseq
        %v315 = vshrl.u32 %v314, 7
        %v316 = vsub.s32 0, %v315
        %v317 = vrot.slane %v312, %v316
        %v319 = vmul.f32 %v296, %v317
        %v320 = vmul.f32 %v297, %v317
        %v321 = vmul.f32 %v298, %v317
        %v322 = vmul.f32 %v299, %v317
        %v323 = vmul.f32 %v300, %v317
        %v324 = vmul.f32 %v301, %v317
        %v325 = vmul.f32 %v302, %v317
        %v326 = vmul.f32 %v303, %v317
        %v327 = vmul.f32 %v304, %v317
        %v328 = vmul.f32 %v305, %v317
        %v329 = vmul.f32 %v306, %v317
        %v330 = vmul.f32 %v307, %v317
        %v331 = vmul.f32 %v308, %v317
        %v332 = vmul.f32 %v309, %v317
        %v333 = vmul.f32 %v310, %v317
        %v334 = vmul.f32 %v311, %v317
        %v335 = vld [vmem:[#allocation7] sm:$0x1]
        %v337 = vlaneseq
        %v338 = vshrl.u32 %v337, 7
        %v339 = vsub.s32 0, %v338
        %v340 = vrot.slane %v335, %v339
        %v342 = vadd.f32 %v319, %v340
        %v343 = vadd.f32 %v320, %v340
        %v344 = vadd.f32 %v321, %v340
        %v345 = vadd.f32 %v322, %v340
        %v346 = vadd.f32 %v323, %v340
        %v347 = vadd.f32 %v324, %v340
        %v348 = vadd.f32 %v325, %v340
        %v349 = vadd.f32 %v326, %v340
        %v350 = vadd.f32 %v327, %v340
        %v351 = vadd.f32 %v328, %v340
        %v352 = vadd.f32 %v329, %v340
        %v353 = vadd.f32 %v330, %v340
        %v354 = vadd.f32 %v331, %v340
        %v355 = vadd.f32 %v332, %v340
        %v356 = vadd.f32 %v333, %v340
        %v357 = vadd.f32 %v334, %v340
        %v358 = vmax.f32 %v342, 0.0
        %v359 = vmax.f32 %v343, 0.0
        %v360 = vmax.f32 %v344, 0.0
        %v361 = vmax.f32 %v345, 0.0
        %v362 = vmax.f32 %v346, 0.0
        %v363 = vmax.f32 %v347, 0.0
        %v364 = vmax.f32 %v348, 0.0
        %v365 = vmax.f32 %v349, 0.0
        %v366 = vmax.f32 %v350, 0.0
        %v367 = vmax.f32 %v351, 0.0
        %v368 = vmax.f32 %v352, 0.0
        %v369 = vmax.f32 %v353, 0.0
        %v370 = vmax.f32 %v354, 0.0
        %v371 = vmax.f32 %v355, 0.0
        %v372 = vmax.f32 %v356, 0.0
        %v373 = vmax.f32 %v357, 0.0
        %v374 = vld [vmem:[#allocation8] sm:$0xff]
        %v375 = vld [vmem:[#allocation8 + $0x8] sm:$0xff]
        %v376 = vld [vmem:[#allocation8 + $0x10] sm:$0xff]
        %v377 = vld [vmem:[#allocation8 + $0x18] sm:$0xff]
        %v378 = vld [vmem:[#allocation8 + $0x20] sm:$0xff]
        %v379 = vld [vmem:[#allocation8 + $0x28] sm:$0xff]
        %v380 = vld [vmem:[#allocation8 + $0x30] sm:$0xff]
        %v381 = vld [vmem:[#allocation8 + $0x38] sm:$0xff]
        %v382 = vld [vmem:[#allocation8 + $0x40] sm:$0xff]
        %v383 = vld [vmem:[#allocation8 + $0x48] sm:$0xff]
        %v384 = vld [vmem:[#allocation8 + $0x50] sm:$0xff]
        %v385 = vld [vmem:[#allocation8 + $0x58] sm:$0xff]
        %v386 = vld [vmem:[#allocation8 + $0x60] sm:$0xff]
        %v387 = vld [vmem:[#allocation8 + $0x68] sm:$0xff]
        %v388 = vld [vmem:[#allocation8 + $0x70] sm:$0xff]
        %v389 = vld [vmem:[#allocation8 + $0x78] sm:$0xff]
        %390 = vmatprep.subr.mxu0 0.0
        %391 = vmatpush1.msra.mxu0 %v374
        %392 = vmatprep.subr.mxu0 0.0
        %393 = vmatpush1.msra.mxu0 %v375
        %394 = vmatprep.subr.mxu0 0.0
        %395 = vmatpush1.msra.mxu0 %v376
        %396 = vmatprep.subr.mxu0 0.0
        %397 = vmatpush1.msra.mxu0 %v377
        %398 = vmatprep.subr.mxu0 0.0
        %399 = vmatpush1.msra.mxu0 %v378
        %400 = vmatprep.subr.mxu0 0.0
        %401 = vmatpush1.msra.mxu0 %v379
        %402 = vmatprep.subr.mxu0 0.0
        %403 = vmatpush1.msra.mxu0 %v380
        %404 = vmatprep.subr.mxu0 0.0
        %405 = vmatpush1.msra.mxu0 %v381
        %406 = vmatprep.subr.mxu0 0.0
        %407 = vmatpush1.msra.mxu0 %v382
        %408 = vmatprep.subr.mxu0 0.0
        %409 = vmatpush1.msra.mxu0 %v383
        %410 = vmatprep.subr.mxu0 0.0
        %411 = vmatpush1.msra.mxu0 %v384
        %412 = vmatprep.subr.mxu0 0.0
        %413 = vmatpush1.msra.mxu0 %v385
        %414 = vmatprep.subr.mxu0 0.0
        %415 = vmatpush1.msra.mxu0 %v386
        %416 = vmatprep.subr.mxu0 0.0
        %417 = vmatpush1.msra.mxu0 %v387
        %418 = vmatprep.subr.mxu0 0.0
        %419 = vmatpush1.msra.mxu0 %v388
        %420 = vmatprep.subr.mxu0 0.0
        %421 = vmatpush1.msra.mxu0 %v389
        %422 = vmatprep.subr.mxu0 0.0
        %423 = vmatpush1.msra.mxu0 0.0
        %424 = vmatprep.subr.mxu0 0.0
        %425 = vmatpush1.msra.mxu0 0.0
        %426 = vmatprep.subr.mxu0 0.0
        %427 = vmatpush1.msra.mxu0 0.0
        %428 = vmatprep.subr.mxu0 0.0
        %429 = vmatpush1.msra.mxu0 0.0
        %430 = vmatprep.subr.mxu0 0.0
        %431 = vmatpush1.msra.mxu0 0.0
        %432 = vmatprep.subr.mxu0 0.0
        %433 = vmatpush1.msra.mxu0 0.0
        %434 = vmatprep.subr.mxu0 0.0
        %435 = vmatpush1.msra.mxu0 0.0
        %436 = vmatprep.subr.mxu0 0.0
        %437 = vmatpush1.msra.mxu0 0.0
        %438 = vmatprep.subr.mxu0 0.0
        %439 = vmatpush1.msra.mxu0 0.0
        %440 = vmatprep.subr.mxu0 0.0
        %441 = vmatpush1.msra.mxu0 0.0
        %442 = vmatprep.subr.mxu0 0.0
        %443 = vmatpush1.msra.mxu0 0.0
        %444 = vmatprep.subr.mxu0 0.0
        %445 = vmatpush1.msra.mxu0 0.0
        %446 = vmatprep.subr.mxu0 0.0
        %447 = vmatpush1.msra.mxu0 0.0
        %448 = vmatprep.subr.mxu0 0.0
        %449 = vmatpush1.msra.mxu0 0.0
        %450 = vmatprep.subr.mxu0 0.0
        %451 = vmatpush1.msra.mxu0 0.0
        %452 = vmatprep.subr.mxu0 0.0
        %453 = vmatpush1.msra.mxu0 0.0
        %454 = vmatprep.mubr.f32.mxu0 0.0
        %455 = vmatmul.mubr.f32.gmra.mrb[0].mxu0 %v358
        %v456 = vpop.f32.mrb[0].mxu0
        %v457 = vadd.f32 0.0, %v456
        %v458 = vpop.f32.mrb[0].mxu0
        %459 = vmatprep.mubr.f32.mxu0 0.0
        %460 = vmatmul.mubr.f32.gmra.mrb[0].mxu0 %v359
        %v461 = vpop.f32.mrb[0].mxu0
        %v462 = vadd.f32 0.0, %v461
        %v463 = vpop.f32.mrb[0].mxu0
        %464 = vmatprep.mubr.f32.mxu0 0.0
        %465 = vmatmul.mubr.f32.gmra.mrb[0].mxu0 %v360
        %v466 = vpop.f32.mrb[0].mxu0
        %v467 = vadd.f32 0.0, %v466
        %v468 = vpop.f32.mrb[0].mxu0
        %469 = vmatprep.mubr.f32.mxu0 0.0
        %470 = vmatmul.mubr.f32.gmra.mrb[0].mxu0 %v361
        %v471 = vpop.f32.mrb[0].mxu0
        %v472 = vadd.f32 0.0, %v471
        %v473 = vpop.f32.mrb[0].mxu0
        %474 = vmatprep.mubr.f32.mxu0 0.0
        %475 = vmatmul.mubr.f32.gmra.mrb[0].mxu0 %v362
        %v476 = vpop.f32.mrb[0].mxu0
        %v477 = vadd.f32 0.0, %v476
        %v478 = vpop.f32.mrb[0].mxu0
        %479 = vmatprep.mubr.f32.mxu0 0.0
        %480 = vmatmul.mubr.f32.gmra.mrb[0].mxu0 %v363
        %v481 = vpop.f32.mrb[0].mxu0
        %v482 = vadd.f32 0.0, %v481
        %v483 = vpop.f32.mrb[0].mxu0
        %484 = vmatprep.mubr.f32.mxu0 0.0
        %485 = vmatmul.mubr.f32.gmra.mrb[0].mxu0 %v364
        %v486 = vpop.f32.mrb[0].mxu0
        %v487 = vadd.f32 0.0, %v486
        %v488 = vpop.f32.mrb[0].mxu0
        %489 = vmatprep.mubr.f32.mxu0 0.0
        %490 = vmatmul.mubr.f32.gmra.mrb[0].mxu0 %v365
        %v491 = vpop.f32.mrb[0].mxu0
        %v492 = vadd.f32 0.0, %v491
        %v493 = vpop.f32.mrb[0].mxu0
        %494 = vmatprep.mubr.f32.mxu0 0.0
        %495 = vmatmul.mubr.f32.gmra.mrb[0].mxu0 %v366
        %v496 = vpop.f32.mrb[0].mxu0
        %v497 = vadd.f32 0.0, %v496
        %v498 = vpop.f32.mrb[0].mxu0
        %499 = vmatprep.mubr.f32.mxu0 0.0
        %500 = vmatmul.mubr.f32.gmra.mrb[0].mxu0 %v367
        %v501 = vpop.f32.mrb[0].mxu0
        %v502 = vadd.f32 0.0, %v501
        %v503 = vpop.f32.mrb[0].mxu0
        %504 = vmatprep.mubr.f32.mxu0 0.0
        %505 = vmatmul.mubr.f32.gmra.mrb[0].mxu0 %v368
        %v506 = vpop.f32.mrb[0].mxu0
        %v507 = vadd.f32 0.0, %v506
        %v508 = vpop.f32.mrb[0].mxu0
        %509 = vmatprep.mubr.f32.mxu0 0.0
        %510 = vmatmul.mubr.f32.gmra.mrb[0].mxu0 %v369
        %v511 = vpop.f32.mrb[0].mxu0
        %v512 = vadd.f32 0.0, %v511
        %v513 = vpop.f32.mrb[0].mxu0
        %514 = vmatprep.mubr.f32.mxu0 0.0
        %515 = vmatmul.mubr.f32.gmra.mrb[0].mxu0 %v370
        %v516 = vpop.f32.mrb[0].mxu0
        %v517 = vadd.f32 0.0, %v516
        %v518 = vpop.f32.mrb[0].mxu0
        %519 = vmatprep.mubr.f32.mxu0 0.0
        %520 = vmatmul.mubr.f32.gmra.mrb[0].mxu0 %v371
        %v521 = vpop.f32.mrb[0].mxu0
        %v522 = vadd.f32 0.0, %v521
        %v523 = vpop.f32.mrb[0].mxu0
        %524 = vmatprep.mubr.f32.mxu0 0.0
        %525 = vmatmul.mubr.f32.gmra.mrb[0].mxu0 %v372
        %v526 = vpop.f32.mrb[0].mxu0
        %v527 = vadd.f32 0.0, %v526
        %v528 = vpop.f32.mrb[0].mxu0
        %529 = vmatprep.mubr.f32.mxu0 0.0
        %530 = vmatmul.mubr.f32.gmra.mrb[0].mxu0 %v373
        %v531 = vpop.f32.mrb[0].mxu0
        %v532 = vadd.f32 0.0, %v531
        %v533 = vpop.f32.mrb[0].mxu0
        %534 = vdwg.mxu0
        %535 = vst [vmem:[%s286] sm:$0xff] %v457
        %536 = vst [vmem:[%s286 + $0x8] sm:$0xff] %v462
        %537 = vst [vmem:[%s286 + $0x10] sm:$0xff] %v467
        %538 = vst [vmem:[%s286 + $0x18] sm:$0xff] %v472
        %539 = vst [vmem:[%s286 + $0x20] sm:$0xff] %v477
        %540 = vst [vmem:[%s286 + $0x28] sm:$0xff] %v482
        %541 = vst [vmem:[%s286 + $0x30] sm:$0xff] %v487
        %542 = vst [vmem:[%s286 + $0x38] sm:$0xff] %v492
        %543 = vst [vmem:[%s286 + $0x40] sm:$0xff] %v497
        %544 = vst [vmem:[%s286 + $0x48] sm:$0xff] %v502
        %545 = vst [vmem:[%s286 + $0x50] sm:$0xff] %v507
        %546 = vst [vmem:[%s286 + $0x58] sm:$0xff] %v512
        %547 = vst [vmem:[%s286 + $0x60] sm:$0xff] %v517
        %548 = vst [vmem:[%s286 + $0x68] sm:$0xff] %v522
        %549 = vst [vmem:[%s286 + $0x70] sm:$0xff] %v527
        %550 = vst [vmem:[%s286 + $0x78] sm:$0xff] %v532
        %v551 = vadd.f32 %v457, %v462
        %v552 = vadd.f32 %v551, %v467
        %v553 = vadd.f32 %v552, %v472
        %v554 = vadd.f32 %v553, %v477
        %v555 = vadd.f32 %v554, %v482
        %v556 = vadd.f32 %v555, %v487
        %v557 = vadd.f32 %v556, %v492
        %v558 = vadd.f32 %v557, %v497
        %v559 = vadd.f32 %v558, %v502
        %v560 = vadd.f32 %v559, %v507
        %v561 = vadd.f32 %v560, %v512
        %v562 = vadd.f32 %v561, %v517
        %v563 = vadd.f32 %v562, %v522
        %v564 = vadd.f32 %v563, %v527
        %v565 = vadd.f32 %v564, %v532
        %v566 = vrot.slane %v565, 4
        %v567 = vadd.f32 %v565, %v566
        %v568 = vrot.slane %v567, 2
        %v569 = vadd.f32 %v567, %v568
        %v570 = vrot.slane %v569, 1
        %v571 = vadd.f32 %v569, %v570
        %v572 = vmul.f32 %v457, %v457
        %v573 = vmul.f32 %v462, %v462
        %v574 = vmul.f32 %v467, %v467
        %v575 = vmul.f32 %v472, %v472
        %v576 = vmul.f32 %v477, %v477
        %v577 = vmul.f32 %v482, %v482
        %v578 = vmul.f32 %v487, %v487
        %v579 = vmul.f32 %v492, %v492
        %v580 = vmul.f32 %v497, %v497
        %v581 = vmul.f32 %v502, %v502
        %v582 = vmul.f32 %v507, %v507
        %v583 = vmul.f32 %v512, %v512
        %v584 = vmul.f32 %v517, %v517
        %v585 = vmul.f32 %v522, %v522
        %v586 = vmul.f32 %v527, %v527
        %v587 = vmul.f32 %v532, %v532
        %v588 = vadd.f32 %v572, %v573
        %v589 = vadd.f32 %v588, %v574
        %v590 = vadd.f32 %v589, %v575
        %v591 = vadd.f32 %v590, %v576
        %v592 = vadd.f32 %v591, %v577
        %v593 = vadd.f32 %v592, %v578
        %v594 = vadd.f32 %v593, %v579
        %v595 = vadd.f32 %v594, %v580
        %v596 = vadd.f32 %v595, %v581
        %v597 = vadd.f32 %v596, %v582
        %v598 = vadd.f32 %v597, %v583
        %v599 = vadd.f32 %v598, %v584
        %v600 = vadd.f32 %v599, %v585
        %v601 = vadd.f32 %v600, %v586
        %v602 = vadd.f32 %v601, %v587
        %v603 = vrot.slane %v602, 4
        %v604 = vadd.f32 %v602, %v603
        %v605 = vrot.slane %v604, 2
        %v606 = vadd.f32 %v604, %v605
        %v607 = vrot.slane %v606, 1
        %v608 = vadd.f32 %v606, %v607
        %vm609 = vcmask 1040384
        %v610 = vsel %vm609, %v571, %v608
        %611 = vst [vmem:[%s293] sm:$0x3] %v610
        %s612 = sand.u32 %s125, 1
        %s613 = scalar_lea.sflag [#allocation4], %s612
        %s614 = sand.u32 %s125, 1
        %s615 = smul.addr %s614, 128
        %s616 = scalar_lea.vmem [#allocation10], %s615
        %s617 = sand.u32 %s151, 1
        %s618 = scalar_lea.sflag [#allocation12], %s617
        %s619 = sand.u32 %s151, 1
        %s620 = smul.addr %s619, 2
        %s621 = scalar_lea.vmem [#allocation11], %s620
        // Predicated region
        $region53: #{dense_block_fwd.4} parent=35 // pred_check
          %p622 = pneg %p135
        $region54: #{dense_block_fwd.4} parent=35 // pred_check_branch
          %624 = sbr.rel (%p622) target = $region56
        $region55: #{dense_block_fwd.4} parent=35 // pred_region
          %s625 = smul.u32 16, %s28
          %s627 = ssub.s32 2048, 2048
          %628 = vsyncadd %s613, %s627
          %s629 = smul.addr %s625, 128
          %s630 = scalar_lea.hbm %s4, %s629
          %s631 = sshll.u32 %s616, 4
          %s632 = int_to_ptr.vmem [resolvable:$true] %s631
          %637 = dma.vmem_to_hbm [thread:$0]  %s632, 2048, %s630, %s613, 128, 128, 8
        $region56: #{dense_block_fwd.4} parent=35 // pred_fallthru
          _
        // Predicated region
        $region57: #{dense_block_fwd.4} parent=35 // pred_check
          %p638 = pneg %p161
        $region58: #{dense_block_fwd.4} parent=35 // pred_check_branch
          %640 = sbr.rel (%p638) target = $region60
        $region59: #{dense_block_fwd.4} parent=35 // pred_region
          %s642 = ssub.s32 32, 32
          %643 = vsyncadd %s618, %s642
          %s644 = smul.addr %s28, 32
          %s645 = scalar_lea.hbm %s5, %s644
          %s647 = sshll.u32 %s621, 4
          %s648 = int_to_ptr.vmem [resolvable:$true] %s647
          %650 = dma.vmem_to_hbm [thread:$0]  %s648, 32, %s645, %s618
        $region60: #{dense_block_fwd.4} parent=35 // pred_fallthru
          _
      $region36: #{dense_block_fwd.4} parent=5 // pred_fallthru
        _
      %p651 = scmp.le.s32.totalorder 2, %s23
      // Predicated region
      $region61: #{dense_block_fwd.4} parent=5 // pred_check
        %p652 = pneg %p651
      $region62: #{dense_block_fwd.4} parent=5 // pred_check_branch
        %654 = sbr.rel (%p652) target = $region64
      $region63: #{dense_block_fwd.4} parent=5 // pred_region
        %s655 = ssub.s32 %s23, 2
        // Predicated region
        $region65: #{dense_block_fwd.4} parent=63 // pred_check
          %p656 = pneg %p141
        $region66: #{dense_block_fwd.4} parent=63 // pred_check_branch
          %658 = sbr.rel (%p656) target = $region68
        $region67: #{dense_block_fwd.4} parent=63 // pred_region
          %s659 = sand.u32 %s126, 1
          %s660 = scalar_lea.sflag [#allocation4], %s659
          %s661 = sand.u32 %s126, 1
          %s662 = smul.addr %s661, 128
          %s663 = scalar_lea.vmem [#allocation10], %s662
          %664 = dma.done %s660, 2048
        $region68: #{dense_block_fwd.4} parent=63 // pred_fallthru
          _
        // Predicated region
        $region69: #{dense_block_fwd.4} parent=63 // pred_check
          %p665 = pneg %p167
        $region70: #{dense_block_fwd.4} parent=63 // pred_check_branch
          %667 = sbr.rel (%p665) target = $region72
        $region71: #{dense_block_fwd.4} parent=63 // pred_region
          %s668 = sand.u32 %s152, 1
          %s669 = scalar_lea.sflag [#allocation12], %s668
          %s670 = sand.u32 %s152, 1
          %s671 = smul.addr %s670, 2
          %s672 = scalar_lea.vmem [#allocation11], %s671
          %673 = dma.done %s669, 32
        $region72: #{dense_block_fwd.4} parent=63 // pred_fallthru
          _
      $region64: #{dense_block_fwd.4} parent=5 // pred_fallthru
        _
    $region6: #{dense_block_fwd.4} parent=1 // loop_footer
      %s27 = sadd.s32 1, %s23
    $region7: #{dense_block_fwd.4} parent=1 // loop_footer_branch
      %22 = sbr.rel target = $region3
    $region8: #{dense_block_fwd.4} parent=1 // loop_exit
      _
    %674 = vsyncpa [#allocation3], 1
    %s675 = scalar_lea.sflag [#allocation3], 1
    %676 = vsyncpa %s675, 1
    %677 = vsyncpa [#allocation6], 1
    %678 = vsyncpa [#allocation9], 1
    %679 = vsyncpa [#allocation4], 1
    %s680 = scalar_lea.sflag [#allocation4], 1
    %681 = vsyncpa %s680, 1
    %682 = vsyncpa [#allocation12], 1
    %s683 = scalar_lea.sflag [#allocation12], 1
    %684 = vsyncpa %s683, 1

// kernel: dense_block_fwd.5
$region0: #{dense_block_fwd.5}
  #allocation0 [shape = 'u32[]', space=smem, size = 0x4, offset = 0x4, fixed_abs, tag = 'smem constant byte address 0x4 - core index']
  #allocation1 [shape = 'u32[144,128]{1,0:T(1,128)}', space=vmem, size = 0x12000, scoped, tag = 'internal scratch']
  #allocation2 [shape = 'f32[288,384]{1,0:T(8,128)}', space=vmem, size = 0x6c000, scoped, tag = 'scratch operand']
  %s0 = inlined_call_operand.hbm [shape: f32[512,128], index: 0, kind: input, shape index: {}]
  %s1 = inlined_call_operand.hbm [shape: f32[1,128], index: 1, kind: input, shape index: {}]
  %s2 = inlined_call_operand.hbm [shape: f32[1,128], index: 2, kind: input, shape index: {}]
  %s3 = inlined_call_operand.hbm [shape: f32[3,384,128], index: 3, kind: input, shape index: {}]
  %s4 = inlined_call_operand.hbm [shape: f32[512,128], index: 4, kind: output, shape index: {0}]
  %s5 = inlined_call_operand.hbm [shape: f32[2,2,128], index: 5, kind: output, shape index: {1}]
  %6 = xla_tuple %s4, %s5
  %s7 = sld [smem:[#allocation0]]
  $region73: #{dense_block_fwd.5} parent=0
    _
  %s9 = ssub.s32 1, %s7
  %s10 = scalar_select 0, %s9, %s7
  $region1: #{dense_block_fwd.5} parent=0
    #allocation3 [shape = 'u8[262144]{0}', space=vmem, size = 0x40000, scoped, tag = 'input window, operand 0']
    #allocation4 [shape = 's32[2]{0}', space=sflag, size = 0x8, scoped, tag = 'scoped memory for dense_block_fwd.5']
    #allocation5 [shape = 's32[2]{0}', space=sflag, size = 0x8, scoped, tag = 'scoped memory for dense_block_fwd.5']
    #allocation6 [shape = 'u8[512]{0}', space=vmem, size = 0x400, scoped, tag = 'input window, operand 1, single buffered']
    #allocation7 [shape = 's32[1]{0}', space=sflag, size = 0x4, scoped, tag = 'scoped memory for dense_block_fwd.5']
    #allocation8 [shape = 'u8[512]{0}', space=vmem, size = 0x400, scoped, tag = 'input window, operand 2, single buffered']
    #allocation9 [shape = 'u8[589824]{0}', space=vmem, size = 0x90000, scoped, tag = 'input window, operand 3, single buffered']
    #allocation10 [shape = 's32[1]{0}', space=sflag, size = 0x4, scoped, tag = 'scoped memory for dense_block_fwd.5']
    #allocation11 [shape = 'u8[262144]{0}', space=vmem, size = 0x40000, scoped, tag = 'output window, operand 0']
    #allocation12 [shape = 'u8[2048]{0}', space=vmem, size = 0x800, scoped, tag = 'output window, operand 1']
    #allocation13 [shape = 's32[2]{0}', space=sflag, size = 0x8, scoped, tag = 'scoped memory for dense_block_fwd.5']
    %11 = vsyncpa [#allocation4], 0
    %s12 = scalar_lea.sflag [#allocation4], 1
    %13 = vsyncpa %s12, 0
    %14 = vsyncpa [#allocation7], 0
    %15 = vsyncpa [#allocation10], 0
    %16 = vsyncpa [#allocation5], 0
    %s17 = scalar_lea.sflag [#allocation5], 1
    %18 = vsyncpa %s17, 0
    %19 = vsyncpa [#allocation13], 0
    %s20 = scalar_lea.sflag [#allocation13], 1
    %21 = vsyncpa %s20, 0
    loop: start=0, step=1, limit=4
    $region2: #{dense_block_fwd.5} parent=1 // loop_pre_header
      _
    $region3: #{dense_block_fwd.5} parent=1 // loop_header
      %s23 = sphi 0, %s27
      %p24 = scmp.ge.s32.totalorder %s23, 4
      %s33 = sphi 0, %s35
      %s36 = sphi 0, %s33
      %s37 = sphi 0, %s36
      %s53 = sphi 0, %s37
      %s57 = sphi 0, %s57
      %s59 = sphi 0, %s57
      %s60 = sphi 0, %s59
      %s74 = sphi 0, %s60
      %s78 = sphi 0, %s78
      %s80 = sphi 0, %s78
      %s81 = sphi 0, %s80
      %s95 = sphi 0, %s81
      %s99 = sphi 0, %s99
      %s101 = sphi 0, %s99
      %s102 = sphi 0, %s101
      %s116 = sphi 0, %s102
      %s122 = sphi 0, %s124
      %s125 = sphi 0, %s122
      %s126 = sphi 0, %s125
      %s142 = sphi 0, %s126
      %s148 = sphi 0, %s150
      %s151 = sphi 0, %s148
      %s152 = sphi 0, %s151
      %s168 = sphi 0, %s152
    $region4: #{dense_block_fwd.5} parent=1 // loop_header_branch
      %26 = sbr.rel (%p24) target = $region8
    $region5: #{dense_block_fwd.5} parent=1 // loop_body
      %s28 = ssub.s32 %s23, 1
      %s29 = ssub.s32 %s23, 2
      %s30 = sadd.s32 %s23, 1
      %s31 = ssub.s32 %s23, %s30
      %p32 = scmp.eq.s32.totalorder %s31, 0
      %s34 = sadd.s32 %s33, 1
      %s35 = scalar_select %p32, %s33, %s34
      %p38 = pneg %p32
      %p39 = scmp.eq.s32.totalorder %s23, 1
      %p40 = por %p38, %p39
      %p41 = scmp.ne.s32.totalorder %s33, %s36
      %p42 = scmp.eq.s32.totalorder %s23, 0
      %p43 = por %p41, %p42
      %p44 = scmp.ne.s32.totalorder %s33, %s36
      %p45 = scmp.eq.s32.totalorder %s28, 1
      %p46 = por %p44, %p45
      %p47 = scmp.ne.s32.totalorder %s36, %s37
      %p48 = scmp.eq.s32.totalorder %s28, 0
      %p49 = por %p47, %p48
      %p50 = scmp.ne.s32.totalorder %s36, %s37
      %p51 = scmp.eq.s32.totalorder %s29, 1
      %p52 = por %p50, %p51
      %p54 = scmp.ne.s32.totalorder %s37, %s53
      %p55 = scmp.eq.s32.totalorder %s29, 0
      %p56 = por %p54, %p55
      %s58 = sadd.s32 %s57, 1
      %p61 = scmp.eq.s32.totalorder %s23, 1
      %p62 = scmp.ne.s32.totalorder %s57, %s59
      %p63 = scmp.eq.s32.totalorder %s23, 0
      %p64 = por %p62, %p63
      %p65 = scmp.ne.s32.totalorder %s57, %s59
      %p66 = scmp.eq.s32.totalorder %s28, 1
      %p67 = por %p65, %p66
      %p68 = scmp.ne.s32.totalorder %s59, %s60
      %p69 = scmp.eq.s32.totalorder %s28, 0
      %p70 = por %p68, %p69
      %p71 = scmp.ne.s32.totalorder %s59, %s60
      %p72 = scmp.eq.s32.totalorder %s29, 1
      %p73 = por %p71, %p72
      %p75 = scmp.ne.s32.totalorder %s60, %s74
      %p76 = scmp.eq.s32.totalorder %s29, 0
      %p77 = por %p75, %p76
      %s79 = sadd.s32 %s78, 1
      %p82 = scmp.eq.s32.totalorder %s23, 1
      %p83 = scmp.ne.s32.totalorder %s78, %s80
      %p84 = scmp.eq.s32.totalorder %s23, 0
      %p85 = por %p83, %p84
      %p86 = scmp.ne.s32.totalorder %s78, %s80
      %p87 = scmp.eq.s32.totalorder %s28, 1
      %p88 = por %p86, %p87
      %p89 = scmp.ne.s32.totalorder %s80, %s81
      %p90 = scmp.eq.s32.totalorder %s28, 0
      %p91 = por %p89, %p90
      %p92 = scmp.ne.s32.totalorder %s80, %s81
      %p93 = scmp.eq.s32.totalorder %s29, 1
      %p94 = por %p92, %p93
      %p96 = scmp.ne.s32.totalorder %s81, %s95
      %p97 = scmp.eq.s32.totalorder %s29, 0
      %p98 = por %p96, %p97
      %s100 = sadd.s32 %s99, 1
      %p103 = scmp.eq.s32.totalorder %s23, 1
      %p104 = scmp.ne.s32.totalorder %s99, %s101
      %p105 = scmp.eq.s32.totalorder %s23, 0
      %p106 = por %p104, %p105
      %p107 = scmp.ne.s32.totalorder %s99, %s101
      %p108 = scmp.eq.s32.totalorder %s28, 1
      %p109 = por %p107, %p108
      %p110 = scmp.ne.s32.totalorder %s101, %s102
      %p111 = scmp.eq.s32.totalorder %s28, 0
      %p112 = por %p110, %p111
      %p113 = scmp.ne.s32.totalorder %s101, %s102
      %p114 = scmp.eq.s32.totalorder %s29, 1
      %p115 = por %p113, %p114
      %p117 = scmp.ne.s32.totalorder %s102, %s116
      %p118 = scmp.eq.s32.totalorder %s29, 0
      %p119 = por %p117, %p118
      %s120 = ssub.s32 %s23, %s30
      %p121 = scmp.eq.s32.totalorder %s120, 0
      %s123 = sadd.s32 %s122, 1
      %s124 = scalar_select %p121, %s122, %s123
      %p127 = pneg %p121
      %p128 = scmp.eq.s32.totalorder %s23, 1
      %p129 = por %p127, %p128
      %p130 = scmp.ne.s32.totalorder %s122, %s125
      %p131 = scmp.eq.s32.totalorder %s23, 0
      %p132 = por %p130, %p131
      %p133 = scmp.ne.s32.totalorder %s122, %s125
      %p134 = scmp.eq.s32.totalorder %s28, 1
      %p135 = por %p133, %p134
      %p136 = scmp.ne.s32.totalorder %s125, %s126
      %p137 = scmp.eq.s32.totalorder %s28, 0
      %p138 = por %p136, %p137
      %p139 = scmp.ne.s32.totalorder %s125, %s126
      %p140 = scmp.eq.s32.totalorder %s29, 1
      %p141 = por %p139, %p140
      %p143 = scmp.ne.s32.totalorder %s126, %s142
      %p144 = scmp.eq.s32.totalorder %s29, 0
      %p145 = por %p143, %p144
      %s146 = ssub.s32 %s23, %s30
      %p147 = scmp.eq.s32.totalorder %s146, 0
      %s149 = sadd.s32 %s148, 1
      %s150 = scalar_select %p147, %s148, %s149
      %p153 = pneg %p147
      %p154 = scmp.eq.s32.totalorder %s23, 1
      %p155 = por %p153, %p154
      %p156 = scmp.ne.s32.totalorder %s148, %s151
      %p157 = scmp.eq.s32.totalorder %s23, 0
      %p158 = por %p156, %p157
      %p159 = scmp.ne.s32.totalorder %s148, %s151
      %p160 = scmp.eq.s32.totalorder %s28, 1
      %p161 = por %p159, %p160
      %p162 = scmp.ne.s32.totalorder %s151, %s152
      %p163 = scmp.eq.s32.totalorder %s28, 0
      %p164 = por %p162, %p163
      %p165 = scmp.ne.s32.totalorder %s151, %s152
      %p166 = scmp.eq.s32.totalorder %s29, 1
      %p167 = por %p165, %p166
      %p169 = scmp.ne.s32.totalorder %s152, %s168
      %p170 = scmp.eq.s32.totalorder %s29, 0
      %p171 = por %p169, %p170
      %p172 = scmp.le.s32.totalorder 1, %s23
      %p173 = scmp.lt.s32.totalorder %s23, 3
      %p174 = pnand %p172, %p173
      %p175 = pneg %p174
      // Predicated region
      $region9: #{dense_block_fwd.5} parent=5 // pred_check
        _
      $region10: #{dense_block_fwd.5} parent=5 // pred_check_branch
        %177 = sbr.rel (%p174) target = $region12
      $region11: #{dense_block_fwd.5} parent=5 // pred_region
        %s178 = ssub.s32 %s23, 1
        // Predicated region
        $region13: #{dense_block_fwd.5} parent=11 // pred_check
          %p179 = pneg %p70
        $region14: #{dense_block_fwd.5} parent=11 // pred_check_branch
          %181 = sbr.rel (%p179) target = $region16
        $region15: #{dense_block_fwd.5} parent=11 // pred_region
          %s183 = ssub.s32 16, 16
          %184 = vsyncadd [#allocation7], %s183
          %s186 = sshll.u32 [#allocation6], 4
          %s187 = int_to_ptr.vmem [resolvable:$true] %s186
          %189 = dma.hbm_to_vmem [thread:$0]  %s1, 16, %s187, [#allocation7]
        $region16: #{dense_block_fwd.5} parent=11 // pred_fallthru
          _
        // Predicated region
        $region17: #{dense_block_fwd.5} parent=11 // pred_check
          %p190 = pneg %p91
        $region18: #{dense_block_fwd.5} parent=11 // pred_check_branch
          %192 = sbr.rel (%p190) target = $region20
        $region19: #{dense_block_fwd.5} parent=11 // pred_region
          %s194 = ssub.s32 16, 16
          %195 = vsyncadd [#allocation7], %s194
          %s197 = sshll.u32 [#allocation8], 4
          %s198 = int_to_ptr.vmem [resolvable:$true] %s197
          %200 = dma.hbm_to_vmem [thread:$0]  %s2, 16, %s198, [#allocation7]
        $region20: #{dense_block_fwd.5} parent=11 // pred_fallthru
          _
        // Predicated region
        $region21: #{dense_block_fwd.5} parent=11 // pred_check
          %p201 = pneg %p112
        $region22: #{dense_block_fwd.5} parent=11 // pred_check_branch
          %203 = sbr.rel (%p201) target = $region24
        $region23: #{dense_block_fwd.5} parent=11 // pred_region
          %s205 = ssub.s32 18432, 18432
          %206 = vsyncadd [#allocation10], %s205
          %s207 = sshll.u32 [#allocation9], 4
          %s208 = int_to_ptr.vmem [resolvable:$true] %s207
          %213 = dma.hbm_to_vmem [thread:$0]  %s3, 18432, %s208, [#allocation10], 128, 128, 8
        $region24: #{dense_block_fwd.5} parent=11 // pred_fallthru
          _
      $region12: #{dense_block_fwd.5} parent=5 // pred_fallthru
        _
      %p214 = scmp.lt.s32.totalorder %s23, 2
      // Predicated region
      $region25: #{dense_block_fwd.5} parent=5 // pred_check
        %p215 = pneg %p214
      $region26: #{dense_block_fwd.5} parent=5 // pred_check_branch
        %217 = sbr.rel (%p215) target = $region28
      $region27: #{dense_block_fwd.5} parent=5 // pred_region
        // Predicated region
        $region29: #{dense_block_fwd.5} parent=27 // pred_check
          %p218 = pneg %p43
        $region30: #{dense_block_fwd.5} parent=27 // pred_check_branch
          %220 = sbr.rel (%p218) target = $region32
        $region31: #{dense_block_fwd.5} parent=27 // pred_region
          %s221 = sand.u32 %s33, 1
          %s222 = scalar_lea.sflag [#allocation4], %s221
          %s223 = sand.u32 %s33, 1
          %s224 = smul.addr %s223, 256
          %s225 = scalar_lea.vmem [#allocation3], %s224
          %s226 = smul.u32 32, %s23
          %s228 = ssub.s32 4096, 4096
          %229 = vsyncadd %s222, %s228
          %s230 = smul.addr %s226, 128
          %s231 = scalar_lea.hbm %s0, %s230
          %s232 = sshll.u32 %s225, 4
          %s233 = int_to_ptr.vmem [resolvable:$true] %s232
          %238 = dma.hbm_to_vmem [thread:$0]  %s231, 4096, %s233, %s222, 128, 128, 8
        $region32: #{dense_block_fwd.5} parent=27 // pred_fallthru
          _
      $region28: #{dense_block_fwd.5} parent=5 // pred_fallthru
        _
      %p239 = scmp.le.s32.totalorder 1, %s23
      %p240 = scmp.lt.s32.totalorder %s23, 3
      %p241 = pnand %p239, %p240
      %p242 = pneg %p241
      // Predicated region
      $region33: #{dense_block_fwd.5} parent=5 // pred_check
        _
      $region34: #{dense_block_fwd.5} parent=5 // pred_check_branch
        %244 = sbr.rel (%p241) target = $region36
      $region35: #{dense_block_fwd.5} parent=5 // pred_region
        %s245 = ssub.s32 %s23, 1
        %s246 = sand.u32 %s36, 1
        %s247 = scalar_lea.sflag [#allocation4], %s246
        %s248 = sand.u32 %s36, 1
        %s249 = smul.addr %s248, 256
        %s250 = scalar_lea.vmem [#allocation3], %s249
        // Predicated region
        $region37: #{dense_block_fwd.5} parent=35 // pred_check
          %p251 = pneg %p49
        $region38: #{dense_block_fwd.5} parent=35 // pred_check_branch
          %253 = sbr.rel (%p251) target = $region40
        $region39: #{dense_block_fwd.5} parent=35 // pred_region
          %254 = dma.done %s247, 4096
        $region40: #{dense_block_fwd.5} parent=35 // pred_fallthru
          _
        // Predicated region
        $region41: #{dense_block_fwd.5} parent=35 // pred_check
          %p255 = pneg %p70
        $region42: #{dense_block_fwd.5} parent=35 // pred_check_branch
          %257 = sbr.rel (%p255) target = $region44
        $region43: #{dense_block_fwd.5} parent=35 // pred_region
          %258 = dma.done [#allocation7], 16
        $region44: #{dense_block_fwd.5} parent=35 // pred_fallthru
          _
        // Predicated region
        $region45: #{dense_block_fwd.5} parent=35 // pred_check
          %p259 = pneg %p91
        $region46: #{dense_block_fwd.5} parent=35 // pred_check_branch
          %261 = sbr.rel (%p259) target = $region48
        $region47: #{dense_block_fwd.5} parent=35 // pred_region
          %262 = dma.done [#allocation7], 16
        $region48: #{dense_block_fwd.5} parent=35 // pred_fallthru
          _
        // Predicated region
        $region49: #{dense_block_fwd.5} parent=35 // pred_check
          %p263 = pneg %p112
        $region50: #{dense_block_fwd.5} parent=35 // pred_check_branch
          %265 = sbr.rel (%p263) target = $region52
        $region51: #{dense_block_fwd.5} parent=35 // pred_region
          %266 = dma.done [#allocation10], 18432
        $region52: #{dense_block_fwd.5} parent=35 // pred_fallthru
          _
        %s267 = sand.u32 %s36, 1
        %s268 = scalar_lea.sflag [#allocation4], %s267
        %s269 = sand.u32 %s36, 1
        %s270 = smul.addr %s269, 256
        %s271 = scalar_lea.vmem [#allocation3], %s270
        %p272 = pneg %p49
        %p273 = pneg %p46
        %p274 = pneg %p70
        %p275 = pneg %p67
        %p276 = pneg %p91
        %p277 = pneg %p88
        %p278 = pneg %p112
        %p279 = pneg %p109
        %p280 = pneg %p138
        %p281 = pneg %p135
        %s282 = sand.u32 %s125, 1
        %s283 = scalar_lea.sflag [#allocation5], %s282
        %s284 = sand.u32 %s125, 1
        %s285 = smul.addr %s284, 256
        %s286 = scalar_lea.vmem [#allocation11], %s285
        %p287 = pneg %p164
        %p288 = pneg %p161
        %s289 = sand.u32 %s151, 1
        %s290 = scalar_lea.sflag [#allocation13], %s289
        %s291 = sand.u32 %s151, 1
        %s292 = smul.addr %s291, 2
        %s293 = scalar_lea.vmem [#allocation12], %s292
        %s294 = smul.u32 32, %s28
        %s295 = smul.u32 32, %s28
        %v296 = vld [vmem:[%s250] sm:$0xff]
        %v297 = vld [vmem:[%s250 + $0x8] sm:$0xff]
        %v298 = vld [vmem:[%s250 + $0x10] sm:$0xff]
        %v299 = vld [vmem:[%s250 + $0x18] sm:$0xff]
        %v300 = vld [vmem:[%s250 + $0x20] sm:$0xff]
        %v301 = vld [vmem:[%s250 + $0x28] sm:$0xff]
        %v302 = vld [vmem:[%s250 + $0x30] sm:$0xff]
        %v303 = vld [vmem:[%s250 + $0x38] sm:$0xff]
        %v304 = vld [vmem:[%s250 + $0x40] sm:$0xff]
        %v305 = vld [vmem:[%s250 + $0x48] sm:$0xff]
        %v306 = vld [vmem:[%s250 + $0x50] sm:$0xff]
        %v307 = vld [vmem:[%s250 + $0x58] sm:$0xff]
        %v308 = vld [vmem:[%s250 + $0x60] sm:$0xff]
        %v309 = vld [vmem:[%s250 + $0x68] sm:$0xff]
        %v310 = vld [vmem:[%s250 + $0x70] sm:$0xff]
        %v311 = vld [vmem:[%s250 + $0x78] sm:$0xff]
        %v312 = vld [vmem:[%s250 + $0x80] sm:$0xff]
        %v313 = vld [vmem:[%s250 + $0x88] sm:$0xff]
        %v314 = vld [vmem:[%s250 + $0x90] sm:$0xff]
        %v315 = vld [vmem:[%s250 + $0x98] sm:$0xff]
        %v316 = vld [vmem:[%s250 + $0xa0] sm:$0xff]
        %v317 = vld [vmem:[%s250 + $0xa8] sm:$0xff]
        %v318 = vld [vmem:[%s250 + $0xb0] sm:$0xff]
        %v319 = vld [vmem:[%s250 + $0xb8] sm:$0xff]
        %v320 = vld [vmem:[%s250 + $0xc0] sm:$0xff]
        %v321 = vld [vmem:[%s250 + $0xc8] sm:$0xff]
        %v322 = vld [vmem:[%s250 + $0xd0] sm:$0xff]
        %v323 = vld [vmem:[%s250 + $0xd8] sm:$0xff]
        %v324 = vld [vmem:[%s250 + $0xe0] sm:$0xff]
        %v325 = vld [vmem:[%s250 + $0xe8] sm:$0xff]
        %v326 = vld [vmem:[%s250 + $0xf0] sm:$0xff]
        %v327 = vld [vmem:[%s250 + $0xf8] sm:$0xff]
        %v328 = vld [vmem:[#allocation6] sm:$0x1]
        %v330 = vlaneseq
        %v331 = vshrl.u32 %v330, 7
        %v332 = vsub.s32 0, %v331
        %v333 = vrot.slane %v328, %v332
        %v335 = vmul.f32 %v296, %v333
        %v336 = vmul.f32 %v297, %v333
        %v337 = vmul.f32 %v298, %v333
        %v338 = vmul.f32 %v299, %v333
        %v339 = vmul.f32 %v300, %v333
        %v340 = vmul.f32 %v301, %v333
        %v341 = vmul.f32 %v302, %v333
        %v342 = vmul.f32 %v303, %v333
        %v343 = vmul.f32 %v304, %v333
        %v344 = vmul.f32 %v305, %v333
        %v345 = vmul.f32 %v306, %v333
        %v346 = vmul.f32 %v307, %v333
        %v347 = vmul.f32 %v308, %v333
        %v348 = vmul.f32 %v309, %v333
        %v349 = vmul.f32 %v310, %v333
        %v350 = vmul.f32 %v311, %v333
        %v351 = vmul.f32 %v312, %v333
        %v352 = vmul.f32 %v313, %v333
        %v353 = vmul.f32 %v314, %v333
        %v354 = vmul.f32 %v315, %v333
        %v355 = vmul.f32 %v316, %v333
        %v356 = vmul.f32 %v317, %v333
        %v357 = vmul.f32 %v318, %v333
        %v358 = vmul.f32 %v319, %v333
        %v359 = vmul.f32 %v320, %v333
        %v360 = vmul.f32 %v321, %v333
        %v361 = vmul.f32 %v322, %v333
        %v362 = vmul.f32 %v323, %v333
        %v363 = vmul.f32 %v324, %v333
        %v364 = vmul.f32 %v325, %v333
        %v365 = vmul.f32 %v326, %v333
        %v366 = vmul.f32 %v327, %v333
        %v367 = vld [vmem:[#allocation8] sm:$0x1]
        %v369 = vlaneseq
        %v370 = vshrl.u32 %v369, 7
        %v371 = vsub.s32 0, %v370
        %v372 = vrot.slane %v367, %v371
        %v374 = vadd.f32 %v335, %v372
        %v375 = vadd.f32 %v336, %v372
        %v376 = vadd.f32 %v337, %v372
        %v377 = vadd.f32 %v338, %v372
        %v378 = vadd.f32 %v339, %v372
        %v379 = vadd.f32 %v340, %v372
        %v380 = vadd.f32 %v341, %v372
        %v381 = vadd.f32 %v342, %v372
        %v382 = vadd.f32 %v343, %v372
        %v383 = vadd.f32 %v344, %v372
        %v384 = vadd.f32 %v345, %v372
        %v385 = vadd.f32 %v346, %v372
        %v386 = vadd.f32 %v347, %v372
        %v387 = vadd.f32 %v348, %v372
        %v388 = vadd.f32 %v349, %v372
        %v389 = vadd.f32 %v350, %v372
        %v390 = vadd.f32 %v351, %v372
        %v391 = vadd.f32 %v352, %v372
        %v392 = vadd.f32 %v353, %v372
        %v393 = vadd.f32 %v354, %v372
        %v394 = vadd.f32 %v355, %v372
        %v395 = vadd.f32 %v356, %v372
        %v396 = vadd.f32 %v357, %v372
        %v397 = vadd.f32 %v358, %v372
        %v398 = vadd.f32 %v359, %v372
        %v399 = vadd.f32 %v360, %v372
        %v400 = vadd.f32 %v361, %v372
        %v401 = vadd.f32 %v362, %v372
        %v402 = vadd.f32 %v363, %v372
        %v403 = vadd.f32 %v364, %v372
        %v404 = vadd.f32 %v365, %v372
        %v405 = vadd.f32 %v366, %v372
        %v406 = vmax.f32 %v374, 0.0
        %v407 = vmax.f32 %v375, 0.0
        %v408 = vmax.f32 %v376, 0.0
        %v409 = vmax.f32 %v377, 0.0
        %v410 = vmax.f32 %v378, 0.0
        %v411 = vmax.f32 %v379, 0.0
        %v412 = vmax.f32 %v380, 0.0
        %v413 = vmax.f32 %v381, 0.0
        %v414 = vmax.f32 %v382, 0.0
        %v415 = vmax.f32 %v383, 0.0
        %v416 = vmax.f32 %v384, 0.0
        %v417 = vmax.f32 %v385, 0.0
        %v418 = vmax.f32 %v386, 0.0
        %v419 = vmax.f32 %v387, 0.0
        %v420 = vmax.f32 %v388, 0.0
        %v421 = vmax.f32 %v389, 0.0
        %v422 = vmax.f32 %v390, 0.0
        %v423 = vmax.f32 %v391, 0.0
        %v424 = vmax.f32 %v392, 0.0
        %v425 = vmax.f32 %v393, 0.0
        %v426 = vmax.f32 %v394, 0.0
        %v427 = vmax.f32 %v395, 0.0
        %v428 = vmax.f32 %v396, 0.0
        %v429 = vmax.f32 %v397, 0.0
        %v430 = vmax.f32 %v398, 0.0
        %v431 = vmax.f32 %v399, 0.0
        %v432 = vmax.f32 %v400, 0.0
        %v433 = vmax.f32 %v401, 0.0
        %v434 = vmax.f32 %v402, 0.0
        %v435 = vmax.f32 %v403, 0.0
        %v436 = vmax.f32 %v404, 0.0
        %v437 = vmax.f32 %v405, 0.0
        %v438 = vlaneseq
        %v439 = vshrl.u32 %v438, 7
        %v440 = vadd.s32 %v439, 8
        %v441 = vadd.s32 %v439, 16
        %v442 = vadd.s32 %v439, 24
        %v443 = vadd.s32 %v439, 32
        %v444 = vadd.s32 %v439, 40
        %v445 = vadd.s32 %v439, 48
        %v446 = vadd.s32 %v439, 56
        %v447 = vadd.s32 %v439, 64
        %v448 = vadd.s32 %v439, 72
        %v449 = vadd.s32 %v439, 80
        %v450 = vadd.s32 %v439, 88
        %v451 = vadd.s32 %v439, 96
        %v452 = vadd.s32 %v439, 104
        %v453 = vadd.s32 %v439, 112
        %v454 = vadd.s32 %v439, 120
        %v455 = vadd.s32 %v439, 128
        %v456 = vadd.s32 %v439, 136
        %v457 = vadd.s32 %v439, 144
        %v458 = vadd.s32 %v439, 152
        %v459 = vadd.s32 %v439, 160
        %v460 = vadd.s32 %v439, 168
        %v461 = vadd.s32 %v439, 176
        %v462 = vadd.s32 %v439, 184
        %v463 = vadd.s32 %v439, 192
        %v464 = vadd.s32 %v439, 200
        %v465 = vadd.s32 %v439, 208
        %v466 = vadd.s32 %v439, 216
        %v467 = vadd.s32 %v439, 224
        %v468 = vadd.s32 %v439, 232
        %v469 = vadd.s32 %v439, 240
        %v470 = vadd.s32 %v439, 248
        %vm471 = vcmp.lt.s32.totalorder %v439, 0
        %v472 = vsub.s32 0, %v439
        %v473 = vsel %vm471, %v472, %v439
        %v474 = vshrl.u32 %v473, 4
        %v475 = vand.u32 %v473, 15
        %v476 = vsub.s32 0, %v475
        %v477 = vsel %vm471, %v476, %v475
        %vm478 = vcmp.lt.s32.totalorder %v440, 0
        %v479 = vsub.s32 0, %v440
        %v480 = vsel %vm478, %v479, %v440
        %v481 = vshrl.u32 %v480, 4
        %v482 = vand.u32 %v480, 15
        %v483 = vsub.s32 0, %v482
        %v484 = vsel %vm478, %v483, %v482
        %vm485 = vcmp.lt.s32.totalorder %v441, 0
        %v486 = vsub.s32 0, %v441
        %v487 = vsel %vm485, %v486, %v441
        %v488 = vshrl.u32 %v487, 4
        %v489 = vand.u32 %v487, 15
        %v490 = vsub.s32 0, %v489
        %v491 = vsel %vm485, %v490, %v489
        %vm492 = vcmp.lt.s32.totalorder %v442, 0
        %v493 = vsub.s32 0, %v442
        %v494 = vsel %vm492, %v493, %v442
        %v495 = vshrl.u32 %v494, 4
        %v496 = vand.u32 %v494, 15
        %v497 = vsub.s32 0, %v496
        %v498 = vsel %vm492, %v497, %v496
        %vm499 = vcmp.lt.s32.totalorder %v443, 0
        %v500 = vsub.s32 0, %v443
        %v501 = vsel %vm499, %v500, %v443
        %v502 = vshrl.u32 %v501, 4
        %v503 = vand.u32 %v501, 15
        %v504 = vsub.s32 0, %v503
        %v505 = vsel %vm499, %v504, %v503
        %vm506 = vcmp.lt.s32.totalorder %v444, 0
        %v507 = vsub.s32 0, %v444
        %v508 = vsel %vm506, %v507, %v444
        %v509 = vshrl.u32 %v508, 4
        %v510 = vand.u32 %v508, 15
        %v511 = vsub.s32 0, %v510
        %v512 = vsel %vm506, %v511, %v510
        %vm513 = vcmp.lt.s32.totalorder %v445, 0
        %v514 = vsub.s32 0, %v445
        %v515 = vsel %vm513, %v514, %v445
        %v516 = vshrl.u32 %v515, 4
        %v517 = vand.u32 %v515, 15
        %v518 = vsub.s32 0, %v517
        %v519 = vsel %vm513, %v518, %v517
        %vm520 = vcmp.lt.s32.totalorder %v446, 0
        %v521 = vsub.s32 0, %v446
        %v522 = vsel %vm520, %v521, %v446
        %v523 = vshrl.u32 %v522, 4
        %v524 = vand.u32 %v522, 15
        %v525 = vsub.s32 0, %v524
        %v526 = vsel %vm520, %v525, %v524
        %vm527 = vcmp.lt.s32.totalorder %v447, 0
        %v528 = vsub.s32 0, %v447
        %v529 = vsel %vm527, %v528, %v447
        %v530 = vshrl.u32 %v529, 4
        %v531 = vand.u32 %v529, 15
        %v532 = vsub.s32 0, %v531
        %v533 = vsel %vm527, %v532, %v531
        %vm534 = vcmp.lt.s32.totalorder %v448, 0
        %v535 = vsub.s32 0, %v448
        %v536 = vsel %vm534, %v535, %v448
        %v537 = vshrl.u32 %v536, 4
        %v538 = vand.u32 %v536, 15
        %v539 = vsub.s32 0, %v538
        %v540 = vsel %vm534, %v539, %v538
        %vm541 = vcmp.lt.s32.totalorder %v449, 0
        %v542 = vsub.s32 0, %v449
        %v543 = vsel %vm541, %v542, %v449
        %v544 = vshrl.u32 %v543, 4
        %v545 = vand.u32 %v543, 15
        %v546 = vsub.s32 0, %v545
        %v547 = vsel %vm541, %v546, %v545
        %vm548 = vcmp.lt.s32.totalorder %v450, 0
        %v549 = vsub.s32 0, %v450
        %v550 = vsel %vm548, %v549, %v450
        %v551 = vshrl.u32 %v550, 4
        %v552 = vand.u32 %v550, 15
        %v553 = vsub.s32 0, %v552
        %v554 = vsel %vm548, %v553, %v552
        %vm555 = vcmp.lt.s32.totalorder %v451, 0
        %v556 = vsub.s32 0, %v451
        %v557 = vsel %vm555, %v556, %v451
        %v558 = vshrl.u32 %v557, 4
        %v559 = vand.u32 %v557, 15
        %v560 = vsub.s32 0, %v559
        %v561 = vsel %vm555, %v560, %v559
        %vm562 = vcmp.lt.s32.totalorder %v452, 0
        %v563 = vsub.s32 0, %v452
        %v564 = vsel %vm562, %v563, %v452
        %v565 = vshrl.u32 %v564, 4
        %v566 = vand.u32 %v564, 15
        %v567 = vsub.s32 0, %v566
        %v568 = vsel %vm562, %v567, %v566
        %vm569 = vcmp.lt.s32.totalorder %v453, 0
        %v570 = vsub.s32 0, %v453
        %v571 = vsel %vm569, %v570, %v453
        %v572 = vshrl.u32 %v571, 4
        %v573 = vand.u32 %v571, 15
        %v574 = vsub.s32 0, %v573
        %v575 = vsel %vm569, %v574, %v573
        %vm576 = vcmp.lt.s32.totalorder %v454, 0
        %v577 = vsub.s32 0, %v454
        %v578 = vsel %vm576, %v577, %v454
        %v579 = vshrl.u32 %v578, 4
        %v580 = vand.u32 %v578, 15
        %v581 = vsub.s32 0, %v580
        %v582 = vsel %vm576, %v581, %v580
        %vm583 = vcmp.lt.s32.totalorder %v455, 0
        %v584 = vsub.s32 0, %v455
        %v585 = vsel %vm583, %v584, %v455
        %v586 = vshrl.u32 %v585, 4
        %v587 = vand.u32 %v585, 15
        %v588 = vsub.s32 0, %v587
        %v589 = vsel %vm583, %v588, %v587
        %vm590 = vcmp.lt.s32.totalorder %v456, 0
        %v591 = vsub.s32 0, %v456
        %v592 = vsel %vm590, %v591, %v456
        %v593 = vshrl.u32 %v592, 4
        %v594 = vand.u32 %v592, 15
        %v595 = vsub.s32 0, %v594
        %v596 = vsel %vm590, %v595, %v594
        %vm597 = vcmp.lt.s32.totalorder %v457, 0
        %v598 = vsub.s32 0, %v457
        %v599 = vsel %vm597, %v598, %v457
        %v600 = vshrl.u32 %v599, 4
        %v601 = vand.u32 %v599, 15
        %v602 = vsub.s32 0, %v601
        %v603 = vsel %vm597, %v602, %v601
        %vm604 = vcmp.lt.s32.totalorder %v458, 0
        %v605 = vsub.s32 0, %v458
        %v606 = vsel %vm604, %v605, %v458
        %v607 = vshrl.u32 %v606, 4
        %v608 = vand.u32 %v606, 15
        %v609 = vsub.s32 0, %v608
        %v610 = vsel %vm604, %v609, %v608
        %vm611 = vcmp.lt.s32.totalorder %v459, 0
        %v612 = vsub.s32 0, %v459
        %v613 = vsel %vm611, %v612, %v459
        %v614 = vshrl.u32 %v613, 4
        %v615 = vand.u32 %v613, 15
        %v616 = vsub.s32 0, %v615
        %v617 = vsel %vm611, %v616, %v615
        %vm618 = vcmp.lt.s32.totalorder %v460, 0
        %v619 = vsub.s32 0, %v460
        %v620 = vsel %vm618, %v619, %v460
        %v621 = vshrl.u32 %v620, 4
        %v622 = vand.u32 %v620, 15
        %v623 = vsub.s32 0, %v622
        %v624 = vsel %vm618, %v623, %v622
        %vm625 = vcmp.lt.s32.totalorder %v461, 0
        %v626 = vsub.s32 0, %v461
        %v627 = vsel %vm625, %v626, %v461
        %v628 = vshrl.u32 %v627, 4
        %v629 = vand.u32 %v627, 15
        %v630 = vsub.s32 0, %v629
        %v631 = vsel %vm625, %v630, %v629
        %vm632 = vcmp.lt.s32.totalorder %v462, 0
        %v633 = vsub.s32 0, %v462
        %v634 = vsel %vm632, %v633, %v462
        %v635 = vshrl.u32 %v634, 4
        %v636 = vand.u32 %v634, 15
        %v637 = vsub.s32 0, %v636
        %v638 = vsel %vm632, %v637, %v636
        %vm639 = vcmp.lt.s32.totalorder %v463, 0
        %v640 = vsub.s32 0, %v463
        %v641 = vsel %vm639, %v640, %v463
        %v642 = vshrl.u32 %v641, 4
        %v643 = vand.u32 %v641, 15
        %v644 = vsub.s32 0, %v643
        %v645 = vsel %vm639, %v644, %v643
        %vm646 = vcmp.lt.s32.totalorder %v464, 0
        %v647 = vsub.s32 0, %v464
        %v648 = vsel %vm646, %v647, %v464
        %v649 = vshrl.u32 %v648, 4
        %v650 = vand.u32 %v648, 15
        %v651 = vsub.s32 0, %v650
        %v652 = vsel %vm646, %v651, %v650
        %vm653 = vcmp.lt.s32.totalorder %v465, 0
        %v654 = vsub.s32 0, %v465
        %v655 = vsel %vm653, %v654, %v465
        %v656 = vshrl.u32 %v655, 4
        %v657 = vand.u32 %v655, 15
        %v658 = vsub.s32 0, %v657
        %v659 = vsel %vm653, %v658, %v657
        %vm660 = vcmp.lt.s32.totalorder %v466, 0
        %v661 = vsub.s32 0, %v466
        %v662 = vsel %vm660, %v661, %v466
        %v663 = vshrl.u32 %v662, 4
        %v664 = vand.u32 %v662, 15
        %v665 = vsub.s32 0, %v664
        %v666 = vsel %vm660, %v665, %v664
        %vm667 = vcmp.lt.s32.totalorder %v467, 0
        %v668 = vsub.s32 0, %v467
        %v669 = vsel %vm667, %v668, %v467
        %v670 = vshrl.u32 %v669, 4
        %v671 = vand.u32 %v669, 15
        %v672 = vsub.s32 0, %v671
        %v673 = vsel %vm667, %v672, %v671
        %vm674 = vcmp.lt.s32.totalorder %v468, 0
        %v675 = vsub.s32 0, %v468
        %v676 = vsel %vm674, %v675, %v468
        %v677 = vshrl.u32 %v676, 4
        %v678 = vand.u32 %v676, 15
        %v679 = vsub.s32 0, %v678
        %v680 = vsel %vm674, %v679, %v678
        %vm681 = vcmp.lt.s32.totalorder %v469, 0
        %v682 = vsub.s32 0, %v469
        %v683 = vsel %vm681, %v682, %v469
        %v684 = vshrl.u32 %v683, 4
        %v685 = vand.u32 %v683, 15
        %v686 = vsub.s32 0, %v685
        %v687 = vsel %vm681, %v686, %v685
        %vm688 = vcmp.lt.s32.totalorder %v470, 0
        %v689 = vsub.s32 0, %v470
        %v690 = vsel %vm688, %v689, %v470
        %v691 = vshrl.u32 %v690, 4
        %v692 = vand.u32 %v690, 15
        %v693 = vsub.s32 0, %v692
        %v694 = vsel %vm688, %v693, %v692
        %vm695 = vcmp.ne.s32.totalorder %v477, 0
        %vm696 = vcmp.ne.s32.totalorder %v484, 0
        %vm697 = vcmp.ne.s32.totalorder %v491, 0
        %vm698 = vcmp.ne.s32.totalorder %v498, 0
        %vm699 = vcmp.ne.s32.totalorder %v505, 0
        %vm700 = vcmp.ne.s32.totalorder %v512, 0
        %vm701 = vcmp.ne.s32.totalorder %v519, 0
        %vm702 = vcmp.ne.s32.totalorder %v526, 0
        %vm703 = vcmp.ne.s32.totalorder %v533, 0
        %vm704 = vcmp.ne.s32.totalorder %v540, 0
        %vm705 = vcmp.ne.s32.totalorder %v547, 0
        %vm706 = vcmp.ne.s32.totalorder %v554, 0
        %vm707 = vcmp.ne.s32.totalorder %v561, 0
        %vm708 = vcmp.ne.s32.totalorder %v568, 0
        %vm709 = vcmp.ne.s32.totalorder %v575, 0
        %vm710 = vcmp.ne.s32.totalorder %v582, 0
        %vm711 = vcmp.ne.s32.totalorder %v589, 0
        %vm712 = vcmp.ne.s32.totalorder %v596, 0
        %vm713 = vcmp.ne.s32.totalorder %v603, 0
        %vm714 = vcmp.ne.s32.totalorder %v610, 0
        %vm715 = vcmp.ne.s32.totalorder %v617, 0
        %vm716 = vcmp.ne.s32.totalorder %v624, 0
        %vm717 = vcmp.ne.s32.totalorder %v631, 0
        %vm718 = vcmp.ne.s32.totalorder %v638, 0
        %vm719 = vcmp.ne.s32.totalorder %v645, 0
        %vm720 = vcmp.ne.s32.totalorder %v652, 0
        %vm721 = vcmp.ne.s32.totalorder %v659, 0
        %vm722 = vcmp.ne.s32.totalorder %v666, 0
        %vm723 = vcmp.ne.s32.totalorder %v673, 0
        %vm724 = vcmp.ne.s32.totalorder %v680, 0
        %vm725 = vcmp.ne.s32.totalorder %v687, 0
        %vm726 = vcmp.ne.s32.totalorder %v694, 0
        %vm727 = vcmp.lt.s32.totalorder %v477, 0
        %vm728 = vcmp.lt.s32.totalorder %v484, 0
        %vm729 = vcmp.lt.s32.totalorder %v491, 0
        %vm730 = vcmp.lt.s32.totalorder %v498, 0
        %vm731 = vcmp.lt.s32.totalorder %v505, 0
        %vm732 = vcmp.lt.s32.totalorder %v512, 0
        %vm733 = vcmp.lt.s32.totalorder %v519, 0
        %vm734 = vcmp.lt.s32.totalorder %v526, 0
        %vm735 = vcmp.lt.s32.totalorder %v533, 0
        %vm736 = vcmp.lt.s32.totalorder %v540, 0
        %vm737 = vcmp.lt.s32.totalorder %v547, 0
        %vm738 = vcmp.lt.s32.totalorder %v554, 0
        %vm739 = vcmp.lt.s32.totalorder %v561, 0
        %vm740 = vcmp.lt.s32.totalorder %v568, 0
        %vm741 = vcmp.lt.s32.totalorder %v575, 0
        %vm742 = vcmp.lt.s32.totalorder %v582, 0
        %vm743 = vcmp.lt.s32.totalorder %v589, 0
        %vm744 = vcmp.lt.s32.totalorder %v596, 0
        %vm745 = vcmp.lt.s32.totalorder %v603, 0
        %vm746 = vcmp.lt.s32.totalorder %v610, 0
        %vm747 = vcmp.lt.s32.totalorder %v617, 0
        %vm748 = vcmp.lt.s32.totalorder %v624, 0
        %vm749 = vcmp.lt.s32.totalorder %v631, 0
        %vm750 = vcmp.lt.s32.totalorder %v638, 0
        %vm751 = vcmp.lt.s32.totalorder %v645, 0
        %vm752 = vcmp.lt.s32.totalorder %v652, 0
        %vm753 = vcmp.lt.s32.totalorder %v659, 0
        %vm754 = vcmp.lt.s32.totalorder %v666, 0
        %vm755 = vcmp.lt.s32.totalorder %v673, 0
        %vm756 = vcmp.lt.s32.totalorder %v680, 0
        %vm757 = vcmp.lt.s32.totalorder %v687, 0
        %vm758 = vcmp.lt.s32.totalorder %v694, 0
        %vm759 = vmand %vm727, %vm695
        %vm760 = vmand %vm728, %vm696
        %vm761 = vmand %vm729, %vm697
        %vm762 = vmand %vm730, %vm698
        %vm763 = vmand %vm731, %vm699
        %vm764 = vmand %vm732, %vm700
        %vm765 = vmand %vm733, %vm701
        %vm766 = vmand %vm734, %vm702
        %vm767 = vmand %vm735, %vm703
        %vm768 = vmand %vm736, %vm704
        %vm769 = vmand %vm737, %vm705
        %vm770 = vmand %vm738, %vm706
        %vm771 = vmand %vm739, %vm707
        %vm772 = vmand %vm740, %vm708
        %vm773 = vmand %vm741, %vm709
        %vm774 = vmand %vm742, %vm710
        %vm775 = vmand %vm743, %vm711
        %vm776 = vmand %vm744, %vm712
        %vm777 = vmand %vm745, %vm713
        %vm778 = vmand %vm746, %vm714
        %vm779 = vmand %vm747, %vm715
        %vm780 = vmand %vm748, %vm716
        %vm781 = vmand %vm749, %vm717
        %vm782 = vmand %vm750, %vm718
        %vm783 = vmand %vm751, %vm719
        %vm784 = vmand %vm752, %vm720
        %vm785 = vmand %vm753, %vm721
        %vm786 = vmand %vm754, %vm722
        %vm787 = vmand %vm755, %vm723
        %vm788 = vmand %vm756, %vm724
        %vm789 = vmand %vm757, %vm725
        %vm790 = vmand %vm758, %vm726
        %v791 = vadd.s32 %v477, 16
        %v792 = vadd.s32 %v484, 16
        %v793 = vadd.s32 %v491, 16
        %v794 = vadd.s32 %v498, 16
        %v795 = vadd.s32 %v505, 16
        %v796 = vadd.s32 %v512, 16
        %v797 = vadd.s32 %v519, 16
        %v798 = vadd.s32 %v526, 16
        %v799 = vadd.s32 %v533, 16
        %v800 = vadd.s32 %v540, 16
        %v801 = vadd.s32 %v547, 16
        %v802 = vadd.s32 %v554, 16
        %v803 = vadd.s32 %v561, 16
        %v804 = vadd.s32 %v568, 16
        %v805 = vadd.s32 %v575, 16
        %v806 = vadd.s32 %v582, 16
        %v807 = vadd.s32 %v589, 16
        %v808 = vadd.s32 %v596, 16
        %v809 = vadd.s32 %v603, 16
        %v810 = vadd.s32 %v610, 16
        %v811 = vadd.s32 %v617, 16
        %v812 = vadd.s32 %v624, 16
        %v813 = vadd.s32 %v631, 16
        %v814 = vadd.s32 %v638, 16
        %v815 = vadd.s32 %v645, 16
        %v816 = vadd.s32 %v652, 16
        %v817 = vadd.s32 %v659, 16
        %v818 = vadd.s32 %v666, 16
        %v819 = vadd.s32 %v673, 16
        %v820 = vadd.s32 %v680, 16
        %v821 = vadd.s32 %v687, 16
        %v822 = vadd.s32 %v694, 16
        %v823 = vsel %vm759, %v791, %v477
        %v824 = vsel %vm760, %v792, %v484
        %v825 = vsel %vm761, %v793, %v491
        %v826 = vsel %vm762, %v794, %v498
        %v827 = vsel %vm763, %v795, %v505
        %v828 = vsel %vm764, %v796, %v512
        %v829 = vsel %vm765, %v797, %v519
        %v830 = vsel %vm766, %v798, %v526
        %v831 = vsel %vm767, %v799, %v533
        %v832 = vsel %vm768, %v800, %v540
        %v833 = vsel %vm769, %v801, %v547
        %v834 = vsel %vm770, %v802, %v554
        %v835 = vsel %vm771, %v803, %v561
        %v836 = vsel %vm772, %v804, %v568
        %v837 = vsel %vm773, %v805, %v575
        %v838 = vsel %vm774, %v806, %v582
        %v839 = vsel %vm775, %v807, %v589
        %v840 = vsel %vm776, %v808, %v596
        %v841 = vsel %vm777, %v809, %v603
        %v842 = vsel %vm778, %v810, %v610
        %v843 = vsel %vm779, %v811, %v617
        %v844 = vsel %vm780, %v812, %v624
        %v845 = vsel %vm781, %v813, %v631
        %v846 = vsel %vm782, %v814, %v638
        %v847 = vsel %vm783, %v815, %v645
        %v848 = vsel %vm784, %v816, %v652
        %v849 = vsel %vm785, %v817, %v659
        %v850 = vsel %vm786, %v818, %v666
        %v851 = vsel %vm787, %v819, %v673
        %v852 = vsel %vm788, %v820, %v680
        %v853 = vsel %vm789, %v821, %v687
        %v854 = vsel %vm790, %v822, %v694
        %vm855 = vcmp.ne.s32.totalorder %v823, 15
        %vm856 = vcmp.ne.s32.totalorder %v824, 15
        %vm857 = vcmp.ne.s32.totalorder %v825, 15
        %vm858 = vcmp.ne.s32.totalorder %v826, 15
        %vm859 = vcmp.ne.s32.totalorder %v827, 15
        %vm860 = vcmp.ne.s32.totalorder %v828, 15
        %vm861 = vcmp.ne.s32.totalorder %v829, 15
        %vm862 = vcmp.ne.s32.totalorder %v830, 15
        %vm863 = vcmp.ne.s32.totalorder %v831, 15
        %vm864 = vcmp.ne.s32.totalorder %v832, 15
        %vm865 = vcmp.ne.s32.totalorder %v833, 15
        %vm866 = vcmp.ne.s32.totalorder %v834, 15
        %vm867 = vcmp.ne.s32.totalorder %v835, 15
        %vm868 = vcmp.ne.s32.totalorder %v836, 15
        %vm869 = vcmp.ne.s32.totalorder %v837, 15
        %vm870 = vcmp.ne.s32.totalorder %v838, 15
        %vm871 = vcmp.ne.s32.totalorder %v839, 15
        %vm872 = vcmp.ne.s32.totalorder %v840, 15
        %vm873 = vcmp.ne.s32.totalorder %v841, 15
        %vm874 = vcmp.ne.s32.totalorder %v842, 15
        %vm875 = vcmp.ne.s32.totalorder %v843, 15
        %vm876 = vcmp.ne.s32.totalorder %v844, 15
        %vm877 = vcmp.ne.s32.totalorder %v845, 15
        %vm878 = vcmp.ne.s32.totalorder %v846, 15
        %vm879 = vcmp.ne.s32.totalorder %v847, 15
        %vm880 = vcmp.ne.s32.totalorder %v848, 15
        %vm881 = vcmp.ne.s32.totalorder %v849, 15
        %vm882 = vcmp.ne.s32.totalorder %v850, 15
        %vm883 = vcmp.ne.s32.totalorder %v851, 15
        %vm884 = vcmp.ne.s32.totalorder %v852, 15
        %vm885 = vcmp.ne.s32.totalorder %v853, 15
        %vm886 = vcmp.ne.s32.totalorder %v854, 15
        %v887 = vsel %vm855, 1, 0
        %v888 = vsel %vm856, 1, 0
        %v889 = vsel %vm857, 1, 0
        %v890 = vsel %vm858, 1, 0
        %v891 = vsel %vm859, 1, 0
        %v892 = vsel %vm860, 1, 0
        %v893 = vsel %vm861, 1, 0
        %v894 = vsel %vm862, 1, 0
        %v895 = vsel %vm863, 1, 0
        %v896 = vsel %vm864, 1, 0
        %v897 = vsel %vm865, 1, 0
        %v898 = vsel %vm866, 1, 0
        %v899 = vsel %vm867, 1, 0
        %v900 = vsel %vm868, 1, 0
        %v901 = vsel %vm869, 1, 0
        %v902 = vsel %vm870, 1, 0
        %v903 = vsel %vm871, 1, 0
        %v904 = vsel %vm872, 1, 0
        %v905 = vsel %vm873, 1, 0
        %v906 = vsel %vm874, 1, 0
        %v907 = vsel %vm875, 1, 0
        %v908 = vsel %vm876, 1, 0
        %v909 = vsel %vm877, 1, 0
        %v910 = vsel %vm878, 1, 0
        %v911 = vsel %vm879, 1, 0
        %v912 = vsel %vm880, 1, 0
        %v913 = vsel %vm881, 1, 0
        %v914 = vsel %vm882, 1, 0
        %v915 = vsel %vm883, 1, 0
        %v916 = vsel %vm884, 1, 0
        %v917 = vsel %vm885, 1, 0
        %v918 = vsel %vm886, 1, 0
        %vm919 = vcmp.eq.s32.totalorder %v887, 1
        %vm920 = vcmp.eq.s32.totalorder %v888, 1
        %vm921 = vcmp.eq.s32.totalorder %v889, 1
        %vm922 = vcmp.eq.s32.totalorder %v890, 1
        %vm923 = vcmp.eq.s32.totalorder %v891, 1
        %vm924 = vcmp.eq.s32.totalorder %v892, 1
        %vm925 = vcmp.eq.s32.totalorder %v893, 1
        %vm926 = vcmp.eq.s32.totalorder %v894, 1
        %vm927 = vcmp.eq.s32.totalorder %v895, 1
        %vm928 = vcmp.eq.s32.totalorder %v896, 1
        %vm929 = vcmp.eq.s32.totalorder %v897, 1
        %vm930 = vcmp.eq.s32.totalorder %v898, 1
        %vm931 = vcmp.eq.s32.totalorder %v899, 1
        %vm932 = vcmp.eq.s32.totalorder %v900, 1
        %vm933 = vcmp.eq.s32.totalorder %v901, 1
        %vm934 = vcmp.eq.s32.totalorder %v902, 1
        %vm935 = vcmp.eq.s32.totalorder %v903, 1
        %vm936 = vcmp.eq.s32.totalorder %v904, 1
        %vm937 = vcmp.eq.s32.totalorder %v905, 1
        %vm938 = vcmp.eq.s32.totalorder %v906, 1
        %vm939 = vcmp.eq.s32.totalorder %v907, 1
        %vm940 = vcmp.eq.s32.totalorder %v908, 1
        %vm941 = vcmp.eq.s32.totalorder %v909, 1
        %vm942 = vcmp.eq.s32.totalorder %v910, 1
        %vm943 = vcmp.eq.s32.totalorder %v911, 1
        %vm944 = vcmp.eq.s32.totalorder %v912, 1
        %vm945 = vcmp.eq.s32.totalorder %v913, 1
        %vm946 = vcmp.eq.s32.totalorder %v914, 1
        %vm947 = vcmp.eq.s32.totalorder %v915, 1
        %vm948 = vcmp.eq.s32.totalorder %v916, 1
        %vm949 = vcmp.eq.s32.totalorder %v917, 1
        %vm950 = vcmp.eq.s32.totalorder %v918, 1
        %v951 = vsel %vm919, %v406, 0.0
        %v952 = vsel %vm920, %v407, 0.0
        %v953 = vsel %vm921, %v408, 0.0
        %v954 = vsel %vm922, %v409, 0.0
        %v955 = vsel %vm923, %v410, 0.0
        %v956 = vsel %vm924, %v411, 0.0
        %v957 = vsel %vm925, %v412, 0.0
        %v958 = vsel %vm926, %v413, 0.0
        %v959 = vsel %vm927, %v414, 0.0
        %v960 = vsel %vm928, %v415, 0.0
        %v961 = vsel %vm929, %v416, 0.0
        %v962 = vsel %vm930, %v417, 0.0
        %v963 = vsel %vm931, %v418, 0.0
        %v964 = vsel %vm932, %v419, 0.0
        %v965 = vsel %vm933, %v420, 0.0
        %v966 = vsel %vm934, %v421, 0.0
        %v967 = vsel %vm935, %v422, 0.0
        %v968 = vsel %vm936, %v423, 0.0
        %v969 = vsel %vm937, %v424, 0.0
        %v970 = vsel %vm938, %v425, 0.0
        %v971 = vsel %vm939, %v426, 0.0
        %v972 = vsel %vm940, %v427, 0.0
        %v973 = vsel %vm941, %v428, 0.0
        %v974 = vsel %vm942, %v429, 0.0
        %v975 = vsel %vm943, %v430, 0.0
        %v976 = vsel %vm944, %v431, 0.0
        %v977 = vsel %vm945, %v432, 0.0
        %v978 = vsel %vm946, %v433, 0.0
        %v979 = vsel %vm947, %v434, 0.0
        %v980 = vsel %vm948, %v435, 0.0
        %v981 = vsel %vm949, %v436, 0.0
        %v982 = vsel %vm950, %v437, 0.0
        %vm983 = vcmp.ne.s32.totalorder %v823, 0
        %vm984 = vcmp.ne.s32.totalorder %v824, 0
        %vm985 = vcmp.ne.s32.totalorder %v825, 0
        %vm986 = vcmp.ne.s32.totalorder %v826, 0
        %vm987 = vcmp.ne.s32.totalorder %v827, 0
        %vm988 = vcmp.ne.s32.totalorder %v828, 0
        %vm989 = vcmp.ne.s32.totalorder %v829, 0
        %vm990 = vcmp.ne.s32.totalorder %v830, 0
        %vm991 = vcmp.ne.s32.totalorder %v831, 0
        %vm992 = vcmp.ne.s32.totalorder %v832, 0
        %vm993 = vcmp.ne.s32.totalorder %v833, 0
        %vm994 = vcmp.ne.s32.totalorder %v834, 0
        %vm995 = vcmp.ne.s32.totalorder %v835, 0
        %vm996 = vcmp.ne.s32.totalorder %v836, 0
        %vm997 = vcmp.ne.s32.totalorder %v837, 0
        %vm998 = vcmp.ne.s32.totalorder %v838, 0
        %vm999 = vcmp.ne.s32.totalorder %v839, 0
        %vm1000 = vcmp.ne.s32.totalorder %v840, 0
        %vm1001 = vcmp.ne.s32.totalorder %v841, 0
        %vm1002 = vcmp.ne.s32.totalorder %v842, 0
        %vm1003 = vcmp.ne.s32.totalorder %v843, 0
        %vm1004 = vcmp.ne.s32.totalorder %v844, 0
        %vm1005 = vcmp.ne.s32.totalorder %v845, 0
        %vm1006 = vcmp.ne.s32.totalorder %v846, 0
        %vm1007 = vcmp.ne.s32.totalorder %v847, 0
        %vm1008 = vcmp.ne.s32.totalorder %v848, 0
        %vm1009 = vcmp.ne.s32.totalorder %v849, 0
        %vm1010 = vcmp.ne.s32.totalorder %v850, 0
        %vm1011 = vcmp.ne.s32.totalorder %v851, 0
        %vm1012 = vcmp.ne.s32.totalorder %v852, 0
        %vm1013 = vcmp.ne.s32.totalorder %v853, 0
        %vm1014 = vcmp.ne.s32.totalorder %v854, 0
        %v1015 = vsel %vm983, 1, 0
        %v1016 = vsel %vm984, 1, 0
        %v1017 = vsel %vm985, 1, 0
        %v1018 = vsel %vm986, 1, 0
        %v1019 = vsel %vm987, 1, 0
        %v1020 = vsel %vm988, 1, 0
        %v1021 = vsel %vm989, 1, 0
        %v1022 = vsel %vm990, 1, 0
        %v1023 = vsel %vm991, 1, 0
        %v1024 = vsel %vm992, 1, 0
        %v1025 = vsel %vm993, 1, 0
        %v1026 = vsel %vm994, 1, 0
        %v1027 = vsel %vm995, 1, 0
        %v1028 = vsel %vm996, 1, 0
        %v1029 = vsel %vm997, 1, 0
        %v1030 = vsel %vm998, 1, 0
        %v1031 = vsel %vm999, 1, 0
        %v1032 = vsel %vm1000, 1, 0
        %v1033 = vsel %vm1001, 1, 0
        %v1034 = vsel %vm1002, 1, 0
        %v1035 = vsel %vm1003, 1, 0
        %v1036 = vsel %vm1004, 1, 0
        %v1037 = vsel %vm1005, 1, 0
        %v1038 = vsel %vm1006, 1, 0
        %v1039 = vsel %vm1007, 1, 0
        %v1040 = vsel %vm1008, 1, 0
        %v1041 = vsel %vm1009, 1, 0
        %v1042 = vsel %vm1010, 1, 0
        %v1043 = vsel %vm1011, 1, 0
        %v1044 = vsel %vm1012, 1, 0
        %v1045 = vsel %vm1013, 1, 0
        %v1046 = vsel %vm1014, 1, 0
        %vm1047 = vcmp.eq.s32.totalorder %v1015, 1
        %vm1048 = vcmp.eq.s32.totalorder %v1016, 1
        %vm1049 = vcmp.eq.s32.totalorder %v1017, 1
        %vm1050 = vcmp.eq.s32.totalorder %v1018, 1
        %vm1051 = vcmp.eq.s32.totalorder %v1019, 1
        %vm1052 = vcmp.eq.s32.totalorder %v1020, 1
        %vm1053 = vcmp.eq.s32.totalorder %v1021, 1
        %vm1054 = vcmp.eq.s32.totalorder %v1022, 1
        %vm1055 = vcmp.eq.s32.totalorder %v1023, 1
        %vm1056 = vcmp.eq.s32.totalorder %v1024, 1
        %vm1057 = vcmp.eq.s32.totalorder %v1025, 1
        %vm1058 = vcmp.eq.s32.totalorder %v1026, 1
        %vm1059 = vcmp.eq.s32.totalorder %v1027, 1
        %vm1060 = vcmp.eq.s32.totalorder %v1028, 1
        %vm1061 = vcmp.eq.s32.totalorder %v1029, 1
        %vm1062 = vcmp.eq.s32.totalorder %v1030, 1
        %vm1063 = vcmp.eq.s32.totalorder %v1031, 1
        %vm1064 = vcmp.eq.s32.totalorder %v1032, 1
        %vm1065 = vcmp.eq.s32.totalorder %v1033, 1
        %vm1066 = vcmp.eq.s32.totalorder %v1034, 1
        %vm1067 = vcmp.eq.s32.totalorder %v1035, 1
        %vm1068 = vcmp.eq.s32.totalorder %v1036, 1
        %vm1069 = vcmp.eq.s32.totalorder %v1037, 1
        %vm1070 = vcmp.eq.s32.totalorder %v1038, 1
        %vm1071 = vcmp.eq.s32.totalorder %v1039, 1
        %vm1072 = vcmp.eq.s32.totalorder %v1040, 1
        %vm1073 = vcmp.eq.s32.totalorder %v1041, 1
        %vm1074 = vcmp.eq.s32.totalorder %v1042, 1
        %vm1075 = vcmp.eq.s32.totalorder %v1043, 1
        %vm1076 = vcmp.eq.s32.totalorder %v1044, 1
        %vm1077 = vcmp.eq.s32.totalorder %v1045, 1
        %vm1078 = vcmp.eq.s32.totalorder %v1046, 1
        %v1079 = vsel %vm1047, %v406, 0.0
        %v1080 = vsel %vm1048, %v407, 0.0
        %v1081 = vsel %vm1049, %v408, 0.0
        %v1082 = vsel %vm1050, %v409, 0.0
        %v1083 = vsel %vm1051, %v410, 0.0
        %v1084 = vsel %vm1052, %v411, 0.0
        %v1085 = vsel %vm1053, %v412, 0.0
        %v1086 = vsel %vm1054, %v413, 0.0
        %v1087 = vsel %vm1055, %v414, 0.0
        %v1088 = vsel %vm1056, %v415, 0.0
        %v1089 = vsel %vm1057, %v416, 0.0
        %v1090 = vsel %vm1058, %v417, 0.0
        %v1091 = vsel %vm1059, %v418, 0.0
        %v1092 = vsel %vm1060, %v419, 0.0
        %v1093 = vsel %vm1061, %v420, 0.0
        %v1094 = vsel %vm1062, %v421, 0.0
        %v1095 = vsel %vm1063, %v422, 0.0
        %v1096 = vsel %vm1064, %v423, 0.0
        %v1097 = vsel %vm1065, %v424, 0.0
        %v1098 = vsel %vm1066, %v425, 0.0
        %v1099 = vsel %vm1067, %v426, 0.0
        %v1100 = vsel %vm1068, %v427, 0.0
        %v1101 = vsel %vm1069, %v428, 0.0
        %v1102 = vsel %vm1070, %v429, 0.0
        %v1103 = vsel %vm1071, %v430, 0.0
        %v1104 = vsel %vm1072, %v431, 0.0
        %v1105 = vsel %vm1073, %v432, 0.0
        %v1106 = vsel %vm1074, %v433, 0.0
        %v1107 = vsel %vm1075, %v434, 0.0
        %v1108 = vsel %vm1076, %v435, 0.0
        %v1109 = vsel %vm1077, %v436, 0.0
        %v1110 = vsel %vm1078, %v437, 0.0
        %1111 = vst [vmem:[#allocation2] sm:$0xff] 0.0
        %1112 = vst [vmem:[#allocation2 + $0x8] sm:$0xff] 0.0
        %1113 = vst [vmem:[#allocation2 + $0x10] sm:$0xff] 0.0
        %1114 = vst [vmem:[#allocation2 + $0x18] sm:$0xff] 0.0
        %1115 = vst [vmem:[#allocation2 + $0x20] sm:$0xff] 0.0
        %1116 = vst [vmem:[#allocation2 + $0x28] sm:$0xff] 0.0
        %1117 = vst [vmem:[#allocation2 + $0x330] sm:$0xff] 0.0
        %1118 = vst [vmem:[#allocation2 + $0x338] sm:$0xff] 0.0
        %1119 = vst [vmem:[#allocation2 + $0x340] sm:$0xff] 0.0
        %1120 = vst [vmem:[#allocation2 + $0x348] sm:$0xff] 0.0
        %1121 = vst [vmem:[#allocation2 + $0x350] sm:$0xff] 0.0
        %1122 = vst [vmem:[#allocation2 + $0x358] sm:$0xff] 0.0
        %1123 = vst [vmem:[#allocation2 + $0x30] sm:$0x1] 0.0
        %1124 = vst [vmem:[#allocation2 + $0x32f] sm:$0x1] 0.0
        %vm1157 = vcmask 1040384
        %v1158 = vrot.slane %v951, 7
        %v1159 = vrot.slane %v952, 7
        %v1160 = vsel %vm1157, %v1158, %v1159
        %v1161 = vrot.slane %v953, 7
        %v1162 = vsel %vm1157, %v1159, %v1161
        %v1163 = vrot.slane %v954, 7
        %v1164 = vsel %vm1157, %v1161, %v1163
        %v1165 = vrot.slane %v955, 7
        %v1166 = vsel %vm1157, %v1163, %v1165
        %v1167 = vrot.slane %v956, 7
        %v1168 = vsel %vm1157, %v1165, %v1167
        %v1169 = vrot.slane %v957, 7
        %v1170 = vsel %vm1157, %v1167, %v1169
        %v1171 = vrot.slane %v958, 7
        %v1172 = vsel %vm1157, %v1169, %v1171
        %v1173 = vrot.slane %v959, 7
        %v1174 = vsel %vm1157, %v1171, %v1173
        %v1175 = vrot.slane %v960, 7
        %v1176 = vsel %vm1157, %v1173, %v1175
        %v1177 = vrot.slane %v961, 7
        %v1178 = vsel %vm1157, %v1175, %v1177
        %v1179 = vrot.slane %v962, 7
        %v1180 = vsel %vm1157, %v1177, %v1179
        %v1181 = vrot.slane %v963, 7
        %v1182 = vsel %vm1157, %v1179, %v1181
        %v1183 = vrot.slane %v964, 7
        %v1184 = vsel %vm1157, %v1181, %v1183
        %v1185 = vrot.slane %v965, 7
        %v1186 = vsel %vm1157, %v1183, %v1185
        %v1187 = vrot.slane %v966, 7
        %v1188 = vsel %vm1157, %v1185, %v1187
        %v1189 = vrot.slane %v967, 7
        %v1190 = vsel %vm1157, %v1187, %v1189
        %v1191 = vrot.slane %v968, 7
        %v1192 = vsel %vm1157, %v1189, %v1191
        %v1193 = vrot.slane %v969, 7
        %v1194 = vsel %vm1157, %v1191, %v1193
        %v1195 = vrot.slane %v970, 7
        %v1196 = vsel %vm1157, %v1193, %v1195
        %v1197 = vrot.slane %v971, 7
        %v1198 = vsel %vm1157, %v1195, %v1197
        %v1199 = vrot.slane %v972, 7
        %v1200 = vsel %vm1157, %v1197, %v1199
        %v1201 = vrot.slane %v973, 7
        %v1202 = vsel %vm1157, %v1199, %v1201
        %v1203 = vrot.slane %v974, 7
        %v1204 = vsel %vm1157, %v1201, %v1203
        %v1205 = vrot.slane %v975, 7
        %v1206 = vsel %vm1157, %v1203, %v1205
        %v1207 = vrot.slane %v976, 7
        %v1208 = vsel %vm1157, %v1205, %v1207
        %v1209 = vrot.slane %v977, 7
        %v1210 = vsel %vm1157, %v1207, %v1209
        %v1211 = vrot.slane %v978, 7
        %v1212 = vsel %vm1157, %v1209, %v1211
        %v1213 = vrot.slane %v979, 7
        %v1214 = vsel %vm1157, %v1211, %v1213
        %v1215 = vrot.slane %v980, 7
        %v1216 = vsel %vm1157, %v1213, %v1215
        %v1217 = vrot.slane %v981, 7
        %v1218 = vsel %vm1157, %v1215, %v1217
        %v1219 = vrot.slane %v982, 7
        %v1220 = vsel %vm1157, %v1217, %v1219
        %1254 = vst [vmem:[#allocation2 + $0x30] sm:$0xfe] %v1158
        %1255 = vst [vmem:[#allocation2 + $0x48] sm:$0xff] %v1160
        %1256 = vst [vmem:[#allocation2 + $0x60] sm:$0xff] %v1162
        %1257 = vst [vmem:[#allocation2 + $0x78] sm:$0xff] %v1164
        %1258 = vst [vmem:[#allocation2 + $0x90] sm:$0xff] %v1166
        %1259 = vst [vmem:[#allocation2 + $0xa8] sm:$0xff] %v1168
        %1260 = vst [vmem:[#allocation2 + $0xc0] sm:$0xff] %v1170
        %1261 = vst [vmem:[#allocation2 + $0xd8] sm:$0xff] %v1172
        %1262 = vst [vmem:[#allocation2 + $0xf0] sm:$0xff] %v1174
        %1263 = vst [vmem:[#allocation2 + $0x108] sm:$0xff] %v1176
        %1264 = vst [vmem:[#allocation2 + $0x120] sm:$0xff] %v1178
        %1265 = vst [vmem:[#allocation2 + $0x138] sm:$0xff] %v1180
        %1266 = vst [vmem:[#allocation2 + $0x150] sm:$0xff] %v1182
        %1267 = vst [vmem:[#allocation2 + $0x168] sm:$0xff] %v1184
        %1268 = vst [vmem:[#allocation2 + $0x180] sm:$0xff] %v1186
        %1269 = vst [vmem:[#allocation2 + $0x198] sm:$0xff] %v1188
        %1270 = vst [vmem:[#allocation2 + $0x1b0] sm:$0xff] %v1190
        %1271 = vst [vmem:[#allocation2 + $0x1c8] sm:$0xff] %v1192
        %1272 = vst [vmem:[#allocation2 + $0x1e0] sm:$0xff] %v1194
        %1273 = vst [vmem:[#allocation2 + $0x1f8] sm:$0xff] %v1196
        %1274 = vst [vmem:[#allocation2 + $0x210] sm:$0xff] %v1198
        %1275 = vst [vmem:[#allocation2 + $0x228] sm:$0xff] %v1200
        %1276 = vst [vmem:[#allocation2 + $0x240] sm:$0xff] %v1202
        %1277 = vst [vmem:[#allocation2 + $0x258] sm:$0xff] %v1204
        %1278 = vst [vmem:[#allocation2 + $0x270] sm:$0xff] %v1206
        %1279 = vst [vmem:[#allocation2 + $0x288] sm:$0xff] %v1208
        %1280 = vst [vmem:[#allocation2 + $0x2a0] sm:$0xff] %v1210
        %1281 = vst [vmem:[#allocation2 + $0x2b8] sm:$0xff] %v1212
        %1282 = vst [vmem:[#allocation2 + $0x2d0] sm:$0xff] %v1214
        %1283 = vst [vmem:[#allocation2 + $0x2e8] sm:$0xff] %v1216
        %1284 = vst [vmem:[#allocation2 + $0x300] sm:$0xff] %v1218
        %1285 = vst [vmem:[#allocation2 + $0x318] sm:$0xff] %v1220
        %1286 = vst [vmem:[#allocation2 + $0x330] sm:$0x1] %v1219
        %1287 = vst [vmem:[#allocation2 + $0x38] sm:$0xff] %v406
        %1288 = vst [vmem:[#allocation2 + $0x50] sm:$0xff] %v407
        %1289 = vst [vmem:[#allocation2 + $0x68] sm:$0xff] %v408
        %1290 = vst [vmem:[#allocation2 + $0x80] sm:$0xff] %v409
        %1291 = vst [vmem:[#allocation2 + $0x98] sm:$0xff] %v410
        %1292 = vst [vmem:[#allocation2 + $0xb0] sm:$0xff] %v411
        %1293 = vst [vmem:[#allocation2 + $0xc8] sm:$0xff] %v412
        %1294 = vst [vmem:[#allocation2 + $0xe0] sm:$0xff] %v413
        %1295 = vst [vmem:[#allocation2 + $0xf8] sm:$0xff] %v414
        %1296 = vst [vmem:[#allocation2 + $0x110] sm:$0xff] %v415
        %1297 = vst [vmem:[#allocation2 + $0x128] sm:$0xff] %v416
        %1298 = vst [vmem:[#allocation2 + $0x140] sm:$0xff] %v417
        %1299 = vst [vmem:[#allocation2 + $0x158] sm:$0xff] %v418
        %1300 = vst [vmem:[#allocation2 + $0x170] sm:$0xff] %v419
        %1301 = vst [vmem:[#allocation2 + $0x188] sm:$0xff] %v420
        %1302 = vst [vmem:[#allocation2 + $0x1a0] sm:$0xff] %v421
        %1303 = vst [vmem:[#allocation2 + $0x1b8] sm:$0xff] %v422
        %1304 = vst [vmem:[#allocation2 + $0x1d0] sm:$0xff] %v423
        %1305 = vst [vmem:[#allocation2 + $0x1e8] sm:$0xff] %v424
        %1306 = vst [vmem:[#allocation2 + $0x200] sm:$0xff] %v425
        %1307 = vst [vmem:[#allocation2 + $0x218] sm:$0xff] %v426
        %1308 = vst [vmem:[#allocation2 + $0x230] sm:$0xff] %v427
        %1309 = vst [vmem:[#allocation2 + $0x248] sm:$0xff] %v428
        %1310 = vst [vmem:[#allocation2 + $0x260] sm:$0xff] %v429
        %1311 = vst [vmem:[#allocation2 + $0x278] sm:$0xff] %v430
        %1312 = vst [vmem:[#allocation2 + $0x290] sm:$0xff] %v431
        %1313 = vst [vmem:[#allocation2 + $0x2a8] sm:$0xff] %v432
        %1314 = vst [vmem:[#allocation2 + $0x2c0] sm:$0xff] %v433
        %1315 = vst [vmem:[#allocation2 + $0x2d8] sm:$0xff] %v434
        %1316 = vst [vmem:[#allocation2 + $0x2f0] sm:$0xff] %v435
        %1317 = vst [vmem:[#allocation2 + $0x308] sm:$0xff] %v436
        %1318 = vst [vmem:[#allocation2 + $0x320] sm:$0xff] %v437
        %vm1351 = vcmask 1046528
        %v1352 = vrot.slane %v1079, 1
        %v1353 = vrot.slane %v1080, 1
        %v1354 = vsel %vm1351, %v1352, %v1353
        %v1355 = vrot.slane %v1081, 1
        %v1356 = vsel %vm1351, %v1353, %v1355
        %v1357 = vrot.slane %v1082, 1
        %v1358 = vsel %vm1351, %v1355, %v1357
        %v1359 = vrot.slane %v1083, 1
        %v1360 = vsel %vm1351, %v1357, %v1359
        %v1361 = vrot.slane %v1084, 1
        %v1362 = vsel %vm1351, %v1359, %v1361
        %v1363 = vrot.slane %v1085, 1
        %v1364 = vsel %vm1351, %v1361, %v1363
        %v1365 = vrot.slane %v1086, 1
        %v1366 = vsel %vm1351, %v1363, %v1365
        %v1367 = vrot.slane %v1087, 1
        %v1368 = vsel %vm1351, %v1365, %v1367
        %v1369 = vrot.slane %v1088, 1
        %v1370 = vsel %vm1351, %v1367, %v1369
        %v1371 = vrot.slane %v1089, 1
        %v1372 = vsel %vm1351, %v1369, %v1371
        %v1373 = vrot.slane %v1090, 1
        %v1374 = vsel %vm1351, %v1371, %v1373
        %v1375 = vrot.slane %v1091, 1
        %v1376 = vsel %vm1351, %v1373, %v1375
        %v1377 = vrot.slane %v1092, 1
        %v1378 = vsel %vm1351, %v1375, %v1377
        %v1379 = vrot.slane %v1093, 1
        %v1380 = vsel %vm1351, %v1377, %v1379
        %v1381 = vrot.slane %v1094, 1
        %v1382 = vsel %vm1351, %v1379, %v1381
        %v1383 = vrot.slane %v1095, 1
        %v1384 = vsel %vm1351, %v1381, %v1383
        %v1385 = vrot.slane %v1096, 1
        %v1386 = vsel %vm1351, %v1383, %v1385
        %v1387 = vrot.slane %v1097, 1
        %v1388 = vsel %vm1351, %v1385, %v1387
        %v1389 = vrot.slane %v1098, 1
        %v1390 = vsel %vm1351, %v1387, %v1389
        %v1391 = vrot.slane %v1099, 1
        %v1392 = vsel %vm1351, %v1389, %v1391
        %v1393 = vrot.slane %v1100, 1
        %v1394 = vsel %vm1351, %v1391, %v1393
        %v1395 = vrot.slane %v1101, 1
        %v1396 = vsel %vm1351, %v1393, %v1395
        %v1397 = vrot.slane %v1102, 1
        %v1398 = vsel %vm1351, %v1395, %v1397
        %v1399 = vrot.slane %v1103, 1
        %v1400 = vsel %vm1351, %v1397, %v1399
        %v1401 = vrot.slane %v1104, 1
        %v1402 = vsel %vm1351, %v1399, %v1401
        %v1403 = vrot.slane %v1105, 1
        %v1404 = vsel %vm1351, %v1401, %v1403
        %v1405 = vrot.slane %v1106, 1
        %v1406 = vsel %vm1351, %v1403, %v1405
        %v1407 = vrot.slane %v1107, 1
        %v1408 = vsel %vm1351, %v1405, %v1407
        %v1409 = vrot.slane %v1108, 1
        %v1410 = vsel %vm1351, %v1407, %v1409
        %v1411 = vrot.slane %v1109, 1
        %v1412 = vsel %vm1351, %v1409, %v1411
        %v1413 = vrot.slane %v1110, 1
        %v1414 = vsel %vm1351, %v1411, %v1413
        %1448 = vst [vmem:[#allocation2 + $0x28] sm:$0x80] %v1352
        %1449 = vst [vmem:[#allocation2 + $0x40] sm:$0xff] %v1354
        %1450 = vst [vmem:[#allocation2 + $0x58] sm:$0xff] %v1356
        %1451 = vst [vmem:[#allocation2 + $0x70] sm:$0xff] %v1358
        %1452 = vst [vmem:[#allocation2 + $0x88] sm:$0xff] %v1360
        %1453 = vst [vmem:[#allocation2 + $0xa0] sm:$0xff] %v1362
        %1454 = vst [vmem:[#allocation2 + $0xb8] sm:$0xff] %v1364
        %1455 = vst [vmem:[#allocation2 + $0xd0] sm:$0xff] %v1366
        %1456 = vst [vmem:[#allocation2 + $0xe8] sm:$0xff] %v1368
        %1457 = vst [vmem:[#allocation2 + $0x100] sm:$0xff] %v1370
        %1458 = vst [vmem:[#allocation2 + $0x118] sm:$0xff] %v1372
        %1459 = vst [vmem:[#allocation2 + $0x130] sm:$0xff] %v1374
        %1460 = vst [vmem:[#allocation2 + $0x148] sm:$0xff] %v1376
        %1461 = vst [vmem:[#allocation2 + $0x160] sm:$0xff] %v1378
        %1462 = vst [vmem:[#allocation2 + $0x178] sm:$0xff] %v1380
        %1463 = vst [vmem:[#allocation2 + $0x190] sm:$0xff] %v1382
        %1464 = vst [vmem:[#allocation2 + $0x1a8] sm:$0xff] %v1384
        %1465 = vst [vmem:[#allocation2 + $0x1c0] sm:$0xff] %v1386
        %1466 = vst [vmem:[#allocation2 + $0x1d8] sm:$0xff] %v1388
        %1467 = vst [vmem:[#allocation2 + $0x1f0] sm:$0xff] %v1390
        %1468 = vst [vmem:[#allocation2 + $0x208] sm:$0xff] %v1392
        %1469 = vst [vmem:[#allocation2 + $0x220] sm:$0xff] %v1394
        %1470 = vst [vmem:[#allocation2 + $0x238] sm:$0xff] %v1396
        %1471 = vst [vmem:[#allocation2 + $0x250] sm:$0xff] %v1398
        %1472 = vst [vmem:[#allocation2 + $0x268] sm:$0xff] %v1400
        %1473 = vst [vmem:[#allocation2 + $0x280] sm:$0xff] %v1402
        %1474 = vst [vmem:[#allocation2 + $0x298] sm:$0xff] %v1404
        %1475 = vst [vmem:[#allocation2 + $0x2b0] sm:$0xff] %v1406
        %1476 = vst [vmem:[#allocation2 + $0x2c8] sm:$0xff] %v1408
        %1477 = vst [vmem:[#allocation2 + $0x2e0] sm:$0xff] %v1410
        %1478 = vst [vmem:[#allocation2 + $0x2f8] sm:$0xff] %v1412
        %1479 = vst [vmem:[#allocation2 + $0x310] sm:$0xff] %v1414
        %1480 = vst [vmem:[#allocation2 + $0x328] sm:$0x7f] %v1413
        %v1481 = vld [vmem:[#allocation2] sm:$0xff]
        %v1482 = vld [vmem:[#allocation2 + $0x8] sm:$0xff]
        %v1483 = vld [vmem:[#allocation2 + $0x10] sm:$0xff]
        %v1484 = vld [vmem:[#allocation2 + $0x18] sm:$0xff]
        %v1485 = vld [vmem:[#allocation2 + $0x20] sm:$0xff]
        %v1486 = vld [vmem:[#allocation2 + $0x28] sm:$0xff]
        %v1487 = vld [vmem:[#allocation2 + $0x30] sm:$0xff]
        %v1488 = vld [vmem:[#allocation2 + $0x38] sm:$0xff]
        %v1489 = vld [vmem:[#allocation2 + $0x40] sm:$0xff]
        %v1490 = vld [vmem:[#allocation2 + $0x48] sm:$0xff]
        %v1491 = vld [vmem:[#allocation2 + $0x50] sm:$0xff]
        %v1492 = vld [vmem:[#allocation2 + $0x58] sm:$0xff]
        %v1493 = vld [vmem:[#allocation2 + $0x60] sm:$0xff]
        %v1494 = vld [vmem:[#allocation2 + $0x68] sm:$0xff]
        %v1495 = vld [vmem:[#allocation2 + $0x70] sm:$0xff]
        %v1496 = vld [vmem:[#allocation2 + $0x78] sm:$0xff]
        %v1497 = vld [vmem:[#allocation2 + $0x80] sm:$0xff]
        %v1498 = vld [vmem:[#allocation2 + $0x88] sm:$0xff]
        %v1499 = vld [vmem:[#allocation2 + $0x90] sm:$0xff]
        %v1500 = vld [vmem:[#allocation2 + $0x98] sm:$0xff]
        %v1501 = vld [vmem:[#allocation2 + $0xa0] sm:$0xff]
        %v1502 = vld [vmem:[#allocation2 + $0xa8] sm:$0xff]
        %v1503 = vld [vmem:[#allocation2 + $0xb0] sm:$0xff]
        %v1504 = vld [vmem:[#allocation2 + $0xb8] sm:$0xff]
        %v1505 = vld [vmem:[#allocation2 + $0xc0] sm:$0xff]
        %v1506 = vld [vmem:[#allocation2 + $0xc8] sm:$0xff]
        %v1507 = vld [vmem:[#allocation2 + $0xd0] sm:$0xff]
        %v1508 = vld [vmem:[#allocation2 + $0xd8] sm:$0xff]
        %v1509 = vld [vmem:[#allocation2 + $0xe0] sm:$0xff]
        %v1510 = vld [vmem:[#allocation2 + $0xe8] sm:$0xff]
        %v1511 = vld [vmem:[#allocation2 + $0xf0] sm:$0xff]
        %v1512 = vld [vmem:[#allocation2 + $0xf8] sm:$0xff]
        %v1513 = vld [vmem:[#allocation2 + $0x100] sm:$0xff]
        %v1514 = vld [vmem:[#allocation2 + $0x108] sm:$0xff]
        %v1515 = vld [vmem:[#allocation2 + $0x110] sm:$0xff]
        %v1516 = vld [vmem:[#allocation2 + $0x118] sm:$0xff]
        %v1517 = vld [vmem:[#allocation2 + $0x120] sm:$0xff]
        %v1518 = vld [vmem:[#allocation2 + $0x128] sm:$0xff]
        %v1519 = vld [vmem:[#allocation2 + $0x130] sm:$0xff]
        %v1520 = vld [vmem:[#allocation2 + $0x138] sm:$0xff]
        %v1521 = vld [vmem:[#allocation2 + $0x140] sm:$0xff]
        %v1522 = vld [vmem:[#allocation2 + $0x148] sm:$0xff]
        %v1523 = vld [vmem:[#allocation2 + $0x150] sm:$0xff]
        %v1524 = vld [vmem:[#allocation2 + $0x158] sm:$0xff]
        %v1525 = vld [vmem:[#allocation2 + $0x160] sm:$0xff]
        %v1526 = vld [vmem:[#allocation2 + $0x168] sm:$0xff]
        %v1527 = vld [vmem:[#allocation2 + $0x170] sm:$0xff]
        %v1528 = vld [vmem:[#allocation2 + $0x178] sm:$0xff]
        %v1529 = vld [vmem:[#allocation2 + $0x180] sm:$0xff]
        %v1530 = vld [vmem:[#allocation2 + $0x188] sm:$0xff]
        %v1531 = vld [vmem:[#allocation2 + $0x190] sm:$0xff]
        %v1532 = vld [vmem:[#allocation2 + $0x198] sm:$0xff]
        %v1533 = vld [vmem:[#allocation2 + $0x1a0] sm:$0xff]
        %v1534 = vld [vmem:[#allocation2 + $0x1a8] sm:$0xff]
        %v1535 = vld [vmem:[#allocation2 + $0x1b0] sm:$0xff]
        %v1536 = vld [vmem:[#allocation2 + $0x1b8] sm:$0xff]
        %v1537 = vld [vmem:[#allocation2 + $0x1c0] sm:$0xff]
        %v1538 = vld [vmem:[#allocation2 + $0x1c8] sm:$0xff]
        %v1539 = vld [vmem:[#allocation2 + $0x1d0] sm:$0xff]
        %v1540 = vld [vmem:[#allocation2 + $0x1d8] sm:$0xff]
        %v1541 = vld [vmem:[#allocation2 + $0x1e0] sm:$0xff]
        %v1542 = vld [vmem:[#allocation2 + $0x1e8] sm:$0xff]
        %v1543 = vld [vmem:[#allocation2 + $0x1f0] sm:$0xff]
        %v1544 = vld [vmem:[#allocation2 + $0x1f8] sm:$0xff]
        %v1545 = vld [vmem:[#allocation2 + $0x200] sm:$0xff]
        %v1546 = vld [vmem:[#allocation2 + $0x208] sm:$0xff]
        %v1547 = vld [vmem:[#allocation2 + $0x210] sm:$0xff]
        %v1548 = vld [vmem:[#allocation2 + $0x218] sm:$0xff]
        %v1549 = vld [vmem:[#allocation2 + $0x220] sm:$0xff]
        %v1550 = vld [vmem:[#allocation2 + $0x228] sm:$0xff]
        %v1551 = vld [vmem:[#allocation2 + $0x230] sm:$0xff]
        %v1552 = vld [vmem:[#allocation2 + $0x238] sm:$0xff]
        %v1553 = vld [vmem:[#allocation2 + $0x240] sm:$0xff]
        %v1554 = vld [vmem:[#allocation2 + $0x248] sm:$0xff]
        %v1555 = vld [vmem:[#allocation2 + $0x250] sm:$0xff]
        %v1556 = vld [vmem:[#allocation2 + $0x258] sm:$0xff]
        %v1557 = vld [vmem:[#allocation2 + $0x260] sm:$0xff]
        %v1558 = vld [vmem:[#allocation2 + $0x268] sm:$0xff]
        %v1559 = vld [vmem:[#allocation2 + $0x270] sm:$0xff]
        %v1560 = vld [vmem:[#allocation2 + $0x278] sm:$0xff]
        %v1561 = vld [vmem:[#allocation2 + $0x280] sm:$0xff]
        %v1562 = vld [vmem:[#allocation2 + $0x288] sm:$0xff]
        %v1563 = vld [vmem:[#allocation2 + $0x290] sm:$0xff]
        %v1564 = vld [vmem:[#allocation2 + $0x298] sm:$0xff]
        %v1565 = vld [vmem:[#allocation2 + $0x2a0] sm:$0xff]
        %v1566 = vld [vmem:[#allocation2 + $0x2a8] sm:$0xff]
        %v1567 = vld [vmem:[#allocation2 + $0x2b0] sm:$0xff]
        %v1568 = vld [vmem:[#allocation2 + $0x2b8] sm:$0xff]
        %v1569 = vld [vmem:[#allocation2 + $0x2c0] sm:$0xff]
        %v1570 = vld [vmem:[#allocation2 + $0x2c8] sm:$0xff]
        %v1571 = vld [vmem:[#allocation2 + $0x2d0] sm:$0xff]
        %v1572 = vld [vmem:[#allocation2 + $0x2d8] sm:$0xff]
        %v1573 = vld [vmem:[#allocation2 + $0x2e0] sm:$0xff]
        %v1574 = vld [vmem:[#allocation2 + $0x2e8] sm:$0xff]
        %v1575 = vld [vmem:[#allocation2 + $0x2f0] sm:$0xff]
        %v1576 = vld [vmem:[#allocation2 + $0x2f8] sm:$0xff]
        %v1577 = vld [vmem:[#allocation9] sm:$0xff]
        %v1578 = vld [vmem:[#allocation9 + $0x8] sm:$0xff]
        %v1579 = vld [vmem:[#allocation9 + $0x10] sm:$0xff]
        %v1580 = vld [vmem:[#allocation9 + $0x18] sm:$0xff]
        %v1581 = vld [vmem:[#allocation9 + $0x20] sm:$0xff]
        %v1582 = vld [vmem:[#allocation9 + $0x28] sm:$0xff]
        %v1583 = vld [vmem:[#allocation9 + $0x30] sm:$0xff]
        %v1584 = vld [vmem:[#allocation9 + $0x38] sm:$0xff]
        %v1585 = vld [vmem:[#allocation9 + $0x40] sm:$0xff]
        %v1586 = vld [vmem:[#allocation9 + $0x48] sm:$0xff]
        %v1587 = vld [vmem:[#allocation9 + $0x50] sm:$0xff]
        %v1588 = vld [vmem:[#allocation9 + $0x58] sm:$0xff]
        %v1589 = vld [vmem:[#allocation9 + $0x60] sm:$0xff]
        %v1590 = vld [vmem:[#allocation9 + $0x68] sm:$0xff]
        %v1591 = vld [vmem:[#allocation9 + $0x70] sm:$0xff]
        %v1592 = vld [vmem:[#allocation9 + $0x78] sm:$0xff]
        %v1593 = vld [vmem:[#allocation9 + $0x80] sm:$0xff]
        %v1594 = vld [vmem:[#allocation9 + $0x88] sm:$0xff]
        %v1595 = vld [vmem:[#allocation9 + $0x90] sm:$0xff]
        %v1596 = vld [vmem:[#allocation9 + $0x98] sm:$0xff]
        %v1597 = vld [vmem:[#allocation9 + $0xa0] sm:$0xff]
        %v1598 = vld [vmem:[#allocation9 + $0xa8] sm:$0xff]
        %v1599 = vld [vmem:[#allocation9 + $0xb0] sm:$0xff]
        %v1600 = vld [vmem:[#allocation9 + $0xb8] sm:$0xff]
        %v1601 = vld [vmem:[#allocation9 + $0xc0] sm:$0xff]
        %v1602 = vld [vmem:[#allocation9 + $0xc8] sm:$0xff]
        %v1603 = vld [vmem:[#allocation9 + $0xd0] sm:$0xff]
        %v1604 = vld [vmem:[#allocation9 + $0xd8] sm:$0xff]
        %v1605 = vld [vmem:[#allocation9 + $0xe0] sm:$0xff]
        %v1606 = vld [vmem:[#allocation9 + $0xe8] sm:$0xff]
        %v1607 = vld [vmem:[#allocation9 + $0xf0] sm:$0xff]
        %v1608 = vld [vmem:[#allocation9 + $0xf8] sm:$0xff]
        %v1609 = vld [vmem:[#allocation9 + $0x100] sm:$0xff]
        %v1610 = vld [vmem:[#allocation9 + $0x108] sm:$0xff]
        %v1611 = vld [vmem:[#allocation9 + $0x110] sm:$0xff]
        %v1612 = vld [vmem:[#allocation9 + $0x118] sm:$0xff]
        %v1613 = vld [vmem:[#allocation9 + $0x120] sm:$0xff]
        %v1614 = vld [vmem:[#allocation9 + $0x128] sm:$0xff]
        %v1615 = vld [vmem:[#allocation9 + $0x130] sm:$0xff]
        %v1616 = vld [vmem:[#allocation9 + $0x138] sm:$0xff]
        %v1617 = vld [vmem:[#allocation9 + $0x140] sm:$0xff]
        %v1618 = vld [vmem:[#allocation9 + $0x148] sm:$0xff]
        %v1619 = vld [vmem:[#allocation9 + $0x150] sm:$0xff]
        %v1620 = vld [vmem:[#allocation9 + $0x158] sm:$0xff]
        %v1621 = vld [vmem:[#allocation9 + $0x160] sm:$0xff]
        %v1622 = vld [vmem:[#allocation9 + $0x168] sm:$0xff]
        %v1623 = vld [vmem:[#allocation9 + $0x170] sm:$0xff]
        %v1624 = vld [vmem:[#allocation9 + $0x178] sm:$0xff]
        %v1625 = vld [vmem:[#allocation2 + $0x300] sm:$0xff]
        %v1626 = vld [vmem:[#allocation2 + $0x308] sm:$0xff]
        %v1627 = vld [vmem:[#allocation2 + $0x310] sm:$0xff]
        %v1628 = vld [vmem:[#allocation2 + $0x318] sm:$0xff]
        %v1629 = vld [vmem:[#allocation2 + $0x320] sm:$0xff]
        %v1630 = vld [vmem:[#allocation2 + $0x328] sm:$0xff]
        %s1631 = scalar_lea.vmem [#allocation9], 384
        %v1632 = vld [vmem:[%s1631] sm:$0xff]
        %v1633 = vld [vmem:[%s1631 + $0x8] sm:$0xff]
        %v1634 = vld [vmem:[%s1631 + $0x10] sm:$0xff]
        %v1635 = vld [vmem:[%s1631 + $0x18] sm:$0xff]
        %v1636 = vld [vmem:[%s1631 + $0x20] sm:$0xff]
        %v1637 = vld [vmem:[%s1631 + $0x28] sm:$0xff]
        %v1638 = vld [vmem:[%s1631 + $0x30] sm:$0xff]
        %v1639 = vld [vmem:[%s1631 + $0x38] sm:$0xff]
        %v1640 = vld [vmem:[%s1631 + $0x40] sm:$0xff]
        %v1641 = vld [vmem:[%s1631 + $0x48] sm:$0xff]
        %v1642 = vld [vmem:[%s1631 + $0x50] sm:$0xff]
        %v1643 = vld [vmem:[%s1631 + $0x58] sm:$0xff]
        %v1644 = vld [vmem:[%s1631 + $0x60] sm:$0xff]
        %v1645 = vld [vmem:[%s1631 + $0x68] sm:$0xff]
        %v1646 = vld [vmem:[%s1631 + $0x70] sm:$0xff]
        %v1647 = vld [vmem:[%s1631 + $0x78] sm:$0xff]
        %v1648 = vld [vmem:[%s1631 + $0x80] sm:$0xff]
        %v1649 = vld [vmem:[%s1631 + $0x88] sm:$0xff]
        %v1650 = vld [vmem:[%s1631 + $0x90] sm:$0xff]
        %v1651 = vld [vmem:[%s1631 + $0x98] sm:$0xff]
        %v1652 = vld [vmem:[%s1631 + $0xa0] sm:$0xff]
        %v1653 = vld [vmem:[%s1631 + $0xa8] sm:$0xff]
        %v1654 = vld [vmem:[%s1631 + $0xb0] sm:$0xff]
        %v1655 = vld [vmem:[%s1631 + $0xb8] sm:$0xff]
        %v1656 = vld [vmem:[%s1631 + $0xc0] sm:$0xff]
        %v1657 = vld [vmem:[%s1631 + $0xc8] sm:$0xff]
        %v1658 = vld [vmem:[%s1631 + $0xd0] sm:$0xff]
        %v1659 = vld [vmem:[%s1631 + $0xd8] sm:$0xff]
        %v1660 = vld [vmem:[%s1631 + $0xe0] sm:$0xff]
        %v1661 = vld [vmem:[%s1631 + $0xe8] sm:$0xff]
        %v1662 = vld [vmem:[%s1631 + $0xf0] sm:$0xff]
        %v1663 = vld [vmem:[%s1631 + $0xf8] sm:$0xff]
        %v1664 = vld [vmem:[%s1631 + $0x100] sm:$0xff]
        %v1665 = vld [vmem:[%s1631 + $0x108] sm:$0xff]
        %v1666 = vld [vmem:[%s1631 + $0x110] sm:$0xff]
        %v1667 = vld [vmem:[%s1631 + $0x118] sm:$0xff]
        %v1668 = vld [vmem:[%s1631 + $0x120] sm:$0xff]
        %v1669 = vld [vmem:[%s1631 + $0x128] sm:$0xff]
        %v1670 = vld [vmem:[%s1631 + $0x130] sm:$0xff]
        %v1671 = vld [vmem:[%s1631 + $0x138] sm:$0xff]
        %v1672 = vld [vmem:[%s1631 + $0x140] sm:$0xff]
        %v1673 = vld [vmem:[%s1631 + $0x148] sm:$0xff]
        %v1674 = vld [vmem:[%s1631 + $0x150] sm:$0xff]
        %v1675 = vld [vmem:[%s1631 + $0x158] sm:$0xff]
        %v1676 = vld [vmem:[%s1631 + $0x160] sm:$0xff]
        %v1677 = vld [vmem:[%s1631 + $0x168] sm:$0xff]
        %v1678 = vld [vmem:[%s1631 + $0x170] sm:$0xff]
        %v1679 = vld [vmem:[%s1631 + $0x178] sm:$0xff]
        %1680 = vmatprep.subr.mxu0 0.0
        %1681 = vmatpush1.msra.mxu0 %v1632
        %1682 = vmatprep.subr.mxu0 0.0
        %1683 = vmatpush1.msra.mxu0 %v1633
        %1684 = vmatprep.subr.mxu0 0.0
        %1685 = vmatpush1.msra.mxu0 %v1634
        %1686 = vmatprep.subr.mxu0 0.0
        %1687 = vmatpush1.msra.mxu0 %v1635
        %1688 = vmatprep.subr.mxu0 0.0
        %1689 = vmatpush1.msra.mxu0 %v1636
        %1690 = vmatprep.subr.mxu0 0.0
        %1691 = vmatpush1.msra.mxu0 %v1637
        %1692 = vmatprep.subr.mxu0 0.0
        %1693 = vmatpush1.msra.mxu0 %v1638
        %1694 = vmatprep.subr.mxu0 0.0
        %1695 = vmatpush1.msra.mxu0 %v1639
        %1696 = vmatprep.subr.mxu0 0.0
        %1697 = vmatpush1.msra.mxu0 %v1640
        %1698 = vmatprep.subr.mxu0 0.0
        %1699 = vmatpush1.msra.mxu0 %v1641
        %1700 = vmatprep.subr.mxu0 0.0
        %1701 = vmatpush1.msra.mxu0 %v1642
        %1702 = vmatprep.subr.mxu0 0.0
        %1703 = vmatpush1.msra.mxu0 %v1643
        %1704 = vmatprep.subr.mxu0 0.0
        %1705 = vmatpush1.msra.mxu0 %v1644
        %1706 = vmatprep.subr.mxu0 0.0
        %1707 = vmatpush1.msra.mxu0 %v1645
        %1708 = vmatprep.subr.mxu0 0.0
        %1709 = vmatpush1.msra.mxu0 %v1646
        %1710 = vmatprep.subr.mxu0 0.0
        %1711 = vmatpush1.msra.mxu0 %v1647
        %1712 = vmatprep.subr.mxu0 0.0
        %1713 = vmatpush1.msra.mxu0 %v1648
        %1714 = vmatprep.subr.mxu0 0.0
        %1715 = vmatpush1.msra.mxu0 %v1649
        %1716 = vmatprep.subr.mxu0 0.0
        %1717 = vmatpush1.msra.mxu0 %v1650
        %1718 = vmatprep.subr.mxu0 0.0
        %1719 = vmatpush1.msra.mxu0 %v1651
        %1720 = vmatprep.subr.mxu0 0.0
        %1721 = vmatpush1.msra.mxu0 %v1652
        %1722 = vmatprep.subr.mxu0 0.0
        %1723 = vmatpush1.msra.mxu0 %v1653
        %1724 = vmatprep.subr.mxu0 0.0
        %1725 = vmatpush1.msra.mxu0 %v1654
        %1726 = vmatprep.subr.mxu0 0.0
        %1727 = vmatpush1.msra.mxu0 %v1655
        %1728 = vmatprep.subr.mxu0 0.0
        %1729 = vmatpush1.msra.mxu0 %v1656
        %1730 = vmatprep.subr.mxu0 0.0
        %1731 = vmatpush1.msra.mxu0 %v1657
        %1732 = vmatprep.subr.mxu0 0.0
        %1733 = vmatpush1.msra.mxu0 %v1658
        %1734 = vmatprep.subr.mxu0 0.0
        %1735 = vmatpush1.msra.mxu0 %v1659
        %1736 = vmatprep.subr.mxu0 0.0
        %1737 = vmatpush1.msra.mxu0 %v1660
        %1738 = vmatprep.subr.mxu0 0.0
        %1739 = vmatpush1.msra.mxu0 %v1661
        %1740 = vmatprep.subr.mxu0 0.0
        %1741 = vmatpush1.msra.mxu0 %v1662
        %1742 = vmatprep.subr.mxu0 0.0
        %1743 = vmatpush1.msra.mxu0 %v1663
        %1744 = vmatprep.mubr.f32.mxu0 %v1488
        %1745 = vmatmul.mubr.f32.gmra.mrb[0].mxu0 %v1487
        %v1746 = vpop.f32.mrb[0].mxu0
        %v1747 = vadd.f32 0.0, %v1746
        %v1748 = vpop.f32.mrb[0].mxu0
        %1749 = vmatprep.mubr.f32.mxu0 %v1491
        %1750 = vmatmul.mubr.f32.gmra.mrb[0].mxu0 %v1490
        %v1751 = vpop.f32.mrb[0].mxu0
        %v1752 = vadd.f32 0.0, %v1751
        %v1753 = vpop.f32.mrb[0].mxu0
        %1754 = vmatprep.mubr.f32.mxu0 %v1494
        %1755 = vmatmul.mubr.f32.gmra.mrb[0].mxu0 %v1493
        %v1756 = vpop.f32.mrb[0].mxu0
        %v1757 = vadd.f32 0.0, %v1756
        %v1758 = vpop.f32.mrb[0].mxu0
        %1759 = vmatprep.mubr.f32.mxu0 %v1497
        %1760 = vmatmul.mubr.f32.gmra.mrb[0].mxu0 %v1496
        %v1761 = vpop.f32.mrb[0].mxu0
        %v1762 = vadd.f32 0.0, %v1761
        %v1763 = vpop.f32.mrb[0].mxu0
        %1764 = vmatprep.mubr.f32.mxu0 %v1500
        %1765 = vmatmul.mubr.f32.gmra.mrb[0].mxu0 %v1499
        %v1766 = vpop.f32.mrb[0].mxu0
        %v1767 = vadd.f32 0.0, %v1766
        %v1768 = vpop.f32.mrb[0].mxu0
        %1769 = vmatprep.mubr.f32.mxu0 %v1503
        %1770 = vmatmul.mubr.f32.gmra.mrb[0].mxu0 %v1502
        %v1771 = vpop.f32.mrb[0].mxu0
        %v1772 = vadd.f32 0.0, %v1771
        %v1773 = vpop.f32.mrb[0].mxu0
        %1774 = vmatprep.mubr.f32.mxu0 %v1506
        %1775 = vmatmul.mubr.f32.gmra.mrb[0].mxu0 %v1505
        %v1776 = vpop.f32.mrb[0].mxu0
        %v1777 = vadd.f32 0.0, %v1776
        %v1778 = vpop.f32.mrb[0].mxu0
        %1779 = vmatprep.mubr.f32.mxu0 %v1509
        %1780 = vmatmul.mubr.f32.gmra.mrb[0].mxu0 %v1508
        %v1781 = vpop.f32.mrb[0].mxu0
        %v1782 = vadd.f32 0.0, %v1781
        %v1783 = vpop.f32.mrb[0].mxu0
        %1784 = vmatprep.mubr.f32.mxu0 %v1512
        %1785 = vmatmul.mubr.f32.gmra.mrb[0].mxu0 %v1511
        %v1786 = vpop.f32.mrb[0].mxu0
        %v1787 = vadd.f32 0.0, %v1786
        %v1788 = vpop.f32.mrb[0].mxu0
        %1789 = vmatprep.mubr.f32.mxu0 %v1515
        %1790 = vmatmul.mubr.f32.gmra.mrb[0].mxu0 %v1514
        %v1791 = vpop.f32.mrb[0].mxu0
        %v1792 = vadd.f32 0.0, %v1791
        %v1793 = vpop.f32.mrb[0].mxu0
        %1794 = vmatprep.mubr.f32.mxu0 %v1518
        %1795 = vmatmul.mubr.f32.gmra.mrb[0].mxu0 %v1517
        %v1796 = vpop.f32.mrb[0].mxu0
        %v1797 = vadd.f32 0.0, %v1796
        %v1798 = vpop.f32.mrb[0].mxu0
        %1799 = vmatprep.mubr.f32.mxu0 %v1521
        %1800 = vmatmul.mubr.f32.gmra.mrb[0].mxu0 %v1520
        %v1801 = vpop.f32.mrb[0].mxu0
        %v1802 = vadd.f32 0.0, %v1801
        %v1803 = vpop.f32.mrb[0].mxu0
        %1804 = vmatprep.mubr.f32.mxu0 %v1524
        %1805 = vmatmul.mubr.f32.gmra.mrb[0].mxu0 %v1523
        %v1806 = vpop.f32.mrb[0].mxu0
        %v1807 = vadd.f32 0.0, %v1806
        %v1808 = vpop.f32.mrb[0].mxu0
        %1809 = vmatprep.mubr.f32.mxu0 %v1527
        %1810 = vmatmul.mubr.f32.gmra.mrb[0].mxu0 %v1526
        %v1811 = vpop.f32.mrb[0].mxu0
        %v1812 = vadd.f32 0.0, %v1811
        %v1813 = vpop.f32.mrb[0].mxu0
        %1814 = vmatprep.mubr.f32.mxu0 %v1530
        %1815 = vmatmul.mubr.f32.gmra.mrb[0].mxu0 %v1529
        %v1816 = vpop.f32.mrb[0].mxu0
        %v1817 = vadd.f32 0.0, %v1816
        %v1818 = vpop.f32.mrb[0].mxu0
        %1819 = vmatprep.mubr.f32.mxu0 %v1533
        %1820 = vmatmul.mubr.f32.gmra.mrb[0].mxu0 %v1532
        %v1821 = vpop.f32.mrb[0].mxu0
        %v1822 = vadd.f32 0.0, %v1821
        %v1823 = vpop.f32.mrb[0].mxu0
        %1824 = vmatprep.mubr.f32.mxu0 %v1536
        %1825 = vmatmul.mubr.f32.gmra.mrb[0].mxu0 %v1535
        %v1826 = vpop.f32.mrb[0].mxu0
        %v1827 = vadd.f32 0.0, %v1826
        %v1828 = vpop.f32.mrb[0].mxu0
        %1829 = vmatprep.mubr.f32.mxu0 %v1539
        %1830 = vmatmul.mubr.f32.gmra.mrb[0].mxu0 %v1538
        %v1831 = vpop.f32.mrb[0].mxu0
        %v1832 = vadd.f32 0.0, %v1831
        %v1833 = vpop.f32.mrb[0].mxu0
        %1834 = vmatprep.mubr.f32.mxu0 %v1542
        %1835 = vmatmul.mubr.f32.gmra.mrb[0].mxu0 %v1541
        %v1836 = vpop.f32.mrb[0].mxu0
        %v1837 = vadd.f32 0.0, %v1836
        %v1838 = vpop.f32.mrb[0].mxu0
        %1839 = vmatprep.mubr.f32.mxu0 %v1545
        %1840 = vmatmul.mubr.f32.gmra.mrb[0].mxu0 %v1544
        %v1841 = vpop.f32.mrb[0].mxu0
        %v1842 = vadd.f32 0.0, %v1841
        %v1843 = vpop.f32.mrb[0].mxu0
        %1844 = vmatprep.mubr.f32.mxu0 %v1548
        %1845 = vmatmul.mubr.f32.gmra.mrb[0].mxu0 %v1547
        %v1846 = vpop.f32.mrb[0].mxu0
        %v1847 = vadd.f32 0.0, %v1846
        %v1848 = vpop.f32.mrb[0].mxu0
        %1849 = vmatprep.mubr.f32.mxu0 %v1551
        %1850 = vmatmul.mubr.f32.gmra.mrb[0].mxu0 %v1550
        %v1851 = vpop.f32.mrb[0].mxu0
        %v1852 = vadd.f32 0.0, %v1851
        %v1853 = vpop.f32.mrb[0].mxu0
        %1854 = vmatprep.mubr.f32.mxu0 %v1554
        %1855 = vmatmul.mubr.f32.gmra.mrb[0].mxu0 %v1553
        %v1856 = vpop.f32.mrb[0].mxu0
        %v1857 = vadd.f32 0.0, %v1856
        %v1858 = vpop.f32.mrb[0].mxu0
        %1859 = vmatprep.mubr.f32.mxu0 %v1557
        %1860 = vmatmul.mubr.f32.gmra.mrb[0].mxu0 %v1556
        %v1861 = vpop.f32.mrb[0].mxu0
        %v1862 = vadd.f32 0.0, %v1861
        %v1863 = vpop.f32.mrb[0].mxu0
        %1864 = vmatprep.mubr.f32.mxu0 %v1560
        %1865 = vmatmul.mubr.f32.gmra.mrb[0].mxu0 %v1559
        %v1866 = vpop.f32.mrb[0].mxu0
        %v1867 = vadd.f32 0.0, %v1866
        %v1868 = vpop.f32.mrb[0].mxu0
        %1869 = vmatprep.mubr.f32.mxu0 %v1563
        %1870 = vmatmul.mubr.f32.gmra.mrb[0].mxu0 %v1562
        %v1871 = vpop.f32.mrb[0].mxu0
        %v1872 = vadd.f32 0.0, %v1871
        %v1873 = vpop.f32.mrb[0].mxu0
        %1874 = vmatprep.mubr.f32.mxu0 %v1566
        %1875 = vmatmul.mubr.f32.gmra.mrb[0].mxu0 %v1565
        %v1876 = vpop.f32.mrb[0].mxu0
        %v1877 = vadd.f32 0.0, %v1876
        %v1878 = vpop.f32.mrb[0].mxu0
        %1879 = vmatprep.mubr.f32.mxu0 %v1569
        %1880 = vmatmul.mubr.f32.gmra.mrb[0].mxu0 %v1568
        %v1881 = vpop.f32.mrb[0].mxu0
        %v1882 = vadd.f32 0.0, %v1881
        %v1883 = vpop.f32.mrb[0].mxu0
        %1884 = vmatprep.mubr.f32.mxu0 %v1572
        %1885 = vmatmul.mubr.f32.gmra.mrb[0].mxu0 %v1571
        %v1886 = vpop.f32.mrb[0].mxu0
        %v1887 = vadd.f32 0.0, %v1886
        %v1888 = vpop.f32.mrb[0].mxu0
        %1889 = vmatprep.mubr.f32.mxu0 %v1575
        %1890 = vmatmul.mubr.f32.gmra.mrb[0].mxu0 %v1574
        %v1891 = vpop.f32.mrb[0].mxu0
        %v1892 = vadd.f32 0.0, %v1891
        %v1893 = vpop.f32.mrb[0].mxu0
        %1894 = vmatprep.mubr.f32.mxu0 %v1626
        %1895 = vmatmul.mubr.f32.gmra.mrb[0].mxu0 %v1625
        %v1896 = vpop.f32.mrb[0].mxu0
        %v1897 = vadd.f32 0.0, %v1896
        %v1898 = vpop.f32.mrb[0].mxu0
        %1899 = vmatprep.mubr.f32.mxu0 %v1629
        %1900 = vmatmul.mubr.f32.gmra.mrb[0].mxu0 %v1628
        %v1901 = vpop.f32.mrb[0].mxu0
        %v1902 = vadd.f32 0.0, %v1901
        %v1903 = vpop.f32.mrb[0].mxu0
        %1904 = vdwg.mxu0
        %1905 = vmatprep.subr.mxu0 0.0
        %1906 = vmatpush1.msra.mxu0 %v1664
        %1907 = vmatprep.subr.mxu0 0.0
        %1908 = vmatpush1.msra.mxu0 %v1665
        %1909 = vmatprep.subr.mxu0 0.0
        %1910 = vmatpush1.msra.mxu0 %v1666
        %1911 = vmatprep.subr.mxu0 0.0
        %1912 = vmatpush1.msra.mxu0 %v1667
        %1913 = vmatprep.subr.mxu0 0.0
        %1914 = vmatpush1.msra.mxu0 %v1668
        %1915 = vmatprep.subr.mxu0 0.0
        %1916 = vmatpush1.msra.mxu0 %v1669
        %1917 = vmatprep.subr.mxu0 0.0
        %1918 = vmatpush1.msra.mxu0 %v1670
        %1919 = vmatprep.subr.mxu0 0.0
        %1920 = vmatpush1.msra.mxu0 %v1671
        %1921 = vmatprep.subr.mxu0 0.0
        %1922 = vmatpush1.msra.mxu0 %v1672
        %1923 = vmatprep.subr.mxu0 0.0
        %1924 = vmatpush1.msra.mxu0 %v1673
        %1925 = vmatprep.subr.mxu0 0.0
        %1926 = vmatpush1.msra.mxu0 %v1674
        %1927 = vmatprep.subr.mxu0 0.0
        %1928 = vmatpush1.msra.mxu0 %v1675
        %1929 = vmatprep.subr.mxu0 0.0
        %1930 = vmatpush1.msra.mxu0 %v1676
        %1931 = vmatprep.subr.mxu0 0.0
        %1932 = vmatpush1.msra.mxu0 %v1677
        %1933 = vmatprep.subr.mxu0 0.0
        %1934 = vmatpush1.msra.mxu0 %v1678
        %1935 = vmatprep.subr.mxu0 0.0
        %1936 = vmatpush1.msra.mxu0 %v1679
        %1937 = vmatprep.subr.mxu0 0.0
        %1938 = vmatpush1.msra.mxu0 0.0
        %1939 = vmatprep.subr.mxu0 0.0
        %1940 = vmatpush1.msra.mxu0 0.0
        %1941 = vmatprep.subr.mxu0 0.0
        %1942 = vmatpush1.msra.mxu0 0.0
        %1943 = vmatprep.subr.mxu0 0.0
        %1944 = vmatpush1.msra.mxu0 0.0
        %1945 = vmatprep.subr.mxu0 0.0
        %1946 = vmatpush1.msra.mxu0 0.0
        %1947 = vmatprep.subr.mxu0 0.0
        %1948 = vmatpush1.msra.mxu0 0.0
        %1949 = vmatprep.subr.mxu0 0.0
        %1950 = vmatpush1.msra.mxu0 0.0
        %1951 = vmatprep.subr.mxu0 0.0
        %1952 = vmatpush1.msra.mxu0 0.0
        %1953 = vmatprep.subr.mxu0 0.0
        %1954 = vmatpush1.msra.mxu0 0.0
        %1955 = vmatprep.subr.mxu0 0.0
        %1956 = vmatpush1.msra.mxu0 0.0
        %1957 = vmatprep.subr.mxu0 0.0
        %1958 = vmatpush1.msra.mxu0 0.0
        %1959 = vmatprep.subr.mxu0 0.0
        %1960 = vmatpush1.msra.mxu0 0.0
        %1961 = vmatprep.subr.mxu0 0.0
        %1962 = vmatpush1.msra.mxu0 0.0
        %1963 = vmatprep.subr.mxu0 0.0
        %1964 = vmatpush1.msra.mxu0 0.0
        %1965 = vmatprep.subr.mxu0 0.0
        %1966 = vmatpush1.msra.mxu0 0.0
        %1967 = vmatprep.subr.mxu0 0.0
        %1968 = vmatpush1.msra.mxu0 0.0
        %1969 = vmatprep.mubr.f32.mxu0 0.0
        %1970 = vmatmul.mubr.f32.gmra.mrb[0].mxu0 %v1489
        %v1971 = vpop.f32.mrb[0].mxu0
        %v1972 = vadd.f32 %v1747, %v1971
        %v1973 = vpop.f32.mrb[0].mxu0
        %1974 = vmatprep.mubr.f32.mxu0 0.0
        %1975 = vmatmul.mubr.f32.gmra.mrb[0].mxu0 %v1492
        %v1976 = vpop.f32.mrb[0].mxu0
        %v1977 = vadd.f32 %v1752, %v1976
        %v1978 = vpop.f32.mrb[0].mxu0
        %1979 = vmatprep.mubr.f32.mxu0 0.0
        %1980 = vmatmul.mubr.f32.gmra.mrb[0].mxu0 %v1495
        %v1981 = vpop.f32.mrb[0].mxu0
        %v1982 = vadd.f32 %v1757, %v1981
        %v1983 = vpop.f32.mrb[0].mxu0
        %1984 = vmatprep.mubr.f32.mxu0 0.0
        %1985 = vmatmul.mubr.f32.gmra.mrb[0].mxu0 %v1498
        %v1986 = vpop.f32.mrb[0].mxu0
        %v1987 = vadd.f32 %v1762, %v1986
        %v1988 = vpop.f32.mrb[0].mxu0
        %1989 = vmatprep.mubr.f32.mxu0 0.0
        %1990 = vmatmul.mubr.f32.gmra.mrb[0].mxu0 %v1501
        %v1991 = vpop.f32.mrb[0].mxu0
        %v1992 = vadd.f32 %v1767, %v1991
        %v1993 = vpop.f32.mrb[0].mxu0
        %1994 = vmatprep.mubr.f32.mxu0 0.0
        %1995 = vmatmul.mubr.f32.gmra.mrb[0].mxu0 %v1504
        %v1996 = vpop.f32.mrb[0].mxu0
        %v1997 = vadd.f32 %v1772, %v1996
        %v1998 = vpop.f32.mrb[0].mxu0
        %1999 = vmatprep.mubr.f32.mxu0 0.0
        %2000 = vmatmul.mubr.f32.gmra.mrb[0].mxu0 %v1507
        %v2001 = vpop.f32.mrb[0].mxu0
        %v2002 = vadd.f32 %v1777, %v2001
        %v2003 = vpop.f32.mrb[0].mxu0
        %2004 = vmatprep.mubr.f32.mxu0 0.0
        %2005 = vmatmul.mubr.f32.gmra.mrb[0].mxu0 %v1510
        %v2006 = vpop.f32.mrb[0].mxu0
        %v2007 = vadd.f32 %v1782, %v2006
        %v2008 = vpop.f32.mrb[0].mxu0
        %2009 = vmatprep.mubr.f32.mxu0 0.0
        %2010 = vmatmul.mubr.f32.gmra.mrb[0].mxu0 %v1513
        %v2011 = vpop.f32.mrb[0].mxu0
        %v2012 = vadd.f32 %v1787, %v2011
        %v2013 = vpop.f32.mrb[0].mxu0
        %2014 = vmatprep.mubr.f32.mxu0 0.0
        %2015 = vmatmul.mubr.f32.gmra.mrb[0].mxu0 %v1516
        %v2016 = vpop.f32.mrb[0].mxu0
        %v2017 = vadd.f32 %v1792, %v2016
        %v2018 = vpop.f32.mrb[0].mxu0
        %2019 = vmatprep.mubr.f32.mxu0 0.0
        %2020 = vmatmul.mubr.f32.gmra.mrb[0].mxu0 %v1519
        %v2021 = vpop.f32.mrb[0].mxu0
        %v2022 = vadd.f32 %v1797, %v2021
        %v2023 = vpop.f32.mrb[0].mxu0
        %2024 = vmatprep.mubr.f32.mxu0 0.0
        %2025 = vmatmul.mubr.f32.gmra.mrb[0].mxu0 %v1522
        %v2026 = vpop.f32.mrb[0].mxu0
        %v2027 = vadd.f32 %v1802, %v2026
        %v2028 = vpop.f32.mrb[0].mxu0
        %2029 = vmatprep.mubr.f32.mxu0 0.0
        %2030 = vmatmul.mubr.f32.gmra.mrb[0].mxu0 %v1525
        %v2031 = vpop.f32.mrb[0].mxu0
        %v2032 = vadd.f32 %v1807, %v2031
        %v2033 = vpop.f32.mrb[0].mxu0
        %2034 = vmatprep.mubr.f32.mxu0 0.0
        %2035 = vmatmul.mubr.f32.gmra.mrb[0].mxu0 %v1528
        %v2036 = vpop.f32.mrb[0].mxu0
        %v2037 = vadd.f32 %v1812, %v2036
        %v2038 = vpop.f32.mrb[0].mxu0
        %2039 = vmatprep.mubr.f32.mxu0 0.0
        %2040 = vmatmul.mubr.f32.gmra.mrb[0].mxu0 %v1531
        %v2041 = vpop.f32.mrb[0].mxu0
        %v2042 = vadd.f32 %v1817, %v2041
        %v2043 = vpop.f32.mrb[0].mxu0
        %2044 = vmatprep.mubr.f32.mxu0 0.0
        %2045 = vmatmul.mubr.f32.gmra.mrb[0].mxu0 %v1534
        %v2046 = vpop.f32.mrb[0].mxu0
        %v2047 = vadd.f32 %v1822, %v2046
        %v2048 = vpop.f32.mrb[0].mxu0
        %2049 = vmatprep.mubr.f32.mxu0 0.0
        %2050 = vmatmul.mubr.f32.gmra.mrb[0].mxu0 %v1537
        %v2051 = vpop.f32.mrb[0].mxu0
        %v2052 = vadd.f32 %v1827, %v2051
        %v2053 = vpop.f32.mrb[0].mxu0
        %2054 = vmatprep.mubr.f32.mxu0 0.0
        %2055 = vmatmul.mubr.f32.gmra.mrb[0].mxu0 %v1540
        %v2056 = vpop.f32.mrb[0].mxu0
        %v2057 = vadd.f32 %v1832, %v2056
        %v2058 = vpop.f32.mrb[0].mxu0
        %2059 = vmatprep.mubr.f32.mxu0 0.0
        %2060 = vmatmul.mubr.f32.gmra.mrb[0].mxu0 %v1543
        %v2061 = vpop.f32.mrb[0].mxu0
        %v2062 = vadd.f32 %v1837, %v2061
        %v2063 = vpop.f32.mrb[0].mxu0
        %2064 = vmatprep.mubr.f32.mxu0 0.0
        %2065 = vmatmul.mubr.f32.gmra.mrb[0].mxu0 %v1546
        %v2066 = vpop.f32.mrb[0].mxu0
        %v2067 = vadd.f32 %v1842, %v2066
        %v2068 = vpop.f32.mrb[0].mxu0
        %2069 = vmatprep.mubr.f32.mxu0 0.0
        %2070 = vmatmul.mubr.f32.gmra.mrb[0].mxu0 %v1549
        %v2071 = vpop.f32.mrb[0].mxu0
        %v2072 = vadd.f32 %v1847, %v2071
        %v2073 = vpop.f32.mrb[0].mxu0
        %2074 = vmatprep.mubr.f32.mxu0 0.0
        %2075 = vmatmul.mubr.f32.gmra.mrb[0].mxu0 %v1552
        %v2076 = vpop.f32.mrb[0].mxu0
        %v2077 = vadd.f32 %v1852, %v2076
        %v2078 = vpop.f32.mrb[0].mxu0
        %2079 = vmatprep.mubr.f32.mxu0 0.0
        %2080 = vmatmul.mubr.f32.gmra.mrb[0].mxu0 %v1555
        %v2081 = vpop.f32.mrb[0].mxu0
        %v2082 = vadd.f32 %v1857, %v2081
        %v2083 = vpop.f32.mrb[0].mxu0
        %2084 = vmatprep.mubr.f32.mxu0 0.0
        %2085 = vmatmul.mubr.f32.gmra.mrb[0].mxu0 %v1558
        %v2086 = vpop.f32.mrb[0].mxu0
        %v2087 = vadd.f32 %v1862, %v2086
        %v2088 = vpop.f32.mrb[0].mxu0
        %2089 = vmatprep.mubr.f32.mxu0 0.0
        %2090 = vmatmul.mubr.f32.gmra.mrb[0].mxu0 %v1561
        %v2091 = vpop.f32.mrb[0].mxu0
        %v2092 = vadd.f32 %v1867, %v2091
        %v2093 = vpop.f32.mrb[0].mxu0
        %2094 = vmatprep.mubr.f32.mxu0 0.0
        %2095 = vmatmul.mubr.f32.gmra.mrb[0].mxu0 %v1564
        %v2096 = vpop.f32.mrb[0].mxu0
        %v2097 = vadd.f32 %v1872, %v2096
        %v2098 = vpop.f32.mrb[0].mxu0
        %2099 = vmatprep.mubr.f32.mxu0 0.0
        %2100 = vmatmul.mubr.f32.gmra.mrb[0].mxu0 %v1567
        %v2101 = vpop.f32.mrb[0].mxu0
        %v2102 = vadd.f32 %v1877, %v2101
        %v2103 = vpop.f32.mrb[0].mxu0
        %2104 = vmatprep.mubr.f32.mxu0 0.0
        %2105 = vmatmul.mubr.f32.gmra.mrb[0].mxu0 %v1570
        %v2106 = vpop.f32.mrb[0].mxu0
        %v2107 = vadd.f32 %v1882, %v2106
        %v2108 = vpop.f32.mrb[0].mxu0
        %2109 = vmatprep.mubr.f32.mxu0 0.0
        %2110 = vmatmul.mubr.f32.gmra.mrb[0].mxu0 %v1573
        %v2111 = vpop.f32.mrb[0].mxu0
        %v2112 = vadd.f32 %v1887, %v2111
        %v2113 = vpop.f32.mrb[0].mxu0
        %2114 = vmatprep.mubr.f32.mxu0 0.0
        %2115 = vmatmul.mubr.f32.gmra.mrb[0].mxu0 %v1576
        %v2116 = vpop.f32.mrb[0].mxu0
        %v2117 = vadd.f32 %v1892, %v2116
        %v2118 = vpop.f32.mrb[0].mxu0
        %2119 = vmatprep.mubr.f32.mxu0 0.0
        %2120 = vmatmul.mubr.f32.gmra.mrb[0].mxu0 %v1627
        %v2121 = vpop.f32.mrb[0].mxu0
        %v2122 = vadd.f32 %v1897, %v2121
        %v2123 = vpop.f32.mrb[0].mxu0
        %2124 = vmatprep.mubr.f32.mxu0 0.0
        %2125 = vmatmul.mubr.f32.gmra.mrb[0].mxu0 %v1630
        %v2126 = vpop.f32.mrb[0].mxu0
        %v2127 = vadd.f32 %v1902, %v2126
        %v2128 = vpop.f32.mrb[0].mxu0
        %2129 = vdwg.mxu0
        %2130 = vmatprep.subr.mxu0 0.0
        %2131 = vmatpush1.msra.mxu0 %v1577
        %2132 = vmatprep.subr.mxu0 0.0
        %2133 = vmatpush1.msra.mxu0 %v1578
        %2134 = vmatprep.subr.mxu0 0.0
        %2135 = vmatpush1.msra.mxu0 %v1579
        %2136 = vmatprep.subr.mxu0 0.0
        %2137 = vmatpush1.msra.mxu0 %v1580
        %2138 = vmatprep.subr.mxu0 0.0
        %2139 = vmatpush1.msra.mxu0 %v1581
        %2140 = vmatprep.subr.mxu0 0.0
        %2141 = vmatpush1.msra.mxu0 %v1582
        %2142 = vmatprep.subr.mxu0 0.0
        %2143 = vmatpush1.msra.mxu0 %v1583
        %2144 = vmatprep.subr.mxu0 0.0
        %2145 = vmatpush1.msra.mxu0 %v1584
        %2146 = vmatprep.subr.mxu0 0.0
        %2147 = vmatpush1.msra.mxu0 %v1585
        %2148 = vmatprep.subr.mxu0 0.0
        %2149 = vmatpush1.msra.mxu0 %v1586
        %2150 = vmatprep.subr.mxu0 0.0
        %2151 = vmatpush1.msra.mxu0 %v1587
        %2152 = vmatprep.subr.mxu0 0.0
        %2153 = vmatpush1.msra.mxu0 %v1588
        %2154 = vmatprep.subr.mxu0 0.0
        %2155 = vmatpush1.msra.mxu0 %v1589
        %2156 = vmatprep.subr.mxu0 0.0
        %2157 = vmatpush1.msra.mxu0 %v1590
        %2158 = vmatprep.subr.mxu0 0.0
        %2159 = vmatpush1.msra.mxu0 %v1591
        %2160 = vmatprep.subr.mxu0 0.0
        %2161 = vmatpush1.msra.mxu0 %v1592
        %2162 = vmatprep.subr.mxu0 0.0
        %2163 = vmatpush1.msra.mxu0 %v1593
        %2164 = vmatprep.subr.mxu0 0.0
        %2165 = vmatpush1.msra.mxu0 %v1594
        %2166 = vmatprep.subr.mxu0 0.0
        %2167 = vmatpush1.msra.mxu0 %v1595
        %2168 = vmatprep.subr.mxu0 0.0
        %2169 = vmatpush1.msra.mxu0 %v1596
        %2170 = vmatprep.subr.mxu0 0.0
        %2171 = vmatpush1.msra.mxu0 %v1597
        %2172 = vmatprep.subr.mxu0 0.0
        %2173 = vmatpush1.msra.mxu0 %v1598
        %2174 = vmatprep.subr.mxu0 0.0
        %2175 = vmatpush1.msra.mxu0 %v1599
        %2176 = vmatprep.subr.mxu0 0.0
        %2177 = vmatpush1.msra.mxu0 %v1600
        %2178 = vmatprep.subr.mxu0 0.0
        %2179 = vmatpush1.msra.mxu0 %v1601
        %2180 = vmatprep.subr.mxu0 0.0
        %2181 = vmatpush1.msra.mxu0 %v1602
        %2182 = vmatprep.subr.mxu0 0.0
        %2183 = vmatpush1.msra.mxu0 %v1603
        %2184 = vmatprep.subr.mxu0 0.0
        %2185 = vmatpush1.msra.mxu0 %v1604
        %2186 = vmatprep.subr.mxu0 0.0
        %2187 = vmatpush1.msra.mxu0 %v1605
        %2188 = vmatprep.subr.mxu0 0.0
        %2189 = vmatpush1.msra.mxu0 %v1606
        %2190 = vmatprep.subr.mxu0 0.0
        %2191 = vmatpush1.msra.mxu0 %v1607
        %2192 = vmatprep.subr.mxu0 0.0
        %2193 = vmatpush1.msra.mxu0 %v1608
        %2194 = vmatprep.mubr.f32.mxu0 %v1482
        %2195 = vmatmul.mubr.f32.gmra.mrb[0].mxu0 %v1481
        %v2196 = vpop.f32.mrb[0].mxu0
        %v2197 = vadd.f32 %v1972, %v2196
        %v2198 = vpop.f32.mrb[0].mxu0
        %2199 = vmatprep.mubr.f32.mxu0 %v1485
        %2200 = vmatmul.mubr.f32.gmra.mrb[0].mxu0 %v1484
        %v2201 = vpop.f32.mrb[0].mxu0
        %v2202 = vadd.f32 %v1977, %v2201
        %v2203 = vpop.f32.mrb[0].mxu0
        %2204 = vmatprep.mubr.f32.mxu0 %v1488
        %2205 = vmatmul.mubr.f32.gmra.mrb[0].mxu0 %v1487
        %v2206 = vpop.f32.mrb[0].mxu0
        %v2207 = vadd.f32 %v1982, %v2206
        %v2208 = vpop.f32.mrb[0].mxu0
        %2209 = vmatprep.mubr.f32.mxu0 %v1491
        %2210 = vmatmul.mubr.f32.gmra.mrb[0].mxu0 %v1490
        %v2211 = vpop.f32.mrb[0].mxu0
        %v2212 = vadd.f32 %v1987, %v2211
        %v2213 = vpop.f32.mrb[0].mxu0
        %2214 = vmatprep.mubr.f32.mxu0 %v1494
        %2215 = vmatmul.mubr.f32.gmra.mrb[0].mxu0 %v1493
        %v2216 = vpop.f32.mrb[0].mxu0
        %v2217 = vadd.f32 %v1992, %v2216
        %v2218 = vpop.f32.mrb[0].mxu0
        %2219 = vmatprep.mubr.f32.mxu0 %v1497
        %2220 = vmatmul.mubr.f32.gmra.mrb[0].mxu0 %v1496
        %v2221 = vpop.f32.mrb[0].mxu0
        %v2222 = vadd.f32 %v1997, %v2221
        %v2223 = vpop.f32.mrb[0].mxu0
        %2224 = vmatprep.mubr.f32.mxu0 %v1500
        %2225 = vmatmul.mubr.f32.gmra.mrb[0].mxu0 %v1499
        %v2226 = vpop.f32.mrb[0].mxu0
        %v2227 = vadd.f32 %v2002, %v2226
        %v2228 = vpop.f32.mrb[0].mxu0
        %2229 = vmatprep.mubr.f32.mxu0 %v1503
        %2230 = vmatmul.mubr.f32.gmra.mrb[0].mxu0 %v1502
        %v2231 = vpop.f32.mrb[0].mxu0
        %v2232 = vadd.f32 %v2007, %v2231
        %v2233 = vpop.f32.mrb[0].mxu0
        %2234 = vmatprep.mubr.f32.mxu0 %v1506
        %2235 = vmatmul.mubr.f32.gmra.mrb[0].mxu0 %v1505
        %v2236 = vpop.f32.mrb[0].mxu0
        %v2237 = vadd.f32 %v2012, %v2236
        %v2238 = vpop.f32.mrb[0].mxu0
        %2239 = vmatprep.mubr.f32.mxu0 %v1509
        %2240 = vmatmul.mubr.f32.gmra.mrb[0].mxu0 %v1508
        %v2241 = vpop.f32.mrb[0].mxu0
        %v2242 = vadd.f32 %v2017, %v2241
        %v2243 = vpop.f32.mrb[0].mxu0
        %2244 = vmatprep.mubr.f32.mxu0 %v1512
        %2245 = vmatmul.mubr.f32.gmra.mrb[0].mxu0 %v1511
        %v2246 = vpop.f32.mrb[0].mxu0
        %v2247 = vadd.f32 %v2022, %v2246
        %v2248 = vpop.f32.mrb[0].mxu0
        %2249 = vmatprep.mubr.f32.mxu0 %v1515
        %2250 = vmatmul.mubr.f32.gmra.mrb[0].mxu0 %v1514
        %v2251 = vpop.f32.mrb[0].mxu0
        %v2252 = vadd.f32 %v2027, %v2251
        %v2253 = vpop.f32.mrb[0].mxu0
        %2254 = vmatprep.mubr.f32.mxu0 %v1518
        %2255 = vmatmul.mubr.f32.gmra.mrb[0].mxu0 %v1517
        %v2256 = vpop.f32.mrb[0].mxu0
        %v2257 = vadd.f32 %v2032, %v2256
        %v2258 = vpop.f32.mrb[0].mxu0
        %2259 = vmatprep.mubr.f32.mxu0 %v1521
        %2260 = vmatmul.mubr.f32.gmra.mrb[0].mxu0 %v1520
        %v2261 = vpop.f32.mrb[0].mxu0
        %v2262 = vadd.f32 %v2037, %v2261
        %v2263 = vpop.f32.mrb[0].mxu0
        %2264 = vmatprep.mubr.f32.mxu0 %v1524
        %2265 = vmatmul.mubr.f32.gmra.mrb[0].mxu0 %v1523
        %v2266 = vpop.f32.mrb[0].mxu0
        %v2267 = vadd.f32 %v2042, %v2266
        %v2268 = vpop.f32.mrb[0].mxu0
        %2269 = vmatprep.mubr.f32.mxu0 %v1527
        %2270 = vmatmul.mubr.f32.gmra.mrb[0].mxu0 %v1526
        %v2271 = vpop.f32.mrb[0].mxu0
        %v2272 = vadd.f32 %v2047, %v2271
        %v2273 = vpop.f32.mrb[0].mxu0
        %2274 = vmatprep.mubr.f32.mxu0 %v1530
        %2275 = vmatmul.mubr.f32.gmra.mrb[0].mxu0 %v1529
        %v2276 = vpop.f32.mrb[0].mxu0
        %v2277 = vadd.f32 %v2052, %v2276
        %v2278 = vpop.f32.mrb[0].mxu0
        %2279 = vmatprep.mubr.f32.mxu0 %v1533
        %2280 = vmatmul.mubr.f32.gmra.mrb[0].mxu0 %v1532
        %v2281 = vpop.f32.mrb[0].mxu0
        %v2282 = vadd.f32 %v2057, %v2281
        %v2283 = vpop.f32.mrb[0].mxu0
        %2284 = vmatprep.mubr.f32.mxu0 %v1536
        %2285 = vmatmul.mubr.f32.gmra.mrb[0].mxu0 %v1535
        %v2286 = vpop.f32.mrb[0].mxu0
        %v2287 = vadd.f32 %v2062, %v2286
        %v2288 = vpop.f32.mrb[0].mxu0
        %2289 = vmatprep.mubr.f32.mxu0 %v1539
        %2290 = vmatmul.mubr.f32.gmra.mrb[0].mxu0 %v1538
        %v2291 = vpop.f32.mrb[0].mxu0
        %v2292 = vadd.f32 %v2067, %v2291
        %v2293 = vpop.f32.mrb[0].mxu0
        %2294 = vmatprep.mubr.f32.mxu0 %v1542
        %2295 = vmatmul.mubr.f32.gmra.mrb[0].mxu0 %v1541
        %v2296 = vpop.f32.mrb[0].mxu0
        %v2297 = vadd.f32 %v2072, %v2296
        %v2298 = vpop.f32.mrb[0].mxu0
        %2299 = vmatprep.mubr.f32.mxu0 %v1545
        %2300 = vmatmul.mubr.f32.gmra.mrb[0].mxu0 %v1544
        %v2301 = vpop.f32.mrb[0].mxu0
        %v2302 = vadd.f32 %v2077, %v2301
        %v2303 = vpop.f32.mrb[0].mxu0
        %2304 = vmatprep.mubr.f32.mxu0 %v1548
        %2305 = vmatmul.mubr.f32.gmra.mrb[0].mxu0 %v1547
        %v2306 = vpop.f32.mrb[0].mxu0
        %v2307 = vadd.f32 %v2082, %v2306
        %v2308 = vpop.f32.mrb[0].mxu0
        %2309 = vmatprep.mubr.f32.mxu0 %v1551
        %2310 = vmatmul.mubr.f32.gmra.mrb[0].mxu0 %v1550
        %v2311 = vpop.f32.mrb[0].mxu0
        %v2312 = vadd.f32 %v2087, %v2311
        %v2313 = vpop.f32.mrb[0].mxu0
        %2314 = vmatprep.mubr.f32.mxu0 %v1554
        %2315 = vmatmul.mubr.f32.gmra.mrb[0].mxu0 %v1553
        %v2316 = vpop.f32.mrb[0].mxu0
        %v2317 = vadd.f32 %v2092, %v2316
        %v2318 = vpop.f32.mrb[0].mxu0
        %2319 = vmatprep.mubr.f32.mxu0 %v1557
        %2320 = vmatmul.mubr.f32.gmra.mrb[0].mxu0 %v1556
        %v2321 = vpop.f32.mrb[0].mxu0
        %v2322 = vadd.f32 %v2097, %v2321
        %v2323 = vpop.f32.mrb[0].mxu0
        %2324 = vmatprep.mubr.f32.mxu0 %v1560
        %2325 = vmatmul.mubr.f32.gmra.mrb[0].mxu0 %v1559
        %v2326 = vpop.f32.mrb[0].mxu0
        %v2327 = vadd.f32 %v2102, %v2326
        %v2328 = vpop.f32.mrb[0].mxu0
        %2329 = vmatprep.mubr.f32.mxu0 %v1563
        %2330 = vmatmul.mubr.f32.gmra.mrb[0].mxu0 %v1562
        %v2331 = vpop.f32.mrb[0].mxu0
        %v2332 = vadd.f32 %v2107, %v2331
        %v2333 = vpop.f32.mrb[0].mxu0
        %2334 = vmatprep.mubr.f32.mxu0 %v1566
        %2335 = vmatmul.mubr.f32.gmra.mrb[0].mxu0 %v1565
        %v2336 = vpop.f32.mrb[0].mxu0
        %v2337 = vadd.f32 %v2112, %v2336
        %v2338 = vpop.f32.mrb[0].mxu0
        %2339 = vmatprep.mubr.f32.mxu0 %v1569
        %2340 = vmatmul.mubr.f32.gmra.mrb[0].mxu0 %v1568
        %v2341 = vpop.f32.mrb[0].mxu0
        %v2342 = vadd.f32 %v2117, %v2341
        %v2343 = vpop.f32.mrb[0].mxu0
        %2344 = vmatprep.mubr.f32.mxu0 %v1572
        %2345 = vmatmul.mubr.f32.gmra.mrb[0].mxu0 %v1571
        %v2346 = vpop.f32.mrb[0].mxu0
        %v2347 = vadd.f32 %v2122, %v2346
        %v2348 = vpop.f32.mrb[0].mxu0
        %2349 = vmatprep.mubr.f32.mxu0 %v1575
        %2350 = vmatmul.mubr.f32.gmra.mrb[0].mxu0 %v1574
        %v2351 = vpop.f32.mrb[0].mxu0
        %v2352 = vadd.f32 %v2127, %v2351
        %v2353 = vpop.f32.mrb[0].mxu0
        %2354 = vdwg.mxu0
        %2355 = vmatprep.subr.mxu0 0.0
        %2356 = vmatpush1.msra.mxu0 %v1609
        %2357 = vmatprep.subr.mxu0 0.0
        %2358 = vmatpush1.msra.mxu0 %v1610
        %2359 = vmatprep.subr.mxu0 0.0
        %2360 = vmatpush1.msra.mxu0 %v1611
        %2361 = vmatprep.subr.mxu0 0.0
        %2362 = vmatpush1.msra.mxu0 %v1612
        %2363 = vmatprep.subr.mxu0 0.0
        %2364 = vmatpush1.msra.mxu0 %v1613
        %2365 = vmatprep.subr.mxu0 0.0
        %2366 = vmatpush1.msra.mxu0 %v1614
        %2367 = vmatprep.subr.mxu0 0.0
        %2368 = vmatpush1.msra.mxu0 %v1615
        %2369 = vmatprep.subr.mxu0 0.0
        %2370 = vmatpush1.msra.mxu0 %v1616
        %2371 = vmatprep.subr.mxu0 0.0
        %2372 = vmatpush1.msra.mxu0 %v1617
        %2373 = vmatprep.subr.mxu0 0.0
        %2374 = vmatpush1.msra.mxu0 %v1618
        %2375 = vmatprep.subr.mxu0 0.0
        %2376 = vmatpush1.msra.mxu0 %v1619
        %2377 = vmatprep.subr.mxu0 0.0
        %2378 = vmatpush1.msra.mxu0 %v1620
        %2379 = vmatprep.subr.mxu0 0.0
        %2380 = vmatpush1.msra.mxu0 %v1621
        %2381 = vmatprep.subr.mxu0 0.0
        %2382 = vmatpush1.msra.mxu0 %v1622
        %2383 = vmatprep.subr.mxu0 0.0
        %2384 = vmatpush1.msra.mxu0 %v1623
        %2385 = vmatprep.subr.mxu0 0.0
        %2386 = vmatpush1.msra.mxu0 %v1624
        %2387 = vmatprep.subr.mxu0 0.0
        %2388 = vmatpush1.msra.mxu0 0.0
        %2389 = vmatprep.subr.mxu0 0.0
        %2390 = vmatpush1.msra.mxu0 0.0
        %2391 = vmatprep.subr.mxu0 0.0
        %2392 = vmatpush1.msra.mxu0 0.0
        %2393 = vmatprep.subr.mxu0 0.0
        %2394 = vmatpush1.msra.mxu0 0.0
        %2395 = vmatprep.subr.mxu0 0.0
        %2396 = vmatpush1.msra.mxu0 0.0
        %2397 = vmatprep.subr.mxu0 0.0
        %2398 = vmatpush1.msra.mxu0 0.0
        %2399 = vmatprep.subr.mxu0 0.0
        %2400 = vmatpush1.msra.mxu0 0.0
        %2401 = vmatprep.subr.mxu0 0.0
        %2402 = vmatpush1.msra.mxu0 0.0
        %2403 = vmatprep.subr.mxu0 0.0
        %2404 = vmatpush1.msra.mxu0 0.0
        %2405 = vmatprep.subr.mxu0 0.0
        %2406 = vmatpush1.msra.mxu0 0.0
        %2407 = vmatprep.subr.mxu0 0.0
        %2408 = vmatpush1.msra.mxu0 0.0
        %2409 = vmatprep.subr.mxu0 0.0
        %2410 = vmatpush1.msra.mxu0 0.0
        %2411 = vmatprep.subr.mxu0 0.0
        %2412 = vmatpush1.msra.mxu0 0.0
        %2413 = vmatprep.subr.mxu0 0.0
        %2414 = vmatpush1.msra.mxu0 0.0
        %2415 = vmatprep.subr.mxu0 0.0
        %2416 = vmatpush1.msra.mxu0 0.0
        %2417 = vmatprep.subr.mxu0 0.0
        %2418 = vmatpush1.msra.mxu0 0.0
        %2419 = vmatprep.mubr.f32.mxu0 0.0
        %2420 = vmatmul.mubr.f32.gmra.mrb[0].mxu0 %v1483
        %v2421 = vpop.f32.mrb[0].mxu0
        %v2422 = vadd.f32 %v2197, %v2421
        %v2423 = vpop.f32.mrb[0].mxu0
        %2424 = vmatprep.mubr.f32.mxu0 0.0
        %2425 = vmatmul.mubr.f32.gmra.mrb[0].mxu0 %v1486
        %v2426 = vpop.f32.mrb[0].mxu0
        %v2427 = vadd.f32 %v2202, %v2426
        %v2428 = vpop.f32.mrb[0].mxu0
        %2429 = vmatprep.mubr.f32.mxu0 0.0
        %2430 = vmatmul.mubr.f32.gmra.mrb[0].mxu0 %v1489
        %v2431 = vpop.f32.mrb[0].mxu0
        %v2432 = vadd.f32 %v2207, %v2431
        %v2433 = vpop.f32.mrb[0].mxu0
        %2434 = vmatprep.mubr.f32.mxu0 0.0
        %2435 = vmatmul.mubr.f32.gmra.mrb[0].mxu0 %v1492
        %v2436 = vpop.f32.mrb[0].mxu0
        %v2437 = vadd.f32 %v2212, %v2436
        %v2438 = vpop.f32.mrb[0].mxu0
        %2439 = vmatprep.mubr.f32.mxu0 0.0
        %2440 = vmatmul.mubr.f32.gmra.mrb[0].mxu0 %v1495
        %v2441 = vpop.f32.mrb[0].mxu0
        %v2442 = vadd.f32 %v2217, %v2441
        %v2443 = vpop.f32.mrb[0].mxu0
        %2444 = vmatprep.mubr.f32.mxu0 0.0
        %2445 = vmatmul.mubr.f32.gmra.mrb[0].mxu0 %v1498
        %v2446 = vpop.f32.mrb[0].mxu0
        %v2447 = vadd.f32 %v2222, %v2446
        %v2448 = vpop.f32.mrb[0].mxu0
        %2449 = vmatprep.mubr.f32.mxu0 0.0
        %2450 = vmatmul.mubr.f32.gmra.mrb[0].mxu0 %v1501
        %v2451 = vpop.f32.mrb[0].mxu0
        %v2452 = vadd.f32 %v2227, %v2451
        %v2453 = vpop.f32.mrb[0].mxu0
        %2454 = vmatprep.mubr.f32.mxu0 0.0
        %2455 = vmatmul.mubr.f32.gmra.mrb[0].mxu0 %v1504
        %v2456 = vpop.f32.mrb[0].mxu0
        %v2457 = vadd.f32 %v2232, %v2456
        %v2458 = vpop.f32.mrb[0].mxu0
        %2459 = vmatprep.mubr.f32.mxu0 0.0
        %2460 = vmatmul.mubr.f32.gmra.mrb[0].mxu0 %v1507
        %v2461 = vpop.f32.mrb[0].mxu0
        %v2462 = vadd.f32 %v2237, %v2461
        %v2463 = vpop.f32.mrb[0].mxu0
        %2464 = vmatprep.mubr.f32.mxu0 0.0
        %2465 = vmatmul.mubr.f32.gmra.mrb[0].mxu0 %v1510
        %v2466 = vpop.f32.mrb[0].mxu0
        %v2467 = vadd.f32 %v2242, %v2466
        %v2468 = vpop.f32.mrb[0].mxu0
        %2469 = vmatprep.mubr.f32.mxu0 0.0
        %2470 = vmatmul.mubr.f32.gmra.mrb[0].mxu0 %v1513
        %v2471 = vpop.f32.mrb[0].mxu0
        %v2472 = vadd.f32 %v2247, %v2471
        %v2473 = vpop.f32.mrb[0].mxu0
        %2474 = vmatprep.mubr.f32.mxu0 0.0
        %2475 = vmatmul.mubr.f32.gmra.mrb[0].mxu0 %v1516
        %v2476 = vpop.f32.mrb[0].mxu0
        %v2477 = vadd.f32 %v2252, %v2476
        %v2478 = vpop.f32.mrb[0].mxu0
        %2479 = vmatprep.mubr.f32.mxu0 0.0
        %2480 = vmatmul.mubr.f32.gmra.mrb[0].mxu0 %v1519
        %v2481 = vpop.f32.mrb[0].mxu0
        %v2482 = vadd.f32 %v2257, %v2481
        %v2483 = vpop.f32.mrb[0].mxu0
        %2484 = vmatprep.mubr.f32.mxu0 0.0
        %2485 = vmatmul.mubr.f32.gmra.mrb[0].mxu0 %v1522
        %v2486 = vpop.f32.mrb[0].mxu0
        %v2487 = vadd.f32 %v2262, %v2486
        %v2488 = vpop.f32.mrb[0].mxu0
        %2489 = vmatprep.mubr.f32.mxu0 0.0
        %2490 = vmatmul.mubr.f32.gmra.mrb[0].mxu0 %v1525
        %v2491 = vpop.f32.mrb[0].mxu0
        %v2492 = vadd.f32 %v2267, %v2491
        %v2493 = vpop.f32.mrb[0].mxu0
        %2494 = vmatprep.mubr.f32.mxu0 0.0
        %2495 = vmatmul.mubr.f32.gmra.mrb[0].mxu0 %v1528
        %v2496 = vpop.f32.mrb[0].mxu0
        %v2497 = vadd.f32 %v2272, %v2496
        %v2498 = vpop.f32.mrb[0].mxu0
        %2499 = vmatprep.mubr.f32.mxu0 0.0
        %2500 = vmatmul.mubr.f32.gmra.mrb[0].mxu0 %v1531
        %v2501 = vpop.f32.mrb[0].mxu0
        %v2502 = vadd.f32 %v2277, %v2501
        %v2503 = vpop.f32.mrb[0].mxu0
        %2504 = vmatprep.mubr.f32.mxu0 0.0
        %2505 = vmatmul.mubr.f32.gmra.mrb[0].mxu0 %v1534
        %v2506 = vpop.f32.mrb[0].mxu0
        %v2507 = vadd.f32 %v2282, %v2506
        %v2508 = vpop.f32.mrb[0].mxu0
        %2509 = vmatprep.mubr.f32.mxu0 0.0
        %2510 = vmatmul.mubr.f32.gmra.mrb[0].mxu0 %v1537
        %v2511 = vpop.f32.mrb[0].mxu0
        %v2512 = vadd.f32 %v2287, %v2511
        %v2513 = vpop.f32.mrb[0].mxu0
        %2514 = vmatprep.mubr.f32.mxu0 0.0
        %2515 = vmatmul.mubr.f32.gmra.mrb[0].mxu0 %v1540
        %v2516 = vpop.f32.mrb[0].mxu0
        %v2517 = vadd.f32 %v2292, %v2516
        %v2518 = vpop.f32.mrb[0].mxu0
        %2519 = vmatprep.mubr.f32.mxu0 0.0
        %2520 = vmatmul.mubr.f32.gmra.mrb[0].mxu0 %v1543
        %v2521 = vpop.f32.mrb[0].mxu0
        %v2522 = vadd.f32 %v2297, %v2521
        %v2523 = vpop.f32.mrb[0].mxu0
        %2524 = vmatprep.mubr.f32.mxu0 0.0
        %2525 = vmatmul.mubr.f32.gmra.mrb[0].mxu0 %v1546
        %v2526 = vpop.f32.mrb[0].mxu0
        %v2527 = vadd.f32 %v2302, %v2526
        %v2528 = vpop.f32.mrb[0].mxu0
        %2529 = vmatprep.mubr.f32.mxu0 0.0
        %2530 = vmatmul.mubr.f32.gmra.mrb[0].mxu0 %v1549
        %v2531 = vpop.f32.mrb[0].mxu0
        %v2532 = vadd.f32 %v2307, %v2531
        %v2533 = vpop.f32.mrb[0].mxu0
        %2534 = vmatprep.mubr.f32.mxu0 0.0
        %2535 = vmatmul.mubr.f32.gmra.mrb[0].mxu0 %v1552
        %v2536 = vpop.f32.mrb[0].mxu0
        %v2537 = vadd.f32 %v2312, %v2536
        %v2538 = vpop.f32.mrb[0].mxu0
        %2539 = vmatprep.mubr.f32.mxu0 0.0
        %2540 = vmatmul.mubr.f32.gmra.mrb[0].mxu0 %v1555
        %v2541 = vpop.f32.mrb[0].mxu0
        %v2542 = vadd.f32 %v2317, %v2541
        %v2543 = vpop.f32.mrb[0].mxu0
        %2544 = vmatprep.mubr.f32.mxu0 0.0
        %2545 = vmatmul.mubr.f32.gmra.mrb[0].mxu0 %v1558
        %v2546 = vpop.f32.mrb[0].mxu0
        %v2547 = vadd.f32 %v2322, %v2546
        %v2548 = vpop.f32.mrb[0].mxu0
        %2549 = vmatprep.mubr.f32.mxu0 0.0
        %2550 = vmatmul.mubr.f32.gmra.mrb[0].mxu0 %v1561
        %v2551 = vpop.f32.mrb[0].mxu0
        %v2552 = vadd.f32 %v2327, %v2551
        %v2553 = vpop.f32.mrb[0].mxu0
        %2554 = vmatprep.mubr.f32.mxu0 0.0
        %2555 = vmatmul.mubr.f32.gmra.mrb[0].mxu0 %v1564
        %v2556 = vpop.f32.mrb[0].mxu0
        %v2557 = vadd.f32 %v2332, %v2556
        %v2558 = vpop.f32.mrb[0].mxu0
        %2559 = vmatprep.mubr.f32.mxu0 0.0
        %2560 = vmatmul.mubr.f32.gmra.mrb[0].mxu0 %v1567
        %v2561 = vpop.f32.mrb[0].mxu0
        %v2562 = vadd.f32 %v2337, %v2561
        %v2563 = vpop.f32.mrb[0].mxu0
        %2564 = vmatprep.mubr.f32.mxu0 0.0
        %2565 = vmatmul.mubr.f32.gmra.mrb[0].mxu0 %v1570
        %v2566 = vpop.f32.mrb[0].mxu0
        %v2567 = vadd.f32 %v2342, %v2566
        %v2568 = vpop.f32.mrb[0].mxu0
        %2569 = vmatprep.mubr.f32.mxu0 0.0
        %2570 = vmatmul.mubr.f32.gmra.mrb[0].mxu0 %v1573
        %v2571 = vpop.f32.mrb[0].mxu0
        %v2572 = vadd.f32 %v2347, %v2571
        %v2573 = vpop.f32.mrb[0].mxu0
        %2574 = vmatprep.mubr.f32.mxu0 0.0
        %2575 = vmatmul.mubr.f32.gmra.mrb[0].mxu0 %v1576
        %v2576 = vpop.f32.mrb[0].mxu0
        %v2577 = vadd.f32 %v2352, %v2576
        %v2578 = vpop.f32.mrb[0].mxu0
        %2579 = vdwg.mxu0
        %v2580 = vld [vmem:[#allocation2 + $0x60] sm:$0xff]
        %v2581 = vld [vmem:[#allocation2 + $0x68] sm:$0xff]
        %v2582 = vld [vmem:[#allocation2 + $0x70] sm:$0xff]
        %v2583 = vld [vmem:[#allocation2 + $0x78] sm:$0xff]
        %v2584 = vld [vmem:[#allocation2 + $0x80] sm:$0xff]
        %v2585 = vld [vmem:[#allocation2 + $0x88] sm:$0xff]
        %v2586 = vld [vmem:[#allocation2 + $0x90] sm:$0xff]
        %v2587 = vld [vmem:[#allocation2 + $0x98] sm:$0xff]
        %v2588 = vld [vmem:[#allocation2 + $0xa0] sm:$0xff]
        %v2589 = vld [vmem:[#allocation2 + $0xa8] sm:$0xff]
        %v2590 = vld [vmem:[#allocation2 + $0xb0] sm:$0xff]
        %v2591 = vld [vmem:[#allocation2 + $0xb8] sm:$0xff]
        %v2592 = vld [vmem:[#allocation2 + $0xc0] sm:$0xff]
        %v2593 = vld [vmem:[#allocation2 + $0xc8] sm:$0xff]
        %v2594 = vld [vmem:[#allocation2 + $0xd0] sm:$0xff]
        %v2595 = vld [vmem:[#allocation2 + $0xd8] sm:$0xff]
        %v2596 = vld [vmem:[#allocation2 + $0xe0] sm:$0xff]
        %v2597 = vld [vmem:[#allocation2 + $0xe8] sm:$0xff]
        %v2598 = vld [vmem:[#allocation2 + $0xf0] sm:$0xff]
        %v2599 = vld [vmem:[#allocation2 + $0xf8] sm:$0xff]
        %v2600 = vld [vmem:[#allocation2 + $0x100] sm:$0xff]
        %v2601 = vld [vmem:[#allocation2 + $0x108] sm:$0xff]
        %v2602 = vld [vmem:[#allocation2 + $0x110] sm:$0xff]
        %v2603 = vld [vmem:[#allocation2 + $0x118] sm:$0xff]
        %v2604 = vld [vmem:[#allocation2 + $0x120] sm:$0xff]
        %v2605 = vld [vmem:[#allocation2 + $0x128] sm:$0xff]
        %v2606 = vld [vmem:[#allocation2 + $0x130] sm:$0xff]
        %v2607 = vld [vmem:[#allocation2 + $0x138] sm:$0xff]
        %v2608 = vld [vmem:[#allocation2 + $0x140] sm:$0xff]
        %v2609 = vld [vmem:[#allocation2 + $0x148] sm:$0xff]
        %v2610 = vld [vmem:[#allocation2 + $0x150] sm:$0xff]
        %v2611 = vld [vmem:[#allocation2 + $0x158] sm:$0xff]
        %v2612 = vld [vmem:[#allocation2 + $0x160] sm:$0xff]
        %v2613 = vld [vmem:[#allocation2 + $0x168] sm:$0xff]
        %v2614 = vld [vmem:[#allocation2 + $0x170] sm:$0xff]
        %v2615 = vld [vmem:[#allocation2 + $0x178] sm:$0xff]
        %v2616 = vld [vmem:[#allocation2 + $0x180] sm:$0xff]
        %v2617 = vld [vmem:[#allocation2 + $0x188] sm:$0xff]
        %v2618 = vld [vmem:[#allocation2 + $0x190] sm:$0xff]
        %v2619 = vld [vmem:[#allocation2 + $0x198] sm:$0xff]
        %v2620 = vld [vmem:[#allocation2 + $0x1a0] sm:$0xff]
        %v2621 = vld [vmem:[#allocation2 + $0x1a8] sm:$0xff]
        %v2622 = vld [vmem:[#allocation2 + $0x1b0] sm:$0xff]
        %v2623 = vld [vmem:[#allocation2 + $0x1b8] sm:$0xff]
        %v2624 = vld [vmem:[#allocation2 + $0x1c0] sm:$0xff]
        %v2625 = vld [vmem:[#allocation2 + $0x1c8] sm:$0xff]
        %v2626 = vld [vmem:[#allocation2 + $0x1d0] sm:$0xff]
        %v2627 = vld [vmem:[#allocation2 + $0x1d8] sm:$0xff]
        %v2628 = vld [vmem:[#allocation2 + $0x1e0] sm:$0xff]
        %v2629 = vld [vmem:[#allocation2 + $0x1e8] sm:$0xff]
        %v2630 = vld [vmem:[#allocation2 + $0x1f0] sm:$0xff]
        %v2631 = vld [vmem:[#allocation2 + $0x1f8] sm:$0xff]
        %v2632 = vld [vmem:[#allocation2 + $0x200] sm:$0xff]
        %v2633 = vld [vmem:[#allocation2 + $0x208] sm:$0xff]
        %v2634 = vld [vmem:[#allocation2 + $0x210] sm:$0xff]
        %v2635 = vld [vmem:[#allocation2 + $0x218] sm:$0xff]
        %v2636 = vld [vmem:[#allocation2 + $0x220] sm:$0xff]
        %v2637 = vld [vmem:[#allocation2 + $0x228] sm:$0xff]
        %v2638 = vld [vmem:[#allocation2 + $0x230] sm:$0xff]
        %v2639 = vld [vmem:[#allocation2 + $0x238] sm:$0xff]
        %v2640 = vld [vmem:[#allocation2 + $0x240] sm:$0xff]
        %v2641 = vld [vmem:[#allocation2 + $0x248] sm:$0xff]
        %v2642 = vld [vmem:[#allocation2 + $0x250] sm:$0xff]
        %v2643 = vld [vmem:[#allocation2 + $0x258] sm:$0xff]
        %v2644 = vld [vmem:[#allocation2 + $0x260] sm:$0xff]
        %v2645 = vld [vmem:[#allocation2 + $0x268] sm:$0xff]
        %v2646 = vld [vmem:[#allocation2 + $0x270] sm:$0xff]
        %v2647 = vld [vmem:[#allocation2 + $0x278] sm:$0xff]
        %v2648 = vld [vmem:[#allocation2 + $0x280] sm:$0xff]
        %v2649 = vld [vmem:[#allocation2 + $0x288] sm:$0xff]
        %v2650 = vld [vmem:[#allocation2 + $0x290] sm:$0xff]
        %v2651 = vld [vmem:[#allocation2 + $0x298] sm:$0xff]
        %v2652 = vld [vmem:[#allocation2 + $0x2a0] sm:$0xff]
        %v2653 = vld [vmem:[#allocation2 + $0x2a8] sm:$0xff]
        %v2654 = vld [vmem:[#allocation2 + $0x2b0] sm:$0xff]
        %v2655 = vld [vmem:[#allocation2 + $0x2b8] sm:$0xff]
        %v2656 = vld [vmem:[#allocation2 + $0x2c0] sm:$0xff]
        %v2657 = vld [vmem:[#allocation2 + $0x2c8] sm:$0xff]
        %v2658 = vld [vmem:[#allocation2 + $0x2d0] sm:$0xff]
        %v2659 = vld [vmem:[#allocation2 + $0x2d8] sm:$0xff]
        %v2660 = vld [vmem:[#allocation2 + $0x2e0] sm:$0xff]
        %v2661 = vld [vmem:[#allocation2 + $0x2e8] sm:$0xff]
        %v2662 = vld [vmem:[#allocation2 + $0x2f0] sm:$0xff]
        %v2663 = vld [vmem:[#allocation2 + $0x2f8] sm:$0xff]
        %v2664 = vld [vmem:[#allocation2 + $0x300] sm:$0xff]
        %v2665 = vld [vmem:[#allocation2 + $0x308] sm:$0xff]
        %v2666 = vld [vmem:[#allocation2 + $0x310] sm:$0xff]
        %v2667 = vld [vmem:[#allocation2 + $0x318] sm:$0xff]
        %v2668 = vld [vmem:[#allocation2 + $0x320] sm:$0xff]
        %v2669 = vld [vmem:[#allocation2 + $0x328] sm:$0xff]
        %v2670 = vld [vmem:[#allocation2 + $0x330] sm:$0xff]
        %v2671 = vld [vmem:[#allocation2 + $0x338] sm:$0xff]
        %v2672 = vld [vmem:[#allocation2 + $0x340] sm:$0xff]
        %v2673 = vld [vmem:[#allocation2 + $0x348] sm:$0xff]
        %v2674 = vld [vmem:[#allocation2 + $0x350] sm:$0xff]
        %v2675 = vld [vmem:[#allocation2 + $0x358] sm:$0xff]
        %s2676 = scalar_lea.vmem [#allocation9], 768
        %v2677 = vld [vmem:[%s2676] sm:$0xff]
        %v2678 = vld [vmem:[%s2676 + $0x8] sm:$0xff]
        %v2679 = vld [vmem:[%s2676 + $0x10] sm:$0xff]
        %v2680 = vld [vmem:[%s2676 + $0x18] sm:$0xff]
        %v2681 = vld [vmem:[%s2676 + $0x20] sm:$0xff]
        %v2682 = vld [vmem:[%s2676 + $0x28] sm:$0xff]
        %v2683 = vld [vmem:[%s2676 + $0x30] sm:$0xff]
        %v2684 = vld [vmem:[%s2676 + $0x38] sm:$0xff]
        %v2685 = vld [vmem:[%s2676 + $0x40] sm:$0xff]
        %v2686 = vld [vmem:[%s2676 + $0x48] sm:$0xff]
        %v2687 = vld [vmem:[%s2676 + $0x50] sm:$0xff]
        %v2688 = vld [vmem:[%s2676 + $0x58] sm:$0xff]
        %v2689 = vld [vmem:[%s2676 + $0x60] sm:$0xff]
        %v2690 = vld [vmem:[%s2676 + $0x68] sm:$0xff]
        %v2691 = vld [vmem:[%s2676 + $0x70] sm:$0xff]
        %v2692 = vld [vmem:[%s2676 + $0x78] sm:$0xff]
        %v2693 = vld [vmem:[%s2676 + $0x80] sm:$0xff]
        %v2694 = vld [vmem:[%s2676 + $0x88] sm:$0xff]
        %v2695 = vld [vmem:[%s2676 + $0x90] sm:$0xff]
        %v2696 = vld [vmem:[%s2676 + $0x98] sm:$0xff]
        %v2697 = vld [vmem:[%s2676 + $0xa0] sm:$0xff]
        %v2698 = vld [vmem:[%s2676 + $0xa8] sm:$0xff]
        %v2699 = vld [vmem:[%s2676 + $0xb0] sm:$0xff]
        %v2700 = vld [vmem:[%s2676 + $0xb8] sm:$0xff]
        %v2701 = vld [vmem:[%s2676 + $0xc0] sm:$0xff]
        %v2702 = vld [vmem:[%s2676 + $0xc8] sm:$0xff]
        %v2703 = vld [vmem:[%s2676 + $0xd0] sm:$0xff]
        %v2704 = vld [vmem:[%s2676 + $0xd8] sm:$0xff]
        %v2705 = vld [vmem:[%s2676 + $0xe0] sm:$0xff]
        %v2706 = vld [vmem:[%s2676 + $0xe8] sm:$0xff]
        %v2707 = vld [vmem:[%s2676 + $0xf0] sm:$0xff]
        %v2708 = vld [vmem:[%s2676 + $0xf8] sm:$0xff]
        %v2709 = vld [vmem:[%s2676 + $0x100] sm:$0xff]
        %v2710 = vld [vmem:[%s2676 + $0x108] sm:$0xff]
        %v2711 = vld [vmem:[%s2676 + $0x110] sm:$0xff]
        %v2712 = vld [vmem:[%s2676 + $0x118] sm:$0xff]
        %v2713 = vld [vmem:[%s2676 + $0x120] sm:$0xff]
        %v2714 = vld [vmem:[%s2676 + $0x128] sm:$0xff]
        %v2715 = vld [vmem:[%s2676 + $0x130] sm:$0xff]
        %v2716 = vld [vmem:[%s2676 + $0x138] sm:$0xff]
        %v2717 = vld [vmem:[%s2676 + $0x140] sm:$0xff]
        %v2718 = vld [vmem:[%s2676 + $0x148] sm:$0xff]
        %v2719 = vld [vmem:[%s2676 + $0x150] sm:$0xff]
        %v2720 = vld [vmem:[%s2676 + $0x158] sm:$0xff]
        %v2721 = vld [vmem:[%s2676 + $0x160] sm:$0xff]
        %v2722 = vld [vmem:[%s2676 + $0x168] sm:$0xff]
        %v2723 = vld [vmem:[%s2676 + $0x170] sm:$0xff]
        %v2724 = vld [vmem:[%s2676 + $0x178] sm:$0xff]
        %2725 = vmatprep.subr.mxu0 0.0
        %2726 = vmatpush1.msra.mxu0 %v2677
        %2727 = vmatprep.subr.mxu0 0.0
        %2728 = vmatpush1.msra.mxu0 %v2678
        %2729 = vmatprep.subr.mxu0 0.0
        %2730 = vmatpush1.msra.mxu0 %v2679
        %2731 = vmatprep.subr.mxu0 0.0
        %2732 = vmatpush1.msra.mxu0 %v2680
        %2733 = vmatprep.subr.mxu0 0.0
        %2734 = vmatpush1.msra.mxu0 %v2681
        %2735 = vmatprep.subr.mxu0 0.0
        %2736 = vmatpush1.msra.mxu0 %v2682
        %2737 = vmatprep.subr.mxu0 0.0
        %2738 = vmatpush1.msra.mxu0 %v2683
        %2739 = vmatprep.subr.mxu0 0.0
        %2740 = vmatpush1.msra.mxu0 %v2684
        %2741 = vmatprep.subr.mxu0 0.0
        %2742 = vmatpush1.msra.mxu0 %v2685
        %2743 = vmatprep.subr.mxu0 0.0
        %2744 = vmatpush1.msra.mxu0 %v2686
        %2745 = vmatprep.subr.mxu0 0.0
        %2746 = vmatpush1.msra.mxu0 %v2687
        %2747 = vmatprep.subr.mxu0 0.0
        %2748 = vmatpush1.msra.mxu0 %v2688
        %2749 = vmatprep.subr.mxu0 0.0
        %2750 = vmatpush1.msra.mxu0 %v2689
        %2751 = vmatprep.subr.mxu0 0.0
        %2752 = vmatpush1.msra.mxu0 %v2690
        %2753 = vmatprep.subr.mxu0 0.0
        %2754 = vmatpush1.msra.mxu0 %v2691
        %2755 = vmatprep.subr.mxu0 0.0
        %2756 = vmatpush1.msra.mxu0 %v2692
        %2757 = vmatprep.subr.mxu0 0.0
        %2758 = vmatpush1.msra.mxu0 %v2693
        %2759 = vmatprep.subr.mxu0 0.0
        %2760 = vmatpush1.msra.mxu0 %v2694
        %2761 = vmatprep.subr.mxu0 0.0
        %2762 = vmatpush1.msra.mxu0 %v2695
        %2763 = vmatprep.subr.mxu0 0.0
        %2764 = vmatpush1.msra.mxu0 %v2696
        %2765 = vmatprep.subr.mxu0 0.0
        %2766 = vmatpush1.msra.mxu0 %v2697
        %2767 = vmatprep.subr.mxu0 0.0
        %2768 = vmatpush1.msra.mxu0 %v2698
        %2769 = vmatprep.subr.mxu0 0.0
        %2770 = vmatpush1.msra.mxu0 %v2699
        %2771 = vmatprep.subr.mxu0 0.0
        %2772 = vmatpush1.msra.mxu0 %v2700
        %2773 = vmatprep.subr.mxu0 0.0
        %2774 = vmatpush1.msra.mxu0 %v2701
        %2775 = vmatprep.subr.mxu0 0.0
        %2776 = vmatpush1.msra.mxu0 %v2702
        %2777 = vmatprep.subr.mxu0 0.0
        %2778 = vmatpush1.msra.mxu0 %v2703
        %2779 = vmatprep.subr.mxu0 0.0
        %2780 = vmatpush1.msra.mxu0 %v2704
        %2781 = vmatprep.subr.mxu0 0.0
        %2782 = vmatpush1.msra.mxu0 %v2705
        %2783 = vmatprep.subr.mxu0 0.0
        %2784 = vmatpush1.msra.mxu0 %v2706
        %2785 = vmatprep.subr.mxu0 0.0
        %2786 = vmatpush1.msra.mxu0 %v2707
        %2787 = vmatprep.subr.mxu0 0.0
        %2788 = vmatpush1.msra.mxu0 %v2708
        %2789 = vmatprep.mubr.f32.mxu0 %v2581
        %2790 = vmatmul.mubr.f32.gmra.mrb[0].mxu0 %v2580
        %v2791 = vpop.f32.mrb[0].mxu0
        %v2792 = vadd.f32 0.0, %v2791
        %v2793 = vpop.f32.mrb[0].mxu0
        %2794 = vmatprep.mubr.f32.mxu0 %v2584
        %2795 = vmatmul.mubr.f32.gmra.mrb[0].mxu0 %v2583
        %v2796 = vpop.f32.mrb[0].mxu0
        %v2797 = vadd.f32 0.0, %v2796
        %v2798 = vpop.f32.mrb[0].mxu0
        %2799 = vmatprep.mubr.f32.mxu0 %v2587
        %2800 = vmatmul.mubr.f32.gmra.mrb[0].mxu0 %v2586
        %v2801 = vpop.f32.mrb[0].mxu0
        %v2802 = vadd.f32 0.0, %v2801
        %v2803 = vpop.f32.mrb[0].mxu0
        %2804 = vmatprep.mubr.f32.mxu0 %v2590
        %2805 = vmatmul.mubr.f32.gmra.mrb[0].mxu0 %v2589
        %v2806 = vpop.f32.mrb[0].mxu0
        %v2807 = vadd.f32 0.0, %v2806
        %v2808 = vpop.f32.mrb[0].mxu0
        %2809 = vmatprep.mubr.f32.mxu0 %v2593
        %2810 = vmatmul.mubr.f32.gmra.mrb[0].mxu0 %v2592
        %v2811 = vpop.f32.mrb[0].mxu0
        %v2812 = vadd.f32 0.0, %v2811
        %v2813 = vpop.f32.mrb[0].mxu0
        %2814 = vmatprep.mubr.f32.mxu0 %v2596
        %2815 = vmatmul.mubr.f32.gmra.mrb[0].mxu0 %v2595
        %v2816 = vpop.f32.mrb[0].mxu0
        %v2817 = vadd.f32 0.0, %v2816
        %v2818 = vpop.f32.mrb[0].mxu0
        %2819 = vmatprep.mubr.f32.mxu0 %v2599
        %2820 = vmatmul.mubr.f32.gmra.mrb[0].mxu0 %v2598
        %v2821 = vpop.f32.mrb[0].mxu0
        %v2822 = vadd.f32 0.0, %v2821
        %v2823 = vpop.f32.mrb[0].mxu0
        %2824 = vmatprep.mubr.f32.mxu0 %v2602
        %2825 = vmatmul.mubr.f32.gmra.mrb[0].mxu0 %v2601
        %v2826 = vpop.f32.mrb[0].mxu0
        %v2827 = vadd.f32 0.0, %v2826
        %v2828 = vpop.f32.mrb[0].mxu0
        %2829 = vmatprep.mubr.f32.mxu0 %v2605
        %2830 = vmatmul.mubr.f32.gmra.mrb[0].mxu0 %v2604
        %v2831 = vpop.f32.mrb[0].mxu0
        %v2832 = vadd.f32 0.0, %v2831
        %v2833 = vpop.f32.mrb[0].mxu0
        %2834 = vmatprep.mubr.f32.mxu0 %v2608
        %2835 = vmatmul.mubr.f32.gmra.mrb[0].mxu0 %v2607
        %v2836 = vpop.f32.mrb[0].mxu0
        %v2837 = vadd.f32 0.0, %v2836
        %v2838 = vpop.f32.mrb[0].mxu0
        %2839 = vmatprep.mubr.f32.mxu0 %v2611
        %2840 = vmatmul.mubr.f32.gmra.mrb[0].mxu0 %v2610
        %v2841 = vpop.f32.mrb[0].mxu0
        %v2842 = vadd.f32 0.0, %v2841
        %v2843 = vpop.f32.mrb[0].mxu0
        %2844 = vmatprep.mubr.f32.mxu0 %v2614
        %2845 = vmatmul.mubr.f32.gmra.mrb[0].mxu0 %v2613
        %v2846 = vpop.f32.mrb[0].mxu0
        %v2847 = vadd.f32 0.0, %v2846
        %v2848 = vpop.f32.mrb[0].mxu0
        %2849 = vmatprep.mubr.f32.mxu0 %v2617
        %2850 = vmatmul.mubr.f32.gmra.mrb[0].mxu0 %v2616
        %v2851 = vpop.f32.mrb[0].mxu0
        %v2852 = vadd.f32 0.0, %v2851
        %v2853 = vpop.f32.mrb[0].mxu0
        %2854 = vmatprep.mubr.f32.mxu0 %v2620
        %2855 = vmatmul.mubr.f32.gmra.mrb[0].mxu0 %v2619
        %v2856 = vpop.f32.mrb[0].mxu0
        %v2857 = vadd.f32 0.0, %v2856
        %v2858 = vpop.f32.mrb[0].mxu0
        %2859 = vmatprep.mubr.f32.mxu0 %v2623
        %2860 = vmatmul.mubr.f32.gmra.mrb[0].mxu0 %v2622
        %v2861 = vpop.f32.mrb[0].mxu0
        %v2862 = vadd.f32 0.0, %v2861
        %v2863 = vpop.f32.mrb[0].mxu0
        %2864 = vmatprep.mubr.f32.mxu0 %v2626
        %2865 = vmatmul.mubr.f32.gmra.mrb[0].mxu0 %v2625
        %v2866 = vpop.f32.mrb[0].mxu0
        %v2867 = vadd.f32 0.0, %v2866
        %v2868 = vpop.f32.mrb[0].mxu0
        %2869 = vmatprep.mubr.f32.mxu0 %v2629
        %2870 = vmatmul.mubr.f32.gmra.mrb[0].mxu0 %v2628
        %v2871 = vpop.f32.mrb[0].mxu0
        %v2872 = vadd.f32 0.0, %v2871
        %v2873 = vpop.f32.mrb[0].mxu0
        %2874 = vmatprep.mubr.f32.mxu0 %v2632
        %2875 = vmatmul.mubr.f32.gmra.mrb[0].mxu0 %v2631
        %v2876 = vpop.f32.mrb[0].mxu0
        %v2877 = vadd.f32 0.0, %v2876
        %v2878 = vpop.f32.mrb[0].mxu0
        %2879 = vmatprep.mubr.f32.mxu0 %v2635
        %2880 = vmatmul.mubr.f32.gmra.mrb[0].mxu0 %v2634
        %v2881 = vpop.f32.mrb[0].mxu0
        %v2882 = vadd.f32 0.0, %v2881
        %v2883 = vpop.f32.mrb[0].mxu0
        %2884 = vmatprep.mubr.f32.mxu0 %v2638
        %2885 = vmatmul.mubr.f32.gmra.mrb[0].mxu0 %v2637
        %v2886 = vpop.f32.mrb[0].mxu0
        %v2887 = vadd.f32 0.0, %v2886
        %v2888 = vpop.f32.mrb[0].mxu0
        %2889 = vmatprep.mubr.f32.mxu0 %v2641
        %2890 = vmatmul.mubr.f32.gmra.mrb[0].mxu0 %v2640
        %v2891 = vpop.f32.mrb[0].mxu0
        %v2892 = vadd.f32 0.0, %v2891
        %v2893 = vpop.f32.mrb[0].mxu0
        %2894 = vmatprep.mubr.f32.mxu0 %v2644
        %2895 = vmatmul.mubr.f32.gmra.mrb[0].mxu0 %v2643
        %v2896 = vpop.f32.mrb[0].mxu0
        %v2897 = vadd.f32 0.0, %v2896
        %v2898 = vpop.f32.mrb[0].mxu0
        %2899 = vmatprep.mubr.f32.mxu0 %v2647
        %2900 = vmatmul.mubr.f32.gmra.mrb[0].mxu0 %v2646
        %v2901 = vpop.f32.mrb[0].mxu0
        %v2902 = vadd.f32 0.0, %v2901
        %v2903 = vpop.f32.mrb[0].mxu0
        %2904 = vmatprep.mubr.f32.mxu0 %v2650
        %2905 = vmatmul.mubr.f32.gmra.mrb[0].mxu0 %v2649
        %v2906 = vpop.f32.mrb[0].mxu0
        %v2907 = vadd.f32 0.0, %v2906
        %v2908 = vpop.f32.mrb[0].mxu0
        %2909 = vmatprep.mubr.f32.mxu0 %v2653
        %2910 = vmatmul.mubr.f32.gmra.mrb[0].mxu0 %v2652
        %v2911 = vpop.f32.mrb[0].mxu0
        %v2912 = vadd.f32 0.0, %v2911
        %v2913 = vpop.f32.mrb[0].mxu0
        %2914 = vmatprep.mubr.f32.mxu0 %v2656
        %2915 = vmatmul.mubr.f32.gmra.mrb[0].mxu0 %v2655
        %v2916 = vpop.f32.mrb[0].mxu0
        %v2917 = vadd.f32 0.0, %v2916
        %v2918 = vpop.f32.mrb[0].mxu0
        %2919 = vmatprep.mubr.f32.mxu0 %v2659
        %2920 = vmatmul.mubr.f32.gmra.mrb[0].mxu0 %v2658
        %v2921 = vpop.f32.mrb[0].mxu0
        %v2922 = vadd.f32 0.0, %v2921
        %v2923 = vpop.f32.mrb[0].mxu0
        %2924 = vmatprep.mubr.f32.mxu0 %v2662
        %2925 = vmatmul.mubr.f32.gmra.mrb[0].mxu0 %v2661
        %v2926 = vpop.f32.mrb[0].mxu0
        %v2927 = vadd.f32 0.0, %v2926
        %v2928 = vpop.f32.mrb[0].mxu0
        %2929 = vmatprep.mubr.f32.mxu0 %v2665
        %2930 = vmatmul.mubr.f32.gmra.mrb[0].mxu0 %v2664
        %v2931 = vpop.f32.mrb[0].mxu0
        %v2932 = vadd.f32 0.0, %v2931
        %v2933 = vpop.f32.mrb[0].mxu0
        %2934 = vmatprep.mubr.f32.mxu0 %v2668
        %2935 = vmatmul.mubr.f32.gmra.mrb[0].mxu0 %v2667
        %v2936 = vpop.f32.mrb[0].mxu0
        %v2937 = vadd.f32 0.0, %v2936
        %v2938 = vpop.f32.mrb[0].mxu0
        %2939 = vmatprep.mubr.f32.mxu0 %v2671
        %2940 = vmatmul.mubr.f32.gmra.mrb[0].mxu0 %v2670
        %v2941 = vpop.f32.mrb[0].mxu0
        %v2942 = vadd.f32 0.0, %v2941
        %v2943 = vpop.f32.mrb[0].mxu0
        %2944 = vmatprep.mubr.f32.mxu0 %v2674
        %2945 = vmatmul.mubr.f32.gmra.mrb[0].mxu0 %v2673
        %v2946 = vpop.f32.mrb[0].mxu0
        %v2947 = vadd.f32 0.0, %v2946
        %v2948 = vpop.f32.mrb[0].mxu0
        %2949 = vdwg.mxu0
        %2950 = vmatprep.subr.mxu0 0.0
        %2951 = vmatpush1.msra.mxu0 %v2709
        %2952 = vmatprep.subr.mxu0 0.0
        %2953 = vmatpush1.msra.mxu0 %v2710
        %2954 = vmatprep.subr.mxu0 0.0
        %2955 = vmatpush1.msra.mxu0 %v2711
        %2956 = vmatprep.subr.mxu0 0.0
        %2957 = vmatpush1.msra.mxu0 %v2712
        %2958 = vmatprep.subr.mxu0 0.0
        %2959 = vmatpush1.msra.mxu0 %v2713
        %2960 = vmatprep.subr.mxu0 0.0
        %2961 = vmatpush1.msra.mxu0 %v2714
        %2962 = vmatprep.subr.mxu0 0.0
        %2963 = vmatpush1.msra.mxu0 %v2715
        %2964 = vmatprep.subr.mxu0 0.0
        %2965 = vmatpush1.msra.mxu0 %v2716
        %2966 = vmatprep.subr.mxu0 0.0
        %2967 = vmatpush1.msra.mxu0 %v2717
        %2968 = vmatprep.subr.mxu0 0.0
        %2969 = vmatpush1.msra.mxu0 %v2718
        %2970 = vmatprep.subr.mxu0 0.0
        %2971 = vmatpush1.msra.mxu0 %v2719
        %2972 = vmatprep.subr.mxu0 0.0
        %2973 = vmatpush1.msra.mxu0 %v2720
        %2974 = vmatprep.subr.mxu0 0.0
        %2975 = vmatpush1.msra.mxu0 %v2721
        %2976 = vmatprep.subr.mxu0 0.0
        %2977 = vmatpush1.msra.mxu0 %v2722
        %2978 = vmatprep.subr.mxu0 0.0
        %2979 = vmatpush1.msra.mxu0 %v2723
        %2980 = vmatprep.subr.mxu0 0.0
        %2981 = vmatpush1.msra.mxu0 %v2724
        %2982 = vmatprep.subr.mxu0 0.0
        %2983 = vmatpush1.msra.mxu0 0.0
        %2984 = vmatprep.subr.mxu0 0.0
        %2985 = vmatpush1.msra.mxu0 0.0
        %2986 = vmatprep.subr.mxu0 0.0
        %2987 = vmatpush1.msra.mxu0 0.0
        %2988 = vmatprep.subr.mxu0 0.0
        %2989 = vmatpush1.msra.mxu0 0.0
        %2990 = vmatprep.subr.mxu0 0.0
        %2991 = vmatpush1.msra.mxu0 0.0
        %2992 = vmatprep.subr.mxu0 0.0
        %2993 = vmatpush1.msra.mxu0 0.0
        %2994 = vmatprep.subr.mxu0 0.0
        %2995 = vmatpush1.msra.mxu0 0.0
        %2996 = vmatprep.subr.mxu0 0.0
        %2997 = vmatpush1.msra.mxu0 0.0
        %2998 = vmatprep.subr.mxu0 0.0
        %2999 = vmatpush1.msra.mxu0 0.0
        %3000 = vmatprep.subr.mxu0 0.0
        %3001 = vmatpush1.msra.mxu0 0.0
        %3002 = vmatprep.subr.mxu0 0.0
        %3003 = vmatpush1.msra.mxu0 0.0
        %3004 = vmatprep.subr.mxu0 0.0
        %3005 = vmatpush1.msra.mxu0 0.0
        %3006 = vmatprep.subr.mxu0 0.0
        %3007 = vmatpush1.msra.mxu0 0.0
        %3008 = vmatprep.subr.mxu0 0.0
        %3009 = vmatpush1.msra.mxu0 0.0
        %3010 = vmatprep.subr.mxu0 0.0
        %3011 = vmatpush1.msra.mxu0 0.0
        %3012 = vmatprep.subr.mxu0 0.0
        %3013 = vmatpush1.msra.mxu0 0.0
        %3014 = vmatprep.mubr.f32.mxu0 0.0
        %3015 = vmatmul.mubr.f32.gmra.mrb[0].mxu0 %v2582
        %v3016 = vpop.f32.mrb[0].mxu0
        %v3017 = vadd.f32 %v2792, %v3016
        %v3018 = vpop.f32.mrb[0].mxu0
        %3019 = vmatprep.mubr.f32.mxu0 0.0
        %3020 = vmatmul.mubr.f32.gmra.mrb[0].mxu0 %v2585
        %v3021 = vpop.f32.mrb[0].mxu0
        %v3022 = vadd.f32 %v2797, %v3021
        %v3023 = vpop.f32.mrb[0].mxu0
        %3024 = vmatprep.mubr.f32.mxu0 0.0
        %3025 = vmatmul.mubr.f32.gmra.mrb[0].mxu0 %v2588
        %v3026 = vpop.f32.mrb[0].mxu0
        %v3027 = vadd.f32 %v2802, %v3026
        %v3028 = vpop.f32.mrb[0].mxu0
        %3029 = vmatprep.mubr.f32.mxu0 0.0
        %3030 = vmatmul.mubr.f32.gmra.mrb[0].mxu0 %v2591
        %v3031 = vpop.f32.mrb[0].mxu0
        %v3032 = vadd.f32 %v2807, %v3031
        %v3033 = vpop.f32.mrb[0].mxu0
        %3034 = vmatprep.mubr.f32.mxu0 0.0
        %3035 = vmatmul.mubr.f32.gmra.mrb[0].mxu0 %v2594
        %v3036 = vpop.f32.mrb[0].mxu0
        %v3037 = vadd.f32 %v2812, %v3036
        %v3038 = vpop.f32.mrb[0].mxu0
        %3039 = vmatprep.mubr.f32.mxu0 0.0
        %3040 = vmatmul.mubr.f32.gmra.mrb[0].mxu0 %v2597
        %v3041 = vpop.f32.mrb[0].mxu0
        %v3042 = vadd.f32 %v2817, %v3041
        %v3043 = vpop.f32.mrb[0].mxu0
        %3044 = vmatprep.mubr.f32.mxu0 0.0
        %3045 = vmatmul.mubr.f32.gmra.mrb[0].mxu0 %v2600
        %v3046 = vpop.f32.mrb[0].mxu0
        %v3047 = vadd.f32 %v2822, %v3046
        %v3048 = vpop.f32.mrb[0].mxu0
        %3049 = vmatprep.mubr.f32.mxu0 0.0
        %3050 = vmatmul.mubr.f32.gmra.mrb[0].mxu0 %v2603
        %v3051 = vpop.f32.mrb[0].mxu0
        %v3052 = vadd.f32 %v2827, %v3051
        %v3053 = vpop.f32.mrb[0].mxu0
        %3054 = vmatprep.mubr.f32.mxu0 0.0
        %3055 = vmatmul.mubr.f32.gmra.mrb[0].mxu0 %v2606
        %v3056 = vpop.f32.mrb[0].mxu0
        %v3057 = vadd.f32 %v2832, %v3056
        %v3058 = vpop.f32.mrb[0].mxu0
        %3059 = vmatprep.mubr.f32.mxu0 0.0
        %3060 = vmatmul.mubr.f32.gmra.mrb[0].mxu0 %v2609
        %v3061 = vpop.f32.mrb[0].mxu0
        %v3062 = vadd.f32 %v2837, %v3061
        %v3063 = vpop.f32.mrb[0].mxu0
        %3064 = vmatprep.mubr.f32.mxu0 0.0
        %3065 = vmatmul.mubr.f32.gmra.mrb[0].mxu0 %v2612
        %v3066 = vpop.f32.mrb[0].mxu0
        %v3067 = vadd.f32 %v2842, %v3066
        %v3068 = vpop.f32.mrb[0].mxu0
        %3069 = vmatprep.mubr.f32.mxu0 0.0
        %3070 = vmatmul.mubr.f32.gmra.mrb[0].mxu0 %v2615
        %v3071 = vpop.f32.mrb[0].mxu0
        %v3072 = vadd.f32 %v2847, %v3071
        %v3073 = vpop.f32.mrb[0].mxu0
        %3074 = vmatprep.mubr.f32.mxu0 0.0
        %3075 = vmatmul.mubr.f32.gmra.mrb[0].mxu0 %v2618
        %v3076 = vpop.f32.mrb[0].mxu0
        %v3077 = vadd.f32 %v2852, %v3076
        %v3078 = vpop.f32.mrb[0].mxu0
        %3079 = vmatprep.mubr.f32.mxu0 0.0
        %3080 = vmatmul.mubr.f32.gmra.mrb[0].mxu0 %v2621
        %v3081 = vpop.f32.mrb[0].mxu0
        %v3082 = vadd.f32 %v2857, %v3081
        %v3083 = vpop.f32.mrb[0].mxu0
        %3084 = vmatprep.mubr.f32.mxu0 0.0
        %3085 = vmatmul.mubr.f32.gmra.mrb[0].mxu0 %v2624
        %v3086 = vpop.f32.mrb[0].mxu0
        %v3087 = vadd.f32 %v2862, %v3086
        %v3088 = vpop.f32.mrb[0].mxu0
        %3089 = vmatprep.mubr.f32.mxu0 0.0
        %3090 = vmatmul.mubr.f32.gmra.mrb[0].mxu0 %v2627
        %v3091 = vpop.f32.mrb[0].mxu0
        %v3092 = vadd.f32 %v2867, %v3091
        %v3093 = vpop.f32.mrb[0].mxu0
        %3094 = vmatprep.mubr.f32.mxu0 0.0
        %3095 = vmatmul.mubr.f32.gmra.mrb[0].mxu0 %v2630
        %v3096 = vpop.f32.mrb[0].mxu0
        %v3097 = vadd.f32 %v2872, %v3096
        %v3098 = vpop.f32.mrb[0].mxu0
        %3099 = vmatprep.mubr.f32.mxu0 0.0
        %3100 = vmatmul.mubr.f32.gmra.mrb[0].mxu0 %v2633
        %v3101 = vpop.f32.mrb[0].mxu0
        %v3102 = vadd.f32 %v2877, %v3101
        %v3103 = vpop.f32.mrb[0].mxu0
        %3104 = vmatprep.mubr.f32.mxu0 0.0
        %3105 = vmatmul.mubr.f32.gmra.mrb[0].mxu0 %v2636
        %v3106 = vpop.f32.mrb[0].mxu0
        %v3107 = vadd.f32 %v2882, %v3106
        %v3108 = vpop.f32.mrb[0].mxu0
        %3109 = vmatprep.mubr.f32.mxu0 0.0
        %3110 = vmatmul.mubr.f32.gmra.mrb[0].mxu0 %v2639
        %v3111 = vpop.f32.mrb[0].mxu0
        %v3112 = vadd.f32 %v2887, %v3111
        %v3113 = vpop.f32.mrb[0].mxu0
        %3114 = vmatprep.mubr.f32.mxu0 0.0
        %3115 = vmatmul.mubr.f32.gmra.mrb[0].mxu0 %v2642
        %v3116 = vpop.f32.mrb[0].mxu0
        %v3117 = vadd.f32 %v2892, %v3116
        %v3118 = vpop.f32.mrb[0].mxu0
        %3119 = vmatprep.mubr.f32.mxu0 0.0
        %3120 = vmatmul.mubr.f32.gmra.mrb[0].mxu0 %v2645
        %v3121 = vpop.f32.mrb[0].mxu0
        %v3122 = vadd.f32 %v2897, %v3121
        %v3123 = vpop.f32.mrb[0].mxu0
        %3124 = vmatprep.mubr.f32.mxu0 0.0
        %3125 = vmatmul.mubr.f32.gmra.mrb[0].mxu0 %v2648
        %v3126 = vpop.f32.mrb[0].mxu0
        %v3127 = vadd.f32 %v2902, %v3126
        %v3128 = vpop.f32.mrb[0].mxu0
        %3129 = vmatprep.mubr.f32.mxu0 0.0
        %3130 = vmatmul.mubr.f32.gmra.mrb[0].mxu0 %v2651
        %v3131 = vpop.f32.mrb[0].mxu0
        %v3132 = vadd.f32 %v2907, %v3131
        %v3133 = vpop.f32.mrb[0].mxu0
        %3134 = vmatprep.mubr.f32.mxu0 0.0
        %3135 = vmatmul.mubr.f32.gmra.mrb[0].mxu0 %v2654
        %v3136 = vpop.f32.mrb[0].mxu0
        %v3137 = vadd.f32 %v2912, %v3136
        %v3138 = vpop.f32.mrb[0].mxu0
        %3139 = vmatprep.mubr.f32.mxu0 0.0
        %3140 = vmatmul.mubr.f32.gmra.mrb[0].mxu0 %v2657
        %v3141 = vpop.f32.mrb[0].mxu0
        %v3142 = vadd.f32 %v2917, %v3141
        %v3143 = vpop.f32.mrb[0].mxu0
        %3144 = vmatprep.mubr.f32.mxu0 0.0
        %3145 = vmatmul.mubr.f32.gmra.mrb[0].mxu0 %v2660
        %v3146 = vpop.f32.mrb[0].mxu0
        %v3147 = vadd.f32 %v2922, %v3146
        %v3148 = vpop.f32.mrb[0].mxu0
        %3149 = vmatprep.mubr.f32.mxu0 0.0
        %3150 = vmatmul.mubr.f32.gmra.mrb[0].mxu0 %v2663
        %v3151 = vpop.f32.mrb[0].mxu0
        %v3152 = vadd.f32 %v2927, %v3151
        %v3153 = vpop.f32.mrb[0].mxu0
        %3154 = vmatprep.mubr.f32.mxu0 0.0
        %3155 = vmatmul.mubr.f32.gmra.mrb[0].mxu0 %v2666
        %v3156 = vpop.f32.mrb[0].mxu0
        %v3157 = vadd.f32 %v2932, %v3156
        %v3158 = vpop.f32.mrb[0].mxu0
        %3159 = vmatprep.mubr.f32.mxu0 0.0
        %3160 = vmatmul.mubr.f32.gmra.mrb[0].mxu0 %v2669
        %v3161 = vpop.f32.mrb[0].mxu0
        %v3162 = vadd.f32 %v2937, %v3161
        %v3163 = vpop.f32.mrb[0].mxu0
        %3164 = vmatprep.mubr.f32.mxu0 0.0
        %3165 = vmatmul.mubr.f32.gmra.mrb[0].mxu0 %v2672
        %v3166 = vpop.f32.mrb[0].mxu0
        %v3167 = vadd.f32 %v2942, %v3166
        %v3168 = vpop.f32.mrb[0].mxu0
        %3169 = vmatprep.mubr.f32.mxu0 0.0
        %3170 = vmatmul.mubr.f32.gmra.mrb[0].mxu0 %v2675
        %v3171 = vpop.f32.mrb[0].mxu0
        %v3172 = vadd.f32 %v2947, %v3171
        %v3173 = vpop.f32.mrb[0].mxu0
        %3174 = vdwg.mxu0
        %v3175 = vadd.f32 %v2422, %v3017
        %v3176 = vadd.f32 %v2427, %v3022
        %v3177 = vadd.f32 %v2432, %v3027
        %v3178 = vadd.f32 %v2437, %v3032
        %v3179 = vadd.f32 %v2442, %v3037
        %v3180 = vadd.f32 %v2447, %v3042
        %v3181 = vadd.f32 %v2452, %v3047
        %v3182 = vadd.f32 %v2457, %v3052
        %v3183 = vadd.f32 %v2462, %v3057
        %v3184 = vadd.f32 %v2467, %v3062
        %v3185 = vadd.f32 %v2472, %v3067
        %v3186 = vadd.f32 %v2477, %v3072
        %v3187 = vadd.f32 %v2482, %v3077
        %v3188 = vadd.f32 %v2487, %v3082
        %v3189 = vadd.f32 %v2492, %v3087
        %v3190 = vadd.f32 %v2497, %v3092
        %v3191 = vadd.f32 %v2502, %v3097
        %v3192 = vadd.f32 %v2507, %v3102
        %v3193 = vadd.f32 %v2512, %v3107
        %v3194 = vadd.f32 %v2517, %v3112
        %v3195 = vadd.f32 %v2522, %v3117
        %v3196 = vadd.f32 %v2527, %v3122
        %v3197 = vadd.f32 %v2532, %v3127
        %v3198 = vadd.f32 %v2537, %v3132
        %v3199 = vadd.f32 %v2542, %v3137
        %v3200 = vadd.f32 %v2547, %v3142
        %v3201 = vadd.f32 %v2552, %v3147
        %v3202 = vadd.f32 %v2557, %v3152
        %v3203 = vadd.f32 %v2562, %v3157
        %v3204 = vadd.f32 %v2567, %v3162
        %v3205 = vadd.f32 %v2572, %v3167
        %v3206 = vadd.f32 %v2577, %v3172
        %3207 = vst [vmem:[%s286] sm:$0xff] %v3175
        %3208 = vst [vmem:[%s286 + $0x8] sm:$0xff] %v3176
        %3209 = vst [vmem:[%s286 + $0x10] sm:$0xff] %v3177
        %3210 = vst [vmem:[%s286 + $0x18] sm:$0xff] %v3178
        %3211 = vst [vmem:[%s286 + $0x20] sm:$0xff] %v3179
        %3212 = vst [vmem:[%s286 + $0x28] sm:$0xff] %v3180
        %3213 = vst [vmem:[%s286 + $0x30] sm:$0xff] %v3181
        %3214 = vst [vmem:[%s286 + $0x38] sm:$0xff] %v3182
        %3215 = vst [vmem:[%s286 + $0x40] sm:$0xff] %v3183
        %3216 = vst [vmem:[%s286 + $0x48] sm:$0xff] %v3184
        %3217 = vst [vmem:[%s286 + $0x50] sm:$0xff] %v3185
        %3218 = vst [vmem:[%s286 + $0x58] sm:$0xff] %v3186
        %3219 = vst [vmem:[%s286 + $0x60] sm:$0xff] %v3187
        %3220 = vst [vmem:[%s286 + $0x68] sm:$0xff] %v3188
        %3221 = vst [vmem:[%s286 + $0x70] sm:$0xff] %v3189
        %3222 = vst [vmem:[%s286 + $0x78] sm:$0xff] %v3190
        %3223 = vst [vmem:[%s286 + $0x80] sm:$0xff] %v3191
        %3224 = vst [vmem:[%s286 + $0x88] sm:$0xff] %v3192
        %3225 = vst [vmem:[%s286 + $0x90] sm:$0xff] %v3193
        %3226 = vst [vmem:[%s286 + $0x98] sm:$0xff] %v3194
        %3227 = vst [vmem:[%s286 + $0xa0] sm:$0xff] %v3195
        %3228 = vst [vmem:[%s286 + $0xa8] sm:$0xff] %v3196
        %3229 = vst [vmem:[%s286 + $0xb0] sm:$0xff] %v3197
        %3230 = vst [vmem:[%s286 + $0xb8] sm:$0xff] %v3198
        %3231 = vst [vmem:[%s286 + $0xc0] sm:$0xff] %v3199
        %3232 = vst [vmem:[%s286 + $0xc8] sm:$0xff] %v3200
        %3233 = vst [vmem:[%s286 + $0xd0] sm:$0xff] %v3201
        %3234 = vst [vmem:[%s286 + $0xd8] sm:$0xff] %v3202
        %3235 = vst [vmem:[%s286 + $0xe0] sm:$0xff] %v3203
        %3236 = vst [vmem:[%s286 + $0xe8] sm:$0xff] %v3204
        %3237 = vst [vmem:[%s286 + $0xf0] sm:$0xff] %v3205
        %3238 = vst [vmem:[%s286 + $0xf8] sm:$0xff] %v3206
        %v3239 = vadd.f32 %v3175, %v3176
        %v3240 = vadd.f32 %v3239, %v3177
        %v3241 = vadd.f32 %v3240, %v3178
        %v3242 = vadd.f32 %v3241, %v3179
        %v3243 = vadd.f32 %v3242, %v3180
        %v3244 = vadd.f32 %v3243, %v3181
        %v3245 = vadd.f32 %v3244, %v3182
        %v3246 = vadd.f32 %v3245, %v3183
        %v3247 = vadd.f32 %v3246, %v3184
        %v3248 = vadd.f32 %v3247, %v3185
        %v3249 = vadd.f32 %v3248, %v3186
        %v3250 = vadd.f32 %v3249, %v3187
        %v3251 = vadd.f32 %v3250, %v3188
        %v3252 = vadd.f32 %v3251, %v3189
        %v3253 = vadd.f32 %v3252, %v3190
        %v3254 = vadd.f32 %v3253, %v3191
        %v3255 = vadd.f32 %v3254, %v3192
        %v3256 = vadd.f32 %v3255, %v3193
        %v3257 = vadd.f32 %v3256, %v3194
        %v3258 = vadd.f32 %v3257, %v3195
        %v3259 = vadd.f32 %v3258, %v3196
        %v3260 = vadd.f32 %v3259, %v3197
        %v3261 = vadd.f32 %v3260, %v3198
        %v3262 = vadd.f32 %v3261, %v3199
        %v3263 = vadd.f32 %v3262, %v3200
        %v3264 = vadd.f32 %v3263, %v3201
        %v3265 = vadd.f32 %v3264, %v3202
        %v3266 = vadd.f32 %v3265, %v3203
        %v3267 = vadd.f32 %v3266, %v3204
        %v3268 = vadd.f32 %v3267, %v3205
        %v3269 = vadd.f32 %v3268, %v3206
        %v3270 = vrot.slane %v3269, 4
        %v3271 = vadd.f32 %v3269, %v3270
        %v3272 = vrot.slane %v3271, 2
        %v3273 = vadd.f32 %v3271, %v3272
        %v3274 = vrot.slane %v3273, 1
        %v3275 = vadd.f32 %v3273, %v3274
        %v3276 = vmul.f32 %v3175, %v3175
        %v3277 = vmul.f32 %v3176, %v3176
        %v3278 = vmul.f32 %v3177, %v3177
        %v3279 = vmul.f32 %v3178, %v3178
        %v3280 = vmul.f32 %v3179, %v3179
        %v3281 = vmul.f32 %v3180, %v3180
        %v3282 = vmul.f32 %v3181, %v3181
        %v3283 = vmul.f32 %v3182, %v3182
        %v3284 = vmul.f32 %v3183, %v3183
        %v3285 = vmul.f32 %v3184, %v3184
        %v3286 = vmul.f32 %v3185, %v3185
        %v3287 = vmul.f32 %v3186, %v3186
        %v3288 = vmul.f32 %v3187, %v3187
        %v3289 = vmul.f32 %v3188, %v3188
        %v3290 = vmul.f32 %v3189, %v3189
        %v3291 = vmul.f32 %v3190, %v3190
        %v3292 = vmul.f32 %v3191, %v3191
        %v3293 = vmul.f32 %v3192, %v3192
        %v3294 = vmul.f32 %v3193, %v3193
        %v3295 = vmul.f32 %v3194, %v3194
        %v3296 = vmul.f32 %v3195, %v3195
        %v3297 = vmul.f32 %v3196, %v3196
        %v3298 = vmul.f32 %v3197, %v3197
        %v3299 = vmul.f32 %v3198, %v3198
        %v3300 = vmul.f32 %v3199, %v3199
        %v3301 = vmul.f32 %v3200, %v3200
        %v3302 = vmul.f32 %v3201, %v3201
        %v3303 = vmul.f32 %v3202, %v3202
        %v3304 = vmul.f32 %v3203, %v3203
        %v3305 = vmul.f32 %v3204, %v3204
        %v3306 = vmul.f32 %v3205, %v3205
        %v3307 = vmul.f32 %v3206, %v3206
        %v3308 = vadd.f32 %v3276, %v3277
        %v3309 = vadd.f32 %v3308, %v3278
        %v3310 = vadd.f32 %v3309, %v3279
        %v3311 = vadd.f32 %v3310, %v3280
        %v3312 = vadd.f32 %v3311, %v3281
        %v3313 = vadd.f32 %v3312, %v3282
        %v3314 = vadd.f32 %v3313, %v3283
        %v3315 = vadd.f32 %v3314, %v3284
        %v3316 = vadd.f32 %v3315, %v3285
        %v3317 = vadd.f32 %v3316, %v3286
        %v3318 = vadd.f32 %v3317, %v3287
        %v3319 = vadd.f32 %v3318, %v3288
        %v3320 = vadd.f32 %v3319, %v3289
        %v3321 = vadd.f32 %v3320, %v3290
        %v3322 = vadd.f32 %v3321, %v3291
        %v3323 = vadd.f32 %v3322, %v3292
        %v3324 = vadd.f32 %v3323, %v3293
        %v3325 = vadd.f32 %v3324, %v3294
        %v3326 = vadd.f32 %v3325, %v3295
        %v3327 = vadd.f32 %v3326, %v3296
        %v3328 = vadd.f32 %v3327, %v3297
        %v3329 = vadd.f32 %v3328, %v3298
        %v3330 = vadd.f32 %v3329, %v3299
        %v3331 = vadd.f32 %v3330, %v3300
        %v3332 = vadd.f32 %v3331, %v3301
        %v3333 = vadd.f32 %v3332, %v3302
        %v3334 = vadd.f32 %v3333, %v3303
        %v3335 = vadd.f32 %v3334, %v3304
        %v3336 = vadd.f32 %v3335, %v3305
        %v3337 = vadd.f32 %v3336, %v3306
        %v3338 = vadd.f32 %v3337, %v3307
        %v3339 = vrot.slane %v3338, 4
        %v3340 = vadd.f32 %v3338, %v3339
        %v3341 = vrot.slane %v3340, 2
        %v3342 = vadd.f32 %v3340, %v3341
        %v3343 = vrot.slane %v3342, 1
        %v3344 = vadd.f32 %v3342, %v3343
        %v3345 = vsel %vm1157, %v3275, %v3344
        %3346 = vst [vmem:[%s293] sm:$0x3] %v3345
        %s3347 = sand.u32 %s125, 1
        %s3348 = scalar_lea.sflag [#allocation5], %s3347
        %s3349 = sand.u32 %s125, 1
        %s3350 = smul.addr %s3349, 256
        %s3351 = scalar_lea.vmem [#allocation11], %s3350
        %s3352 = sand.u32 %s151, 1
        %s3353 = scalar_lea.sflag [#allocation13], %s3352
        %s3354 = sand.u32 %s151, 1
        %s3355 = smul.addr %s3354, 2
        %s3356 = scalar_lea.vmem [#allocation12], %s3355
        // Predicated region
        $region53: #{dense_block_fwd.5} parent=35 // pred_check
          %p3357 = pneg %p135
        $region54: #{dense_block_fwd.5} parent=35 // pred_check_branch
          %3359 = sbr.rel (%p3357) target = $region56
        $region55: #{dense_block_fwd.5} parent=35 // pred_region
          %s3360 = smul.u32 32, %s28
          %s3362 = ssub.s32 4096, 4096
          %3363 = vsyncadd %s3348, %s3362
          %s3364 = smul.addr %s3360, 128
          %s3365 = scalar_lea.hbm %s4, %s3364
          %s3366 = sshll.u32 %s3351, 4
          %s3367 = int_to_ptr.vmem [resolvable:$true] %s3366
          %3372 = dma.vmem_to_hbm [thread:$0]  %s3367, 4096, %s3365, %s3348, 128, 128, 8
        $region56: #{dense_block_fwd.5} parent=35 // pred_fallthru
          _
        // Predicated region
        $region57: #{dense_block_fwd.5} parent=35 // pred_check
          %p3373 = pneg %p161
        $region58: #{dense_block_fwd.5} parent=35 // pred_check_branch
          %3375 = sbr.rel (%p3373) target = $region60
        $region59: #{dense_block_fwd.5} parent=35 // pred_region
          %s3377 = ssub.s32 32, 32
          %3378 = vsyncadd %s3353, %s3377
          %s3379 = smul.addr %s28, 32
          %s3380 = scalar_lea.hbm %s5, %s3379
          %s3382 = sshll.u32 %s3356, 4
          %s3383 = int_to_ptr.vmem [resolvable:$true] %s3382
          %3385 = dma.vmem_to_hbm [thread:$0]  %s3383, 32, %s3380, %s3353
        $region60: #{dense_block_fwd.5} parent=35 // pred_fallthru
          _
      $region36: #{dense_block_fwd.5} parent=5 // pred_fallthru
        _
      %p3386 = scmp.le.s32.totalorder 2, %s23
      // Predicated region
      $region61: #{dense_block_fwd.5} parent=5 // pred_check
        %p3387 = pneg %p3386
      $region62: #{dense_block_fwd.5} parent=5 // pred_check_branch
        %3389 = sbr.rel (%p3387) target = $region64
      $region63: #{dense_block_fwd.5} parent=5 // pred_region
        %s3390 = ssub.s32 %s23, 2
        // Predicated region
        $region65: #{dense_block_fwd.5} parent=63 // pred_check
          %p3391 = pneg %p141
        $region66: #{dense_block_fwd.5} parent=63 // pred_check_branch
          %3393 = sbr.rel (%p3391) target = $region68
        $region67: #{dense_block_fwd.5} parent=63 // pred_region
          %s3394 = sand.u32 %s126, 1
          %s3395 = scalar_lea.sflag [#allocation5], %s3394
          %s3396 = sand.u32 %s126, 1
          %s3397 = smul.addr %s3396, 256
          %s3398 = scalar_lea.vmem [#allocation11], %s3397
          %3399 = dma.done %s3395, 4096
        $region68: #{dense_block_fwd.5} parent=63 // pred_fallthru
          _
        // Predicated region
        $region69: #{dense_block_fwd.5} parent=63 // pred_check
          %p3400 = pneg %p167
        $region70: #{dense_block_fwd.5} parent=63 // pred_check_branch
          %3402 = sbr.rel (%p3400) target = $region72
        $region71: #{dense_block_fwd.5} parent=63 // pred_region
          %s3403 = sand.u32 %s152, 1
          %s3404 = scalar_lea.sflag [#allocation13], %s3403
          %s3405 = sand.u32 %s152, 1
          %s3406 = smul.addr %s3405, 2
          %s3407 = scalar_lea.vmem [#allocation12], %s3406
          %3408 = dma.done %s3404, 32
        $region72: #{dense_block_fwd.5} parent=63 // pred_fallthru
          _
      $region64: #{dense_block_fwd.5} parent=5 // pred_fallthru
        _
    $region6: #{dense_block_fwd.5} parent=1 // loop_footer
      %s27 = sadd.s32 1, %s23
    $region7: #{dense_block_fwd.5} parent=1 // loop_footer_branch
      %22 = sbr.rel target = $region3
    $region8: #{dense_block_fwd.5} parent=1 // loop_exit
      _
    %3409 = vsyncpa [#allocation4], 1
    %s3410 = scalar_lea.sflag [#allocation4], 1
    %3411 = vsyncpa %s3410, 1
    %3412 = vsyncpa [#allocation7], 1
    %3413 = vsyncpa [#allocation10], 1
    %3414 = vsyncpa [#allocation5], 1
    %s3415 = scalar_lea.sflag [#allocation5], 1
    %3416 = vsyncpa %s3415, 1
    %3417 = vsyncpa [#allocation13], 1
    %s3418 = scalar_lea.sflag [#allocation13], 1
    %3419 = vsyncpa %s3418, 1

</llo_original>
